<compile_context>
chip_gen: v6e
topology: v6e:2x2x1
jax: 0.10.0
libtpu: 0.0.40
codegen_flags: <defaults>
</compile_context>

<pallas_src>
import jax
import jax.numpy as jnp
from jax import lax
from jax.experimental import pallas as pl
from jax.experimental.pallas import tpu as pltpu


def ema_kernel(x_ref, pool_ref, eh_ref, ew_ref, mask_ref,
               w1_ref, b1_ref, w3_ref, b3_ref, gnw_ref, gnb_ref, x11_ref,
               o_ref):
    # x_ref   : (TB, Cg, H*W)   lane-dense group slabs
    # pool_ref: (H*W, H+W)      [P_h | P_w] pooling matrix (mean over W / over H)
    # eh_ref  : (H, H*W)        expand a per-row value over its W block
    # ew_ref  : (W, H*W)        expand a per-col value over all rows
    # mask_ref: (9, H*W)        3x3 halo validity masks (flattened layout)
    # w1_ref  : (Cg, Cg)        conv1x1 weight (out, in);  b1_ref: (Cg, 1)
    # w3_ref  : (Cg, 9*Cg)      conv3x3 weight, cols = (tap-major, in-minor)
    # b3_ref  : (Cg, 1)
    # gnw/gnb : (Cg, 1)         GroupNorm affine
    # x11_ref : (Cg, 1)         softmax(gn_b), hoisted (data-independent)
    # o_ref   : (TB, Cg, H*W)
    tb, cg, hw = x_ref.shape
    h = eh_ref.shape[0]
    w = ew_ref.shape[0]

    # Constants: load once per grid step; hoist every broadcast out of the
    # per-slab loop (broadcast_in_dim is not CSE'd across iterations).
    pool = pool_ref[...]
    eh = eh_ref[...]
    ew = ew_ref[...]
    masks = mask_ref[...]
    mask_rows = [masks[k:k + 1, :] for k in range(9)]        # (1, HW) each
    w1 = w1_ref[...]
    w3m = w3_ref[...]
    gnw = gnw_ref[...]
    b1r = jnp.broadcast_to(b1_ref[...], (cg, h + w))
    b3r = jnp.broadcast_to(b3_ref[...], (cg, hw))
    gnbr = jnp.broadcast_to(gnb_ref[...], (cg, hw))
    x11r = jnp.broadcast_to(x11_ref[...], (cg, hw))

    for t in range(tb):
        x = x_ref[t].astype(jnp.float32)                     # (Cg, HW)

        # ---- pool_h / pool_w + conv1x1, all on the MXU ----
        cat = jnp.dot(x, pool, preferred_element_type=jnp.float32)        # (Cg, H+W)
        hw1 = jnp.dot(w1, cat, preferred_element_type=jnp.float32) + b1r  # (Cg, H+W)
        sig = jax.nn.sigmoid(hw1)
        # expand sig_h over W-blocks and sig_w over rows -> gate (Cg, HW)
        gate = (jnp.dot(sig[:, :h], eh, preferred_element_type=jnp.float32) *
                jnp.dot(sig[:, h:], ew, preferred_element_type=jnp.float32))

        # ---- GroupNorm(num_groups == num_channels): per-channel over (H,W) ----
        xg = x * gate
        mu = jnp.mean(xg, axis=1, keepdims=True)                          # (Cg, 1)
        var = jnp.mean((xg - mu) ** 2, axis=1, keepdims=True)             # (Cg, 1)
        scale = lax.rsqrt(var + 1e-5) * gnw                               # (Cg, 1)
        x1 = (xg - mu) * scale + gnbr                                     # (Cg, HW)

        # ---- conv3x3 (padding=1) as im2col + one MXU matmul ----
        patches = []
        for k in range(9):
            dy, dx = k // 3 - 1, k % 3 - 1
            off = dy * w + dx
            if off == 0:
                patches.append(x)           # center tap: mask is all ones
            else:
                shifted = pltpu.roll(x, shift=(-off) % hw, axis=1)
                patches.append(shifted * mask_rows[k])                    # zero halo
        col = jnp.concatenate(patches, axis=0)                            # (9*Cg, HW)
        x2 = jnp.dot(w3m, col, preferred_element_type=jnp.float32) + b3r  # (Cg, HW)

        # ---- channel softmax of spatially pooled x2 (x11 precomputed) ----
        m2 = jnp.mean(x2, axis=1, keepdims=True)                          # (Cg, 1)
        m2 = m2 - jnp.max(m2, axis=0, keepdims=True)
        e2 = jnp.exp(m2)
        x21 = e2 / jnp.sum(e2, axis=0, keepdims=True)                     # (Cg, 1)

        # ---- weights = x11 . x2 + x21 . x1 (channel-weighted sums), then gate ----
        weights = jnp.sum(x11r * x2 + x21 * x1, axis=0, keepdims=True)    # (1, HW)
        o_ref[t] = (x * jax.nn.sigmoid(weights)).astype(o_ref.dtype)


def _pick_tb(bg, cg, hw):
    """Slabs per grid step: largest divisor of bg that (a) keeps the grid >= 2
    (both v7x TensorCores get work) and (b) keeps the unrolled in-kernel f32
    working set well under a few MiB of VMEM."""
    slab_bytes = 16 * cg * hw * 4           # x, gate, xg, x1, col(9x), x2, out, misc
    cap = min(8, max(1, (4 * 1024 * 1024) // max(1, slab_bytes)))
    tb = 1
    for cand in range(1, min(bg, cap) + 1):
        if bg % cand == 0 and bg // cand >= 2:
            tb = cand
    return tb


def ema_pallas(x, params, groups):
    b, c, h, w = x.shape
    assert c % groups == 0 and c // groups > 0
    cg = c // groups
    bg = b * groups
    hw = h * w
    tb = _pick_tb(bg, cg, hw)

    gx = x.reshape(bg, cg, hw)   # lane-dense spatial layout; no padded HBM copy

    # --- small constant matrices (resident in VMEM, constant index_map) ---
    ii = jnp.arange(hw, dtype=jnp.int32) // w            # row index per flat pos
    jj = jnp.arange(hw, dtype=jnp.int32) % w             # col index per flat pos
    pool_h = (ii[:, None] == jnp.arange(h)[None, :]).astype(jnp.float32) / w  # (HW, H)
    pool_w = (jj[:, None] == jnp.arange(w)[None, :]).astype(jnp.float32) / h  # (HW, W)
    pool_mat = jnp.concatenate([pool_h, pool_w], axis=1)                      # (HW, H+W)
    eh = (jnp.arange(h)[:, None] == ii[None, :]).astype(jnp.float32)          # (H, HW)
    ew = (jnp.arange(w)[:, None] == jj[None, :]).astype(jnp.float32)          # (W, HW)

    # 3x3 halo validity masks per tap (flattened layout)
    mlist = []
    for ky in range(3):
        for kx in range(3):
            dy, dx = ky - 1, kx - 1
            mlist.append((ii + dy >= 0) & (ii + dy < h) & (jj + dx >= 0) & (jj + dx < w))
    masks = jnp.stack(mlist, axis=0).astype(jnp.float32)                      # (9, HW)

    w1 = params["w1"].astype(jnp.float32)                                     # (Cg, Cg)
    b1 = params["b1"].reshape(cg, 1).astype(jnp.float32)
    # torch conv weight (out, in, kh, kw) -> columns ordered (ky*3+kx)*Cg + in
    w3m = jnp.transpose(params["w3"], (0, 2, 3, 1)).reshape(cg, 9 * cg).astype(jnp.float32)
    b3 = params["b3"].reshape(cg, 1).astype(jnp.float32)
    gnw = params["gn_w"].reshape(cg, 1).astype(jnp.float32)
    gnb = params["gn_b"].reshape(cg, 1).astype(jnp.float32)
    # spatial mean of the GroupNorm output is exactly gn_b -> data-independent
    x11 = jax.nn.softmax(params["gn_b"].astype(jnp.float32)).reshape(cg, 1)

    out = pl.pallas_call(
        ema_kernel,
        out_shape=jax.ShapeDtypeStruct((bg, cg, hw), x.dtype),
        grid_spec=pltpu.PrefetchScalarGridSpec(
            num_scalar_prefetch=0,
            grid=(bg // tb,),
            in_specs=[
                pl.BlockSpec((tb, cg, hw), lambda i: (i, 0, 0)),
                pl.BlockSpec((hw, h + w), lambda i: (0, 0)),
                pl.BlockSpec((h, hw), lambda i: (0, 0)),
                pl.BlockSpec((w, hw), lambda i: (0, 0)),
                pl.BlockSpec((9, hw), lambda i: (0, 0)),
                pl.BlockSpec((cg, cg), lambda i: (0, 0)),
                pl.BlockSpec((cg, 1), lambda i: (0, 0)),
                pl.BlockSpec((cg, 9 * cg), lambda i: (0, 0)),
                pl.BlockSpec((cg, 1), lambda i: (0, 0)),
                pl.BlockSpec((cg, 1), lambda i: (0, 0)),
                pl.BlockSpec((cg, 1), lambda i: (0, 0)),
                pl.BlockSpec((cg, 1), lambda i: (0, 0)),
            ],
            out_specs=pl.BlockSpec((tb, cg, hw), lambda i: (i, 0, 0)),
        ),
        compiler_params=pltpu.CompilerParams(
            dimension_semantics=("parallel",),
            # Explicit budget, safe on v7x (64 MiB physical); TB cap keeps the
            # double-buffered in/out blocks + im2col scratch far below this.
            vmem_limit_bytes=48 * 1024 * 1024,
        ),
    )(gx, pool_mat, eh, ew, masks, w1, b1, w3m, b3, gnw, gnb, x11)

    return out.reshape(b, c, h, w)


def ema_reference(x, params, groups):
    """Pure-JAX mirror of the PyTorch forward, for correctness checking."""
    b, c, h, w = x.shape
    cg = c // groups
    gx = x.reshape(b * groups, cg, h, w)

    x_h = gx.mean(axis=3)                                           # (bg, cg, h)
    x_w = gx.mean(axis=2)                                           # (bg, cg, w)
    w1, b1 = params["w1"], params["b1"]
    hw_h = jnp.einsum("oc,bch->boh", w1, x_h) + b1[None, :, None]
    hw_w = jnp.einsum("oc,bcw->bow", w1, x_w) + b1[None, :, None]
    sig_h = jax.nn.sigmoid(hw_h)[:, :, :, None]
    sig_w = jax.nn.sigmoid(hw_w)[:, :, None, :]

    xg = gx * sig_h * sig_w
    mu = xg.mean(axis=(2, 3), keepdims=True)
    var = ((xg - mu) ** 2).mean(axis=(2, 3), keepdims=True)
    x1 = (xg - mu) / jnp.sqrt(var + 1e-5)
    x1 = (x1 * params["gn_w"][None, :, None, None]
          + params["gn_b"][None, :, None, None])

    x2 = jax.lax.conv_general_dilated(
        gx, params["w3"], (1, 1), "SAME",
        dimension_numbers=("NCHW", "OIHW", "NCHW")) + params["b3"][None, :, None, None]

    s1 = jax.nn.softmax(x1.mean(axis=(2, 3)), axis=-1)              # (bg, cg)
    s2 = jax.nn.softmax(x2.mean(axis=(2, 3)), axis=-1)
    weights = (jnp.einsum("bc,bchw->bhw", s1, x2)
               + jnp.einsum("bc,bchw->bhw", s2, x1))
    out = gx * jax.nn.sigmoid(weights)[:, None, :, :]
    return out.reshape(b, c, h, w)


if __name__ == "__main__":
    # Small, module-consistent shapes: channels divisible by groups, cg > 0.
    B, C, H, W = 2, 16, 16, 16
    GROUPS = 4
    CG = C // GROUPS

    key = jax.random.PRNGKey(0)
    kx, k1, k2, k3, k4, k5, k6 = jax.random.split(key, 7)

    x = jax.random.normal(kx, (B, C, H, W), jnp.float32)
    params = {
        "w1": 0.3 * jax.random.normal(k1, (CG, CG), jnp.float32),
        "b1": 0.1 * jax.random.normal(k2, (CG,), jnp.float32),
        "w3": 0.2 * jax.random.normal(k3, (CG, CG, 3, 3), jnp.float32),
        "b3": 0.1 * jax.random.normal(k4, (CG,), jnp.float32),
        "gn_w": 1.0 + 0.1 * jax.random.normal(k5, (CG,), jnp.float32),
        "gn_b": 0.1 * jax.random.normal(k6, (CG,), jnp.float32),
    }

    out = ema_pallas(x, params, GROUPS)
    out = jax.block_until_ready(out)

    ref = ema_reference(x, params, GROUPS)
    ref = jax.block_until_ready(ref)

    assert out.shape == (B, C, H, W)
    assert jnp.allclose(out, ref, atol=5e-4, rtol=5e-4), (
        float(jnp.max(jnp.abs(out - ref))))

    print("KERNEL_OK")
</pallas_src>

<mosaic_0001>
module attributes {stable_mosaic.version = 11 : i64} {
  func.func @ema_kernel(%arg0: i32, %arg1: memref<4x4x256xf32, #tpu.memory_space<vmem>>, %arg2: memref<256x32xf32, #tpu.memory_space<vmem>>, %arg3: memref<16x256xf32, #tpu.memory_space<vmem>>, %arg4: memref<16x256xf32, #tpu.memory_space<vmem>>, %arg5: memref<9x256xf32, #tpu.memory_space<vmem>>, %arg6: memref<4x4xf32, #tpu.memory_space<vmem>>, %arg7: memref<4x1xf32, #tpu.memory_space<vmem>>, %arg8: memref<4x36xf32, #tpu.memory_space<vmem>>, %arg9: memref<4x1xf32, #tpu.memory_space<vmem>>, %arg10: memref<4x1xf32, #tpu.memory_space<vmem>>, %arg11: memref<4x1xf32, #tpu.memory_space<vmem>>, %arg12: memref<4x1xf32, #tpu.memory_space<vmem>>, %arg13: memref<4x4x256xf32, #tpu.memory_space<vmem>>) attributes {dimension_semantics = [#tpu.dimension_semantics<parallel>], iteration_bounds = array<i64: 2>, scalar_prefetch = 0 : i64, scratch_operands = 0 : i64, tpu.core_type = #tpu.core_type<tc>, window_params = [{transform_indices = @transform_0, window_bounds = array<i64: 4, 4, 256>}, {pipeline_mode = #tpu.pipeline_mode<synchronous>, transform_indices = @transform_1, window_bounds = array<i64: 256, 32>}, {pipeline_mode = #tpu.pipeline_mode<synchronous>, transform_indices = @transform_2, window_bounds = array<i64: 16, 256>}, {pipeline_mode = #tpu.pipeline_mode<synchronous>, transform_indices = @transform_3, window_bounds = array<i64: 16, 256>}, {pipeline_mode = #tpu.pipeline_mode<synchronous>, transform_indices = @transform_4, window_bounds = array<i64: 9, 256>}, {pipeline_mode = #tpu.pipeline_mode<synchronous>, transform_indices = @transform_5, window_bounds = array<i64: 4, 4>}, {pipeline_mode = #tpu.pipeline_mode<synchronous>, transform_indices = @transform_6, window_bounds = array<i64: 4, 1>}, {pipeline_mode = #tpu.pipeline_mode<synchronous>, transform_indices = @transform_7, window_bounds = array<i64: 4, 36>}, {pipeline_mode = #tpu.pipeline_mode<synchronous>, transform_indices = @transform_8, window_bounds = array<i64: 4, 1>}, {pipeline_mode = #tpu.pipeline_mode<synchronous>, transform_indices = @transform_9, window_bounds = array<i64: 4, 1>}, {pipeline_mode = #tpu.pipeline_mode<synchronous>, transform_indices = @transform_10, window_bounds = array<i64: 4, 1>}, {pipeline_mode = #tpu.pipeline_mode<synchronous>, transform_indices = @transform_11, window_bounds = array<i64: 4, 1>}, {transform_indices = @transform_12, window_bounds = array<i64: 4, 4, 256>}]} {
    %c0 = arith.constant 0 : index
    %c0_0 = arith.constant 0 : index
    %0 = vector.load %arg2[%c0, %c0_0] : memref<256x32xf32, #tpu.memory_space<vmem>>, vector<256x32xf32>
    %c0_1 = arith.constant 0 : index
    %c0_2 = arith.constant 0 : index
    %1 = vector.load %arg3[%c0_1, %c0_2] : memref<16x256xf32, #tpu.memory_space<vmem>>, vector<16x256xf32>
    %c0_3 = arith.constant 0 : index
    %c0_4 = arith.constant 0 : index
    %2 = vector.load %arg4[%c0_3, %c0_4] : memref<16x256xf32, #tpu.memory_space<vmem>>, vector<16x256xf32>
    %c0_5 = arith.constant 0 : index
    %c0_6 = arith.constant 0 : index
    %3 = vector.load %arg5[%c0_5, %c0_6] : memref<9x256xf32, #tpu.memory_space<vmem>>, vector<9x256xf32>
    %4 = vector.extract_strided_slice %3 {offsets = [0, 0], sizes = [1, 256], strides = [1, 1]} : vector<9x256xf32> to vector<1x256xf32>
    %5 = vector.extract_strided_slice %3 {offsets = [1, 0], sizes = [1, 256], strides = [1, 1]} : vector<9x256xf32> to vector<1x256xf32>
    %6 = vector.extract_strided_slice %3 {offsets = [2, 0], sizes = [1, 256], strides = [1, 1]} : vector<9x256xf32> to vector<1x256xf32>
    %7 = vector.extract_strided_slice %3 {offsets = [3, 0], sizes = [1, 256], strides = [1, 1]} : vector<9x256xf32> to vector<1x256xf32>
    %8 = vector.extract_strided_slice %3 {offsets = [5, 0], sizes = [1, 256], strides = [1, 1]} : vector<9x256xf32> to vector<1x256xf32>
    %9 = vector.extract_strided_slice %3 {offsets = [6, 0], sizes = [1, 256], strides = [1, 1]} : vector<9x256xf32> to vector<1x256xf32>
    %10 = vector.extract_strided_slice %3 {offsets = [7, 0], sizes = [1, 256], strides = [1, 1]} : vector<9x256xf32> to vector<1x256xf32>
    %11 = vector.extract_strided_slice %3 {offsets = [8, 0], sizes = [1, 256], strides = [1, 1]} : vector<9x256xf32> to vector<1x256xf32>
    %c0_7 = arith.constant 0 : index
    %c0_8 = arith.constant 0 : index
    %12 = vector.load %arg6[%c0_7, %c0_8] : memref<4x4xf32, #tpu.memory_space<vmem>>, vector<4x4xf32>
    %c0_9 = arith.constant 0 : index
    %c0_10 = arith.constant 0 : index
    %13 = vector.load %arg8[%c0_9, %c0_10] : memref<4x36xf32, #tpu.memory_space<vmem>>, vector<4x36xf32>
    %c0_11 = arith.constant 0 : index
    %c0_12 = arith.constant 0 : index
    %14 = vector.load %arg10[%c0_11, %c0_12] : memref<4x1xf32, #tpu.memory_space<vmem>>, vector<4x1xf32>
    %c0_13 = arith.constant 0 : index
    %c0_14 = arith.constant 0 : index
    %15 = vector.load %arg7[%c0_13, %c0_14] : memref<4x1xf32, #tpu.memory_space<vmem>>, vector<4x1xf32>
    %16 = vector.shape_cast %15 : vector<4x1xf32> to vector<4x1xf32>
    %17 = vector.broadcast %16 : vector<4x1xf32> to vector<4x32xf32>
    %c0_15 = arith.constant 0 : index
    %c0_16 = arith.constant 0 : index
    %18 = vector.load %arg9[%c0_15, %c0_16] : memref<4x1xf32, #tpu.memory_space<vmem>>, vector<4x1xf32>
    %19 = vector.shape_cast %18 : vector<4x1xf32> to vector<4x1xf32>
    %20 = vector.broadcast %19 : vector<4x1xf32> to vector<4x256xf32>
    %c0_17 = arith.constant 0 : index
    %c0_18 = arith.constant 0 : index
    %21 = vector.load %arg11[%c0_17, %c0_18] : memref<4x1xf32, #tpu.memory_space<vmem>>, vector<4x1xf32>
    %22 = vector.shape_cast %21 : vector<4x1xf32> to vector<4x1xf32>
    %23 = vector.broadcast %22 : vector<4x1xf32> to vector<4x256xf32>
    %c0_19 = arith.constant 0 : index
    %c0_20 = arith.constant 0 : index
    %24 = vector.load %arg12[%c0_19, %c0_20] : memref<4x1xf32, #tpu.memory_space<vmem>>, vector<4x1xf32>
    %25 = vector.shape_cast %24 : vector<4x1xf32> to vector<4x1xf32>
    %26 = vector.broadcast %25 : vector<4x1xf32> to vector<4x256xf32>
    %c0_21 = arith.constant 0 : index
    %c0_22 = arith.constant 0 : index
    %c0_23 = arith.constant 0 : index
    %27 = vector.load %arg1[%c0_21, %c0_22, %c0_23] : memref<4x4x256xf32, #tpu.memory_space<vmem>>, vector<1x4x256xf32>
    %28 = vector.shape_cast %27 : vector<1x4x256xf32> to vector<4x256xf32>
    %cst = arith.constant dense<0.000000e+00> : vector<4x32xf32>
    %29 = tpu.matmul %28, %0, %cst {dimension_numbers = #tpu.dot_dimension_numbers<[1], [0], [0], [1], [0, 0, 1, 1], [], []>} : vector<4x256xf32>, vector<256x32xf32>, vector<4x32xf32> -> vector<4x32xf32>
    %cst_24 = arith.constant dense<0.000000e+00> : vector<4x32xf32>
    %30 = tpu.matmul %12, %29, %cst_24 {dimension_numbers = #tpu.dot_dimension_numbers<[1], [0], [0], [1], [0, 0, 1, 1], [], []>} : vector<4x4xf32>, vector<4x32xf32>, vector<4x32xf32> -> vector<4x32xf32>
    %31 = arith.addf %30, %17 : vector<4x32xf32>
    %32 = arith.negf %31 : vector<4x32xf32>
    %33 = math.exp %32 : vector<4x32xf32>
    %cst_25 = arith.constant 1.000000e+00 : f32
    %34 = vector.broadcast %cst_25 : f32 to vector<4x32xf32>
    %35 = arith.addf %34, %33 : vector<4x32xf32>
    %36 = arith.divf %34, %35 : vector<4x32xf32>
    %37 = vector.extract_strided_slice %36 {offsets = [0, 0], sizes = [4, 16], strides = [1, 1]} : vector<4x32xf32> to vector<4x16xf32>
    %cst_26 = arith.constant dense<0.000000e+00> : vector<4x256xf32>
    %38 = tpu.matmul %37, %1, %cst_26 {dimension_numbers = #tpu.dot_dimension_numbers<[1], [0], [0], [1], [0, 0, 1, 1], [], []>} : vector<4x16xf32>, vector<16x256xf32>, vector<4x256xf32> -> vector<4x256xf32>
    %39 = vector.extract_strided_slice %36 {offsets = [0, 16], sizes = [4, 16], strides = [1, 1]} : vector<4x32xf32> to vector<4x16xf32>
    %cst_27 = arith.constant dense<0.000000e+00> : vector<4x256xf32>
    %40 = tpu.matmul %39, %2, %cst_27 {dimension_numbers = #tpu.dot_dimension_numbers<[1], [0], [0], [1], [0, 0, 1, 1], [], []>} : vector<4x16xf32>, vector<16x256xf32>, vector<4x256xf32> -> vector<4x256xf32>
    %41 = arith.mulf %38, %40 : vector<4x256xf32>
    %42 = arith.mulf %28, %41 : vector<4x256xf32>
    %cst_28 = arith.constant dense<0.000000e+00> : vector<4xf32>
    %43 = vector.multi_reduction <add>, %42, %cst_28 [1] : vector<4x256xf32> to vector<4xf32>
    %44 = vector.shape_cast %43 : vector<4xf32> to vector<4x1xf32>
    %cst_29 = arith.constant 2.560000e+02 : f32
    %45 = vector.broadcast %cst_29 : f32 to vector<4x1xf32>
    %46 = arith.divf %44, %45 : vector<4x1xf32>
    %47 = vector.broadcast %46 : vector<4x1xf32> to vector<4x256xf32>
    %48 = arith.subf %42, %47 : vector<4x256xf32>
    %49 = arith.mulf %48, %48 : vector<4x256xf32>
    %cst_30 = arith.constant dense<0.000000e+00> : vector<4xf32>
    %50 = vector.multi_reduction <add>, %49, %cst_30 [1] : vector<4x256xf32> to vector<4xf32>
    %51 = vector.shape_cast %50 : vector<4xf32> to vector<4x1xf32>
    %cst_31 = arith.constant 2.560000e+02 : f32
    %52 = vector.broadcast %cst_31 : f32 to vector<4x1xf32>
    %53 = arith.divf %51, %52 : vector<4x1xf32>
    %cst_32 = arith.constant 9.99999974E-6 : f32
    %54 = vector.broadcast %cst_32 : f32 to vector<4x1xf32>
    %55 = arith.addf %53, %54 : vector<4x1xf32>
    %56 = math.rsqrt %55 : vector<4x1xf32>
    %57 = arith.mulf %56, %14 : vector<4x1xf32>
    %58 = vector.broadcast %46 : vector<4x1xf32> to vector<4x256xf32>
    %59 = arith.subf %42, %58 : vector<4x256xf32>
    %60 = vector.broadcast %57 : vector<4x1xf32> to vector<4x256xf32>
    %61 = arith.mulf %59, %60 : vector<4x256xf32>
    %62 = arith.addf %61, %23 : vector<4x256xf32>
    %c17_i32 = arith.constant 17 : i32
    %63 = tpu.dynamic_rotate %28 by %c17_i32 dim 1 : vector<4x256xf32>, i32 -> vector<4x256xf32>
    %64 = vector.broadcast %4 : vector<1x256xf32> to vector<4x256xf32>
    %65 = arith.mulf %63, %64 : vector<4x256xf32>
    %c16_i32 = arith.constant 16 : i32
    %66 = tpu.dynamic_rotate %28 by %c16_i32 dim 1 : vector<4x256xf32>, i32 -> vector<4x256xf32>
    %67 = vector.broadcast %5 : vector<1x256xf32> to vector<4x256xf32>
    %68 = arith.mulf %66, %67 : vector<4x256xf32>
    %c15_i32 = arith.constant 15 : i32
    %69 = tpu.dynamic_rotate %28 by %c15_i32 dim 1 : vector<4x256xf32>, i32 -> vector<4x256xf32>
    %70 = vector.broadcast %6 : vector<1x256xf32> to vector<4x256xf32>
    %71 = arith.mulf %69, %70 : vector<4x256xf32>
    %c1_i32 = arith.constant 1 : i32
    %72 = tpu.dynamic_rotate %28 by %c1_i32 dim 1 : vector<4x256xf32>, i32 -> vector<4x256xf32>
    %73 = vector.broadcast %7 : vector<1x256xf32> to vector<4x256xf32>
    %74 = arith.mulf %72, %73 : vector<4x256xf32>
    %c255_i32 = arith.constant 255 : i32
    %75 = tpu.dynamic_rotate %28 by %c255_i32 dim 1 : vector<4x256xf32>, i32 -> vector<4x256xf32>
    %76 = vector.broadcast %8 : vector<1x256xf32> to vector<4x256xf32>
    %77 = arith.mulf %75, %76 : vector<4x256xf32>
    %c241_i32 = arith.constant 241 : i32
    %78 = tpu.dynamic_rotate %28 by %c241_i32 dim 1 : vector<4x256xf32>, i32 -> vector<4x256xf32>
    %79 = vector.broadcast %9 : vector<1x256xf32> to vector<4x256xf32>
    %80 = arith.mulf %78, %79 : vector<4x256xf32>
    %c240_i32 = arith.constant 240 : i32
    %81 = tpu.dynamic_rotate %28 by %c240_i32 dim 1 : vector<4x256xf32>, i32 -> vector<4x256xf32>
    %82 = vector.broadcast %10 : vector<1x256xf32> to vector<4x256xf32>
    %83 = arith.mulf %81, %82 : vector<4x256xf32>
    %c239_i32 = arith.constant 239 : i32
    %84 = tpu.dynamic_rotate %28 by %c239_i32 dim 1 : vector<4x256xf32>, i32 -> vector<4x256xf32>
    %85 = vector.broadcast %11 : vector<1x256xf32> to vector<4x256xf32>
    %86 = arith.mulf %84, %85 : vector<4x256xf32>
    %87 = tpu.concatenate %65, %68, %71, %74, %28, %77, %80, %83, %86 in 0 : vector<4x256xf32>, vector<4x256xf32>, vector<4x256xf32>, vector<4x256xf32>, vector<4x256xf32>, vector<4x256xf32>, vector<4x256xf32>, vector<4x256xf32>, vector<4x256xf32> -> vector<36x256xf32>
    %cst_33 = arith.constant dense<0.000000e+00> : vector<4x256xf32>
    %88 = tpu.matmul %13, %87, %cst_33 {dimension_numbers = #tpu.dot_dimension_numbers<[1], [0], [0], [1], [0, 0, 1, 1], [], []>} : vector<4x36xf32>, vector<36x256xf32>, vector<4x256xf32> -> vector<4x256xf32>
    %89 = arith.addf %88, %20 : vector<4x256xf32>
    %cst_34 = arith.constant dense<0.000000e+00> : vector<4xf32>
    %90 = vector.multi_reduction <add>, %89, %cst_34 [1] : vector<4x256xf32> to vector<4xf32>
    %91 = vector.shape_cast %90 : vector<4xf32> to vector<4x1xf32>
    %cst_35 = arith.constant 2.560000e+02 : f32
    %92 = vector.broadcast %cst_35 : f32 to vector<4x1xf32>
    %93 = arith.divf %91, %92 : vector<4x1xf32>
    %cst_36 = arith.constant dense<0xFF800000> : vector<1xf32>
    %94 = vector.multi_reduction <maximumf>, %93, %cst_36 [0] : vector<4x1xf32> to vector<1xf32>
    %95 = vector.shape_cast %94 : vector<1xf32> to vector<1x1xf32>
    %96 = vector.broadcast %95 : vector<1x1xf32> to vector<4x1xf32>
    %97 = arith.subf %93, %96 : vector<4x1xf32>
    %98 = math.exp %97 : vector<4x1xf32>
    %cst_37 = arith.constant dense<0.000000e+00> : vector<1xf32>
    %99 = vector.multi_reduction <add>, %98, %cst_37 [0] : vector<4x1xf32> to vector<1xf32>
    %100 = vector.shape_cast %99 : vector<1xf32> to vector<1x1xf32>
    %101 = vector.broadcast %100 : vector<1x1xf32> to vector<4x1xf32>
    %102 = arith.divf %98, %101 : vector<4x1xf32>
    %103 = arith.mulf %26, %89 : vector<4x256xf32>
    %104 = vector.broadcast %102 : vector<4x1xf32> to vector<4x256xf32>
    %105 = arith.mulf %104, %62 : vector<4x256xf32>
    %106 = arith.addf %103, %105 : vector<4x256xf32>
    %cst_38 = arith.constant dense<0.000000e+00> : vector<256xf32>
    %107 = vector.multi_reduction <add>, %106, %cst_38 [0] : vector<4x256xf32> to vector<256xf32>
    %108 = vector.shape_cast %107 : vector<256xf32> to vector<1x256xf32>
    %109 = arith.negf %108 : vector<1x256xf32>
    %110 = math.exp %109 : vector<1x256xf32>
    %cst_39 = arith.constant 1.000000e+00 : f32
    %111 = vector.broadcast %cst_39 : f32 to vector<1x256xf32>
    %112 = arith.addf %111, %110 : vector<1x256xf32>
    %113 = arith.divf %111, %112 : vector<1x256xf32>
    %114 = vector.broadcast %113 : vector<1x256xf32> to vector<4x256xf32>
    %115 = arith.mulf %28, %114 : vector<4x256xf32>
    %c0_40 = arith.constant 0 : index
    %c0_41 = arith.constant 0 : index
    %c0_42 = arith.constant 0 : index
    %116 = vector.load %arg13[%c0_40, %c0_41, %c0_42] : memref<4x4x256xf32, #tpu.memory_space<vmem>>, vector<1x4x256xf32>
    %117 = vector.shape_cast %116 : vector<1x4x256xf32> to vector<4x256xf32>
    %118 = vector.shape_cast %115 : vector<4x256xf32> to vector<1x4x256xf32>
    tpu.vector_store %arg13[%c0_40, %c0_41, %c0_42], %118 {strides = array<i32>} : memref<4x4x256xf32, #tpu.memory_space<vmem>>, vector<1x4x256xf32>,
    %c1 = arith.constant 1 : index
    %c0_43 = arith.constant 0 : index
    %c0_44 = arith.constant 0 : index
    %119 = vector.load %arg1[%c1, %c0_43, %c0_44] : memref<4x4x256xf32, #tpu.memory_space<vmem>>, vector<1x4x256xf32>
    %120 = vector.shape_cast %119 : vector<1x4x256xf32> to vector<4x256xf32>
    %cst_45 = arith.constant dense<0.000000e+00> : vector<4x32xf32>
    %121 = tpu.matmul %120, %0, %cst_45 {dimension_numbers = #tpu.dot_dimension_numbers<[1], [0], [0], [1], [0, 0, 1, 1], [], []>} : vector<4x256xf32>, vector<256x32xf32>, vector<4x32xf32> -> vector<4x32xf32>
    %cst_46 = arith.constant dense<0.000000e+00> : vector<4x32xf32>
    %122 = tpu.matmul %12, %121, %cst_46 {dimension_numbers = #tpu.dot_dimension_numbers<[1], [0], [0], [1], [0, 0, 1, 1], [], []>} : vector<4x4xf32>, vector<4x32xf32>, vector<4x32xf32> -> vector<4x32xf32>
    %123 = arith.addf %122, %17 : vector<4x32xf32>
    %124 = arith.negf %123 : vector<4x32xf32>
    %125 = math.exp %124 : vector<4x32xf32>
    %cst_47 = arith.constant 1.000000e+00 : f32
    %126 = vector.broadcast %cst_47 : f32 to vector<4x32xf32>
    %127 = arith.addf %126, %125 : vector<4x32xf32>
    %128 = arith.divf %126, %127 : vector<4x32xf32>
    %129 = vector.extract_strided_slice %128 {offsets = [0, 0], sizes = [4, 16], strides = [1, 1]} : vector<4x32xf32> to vector<4x16xf32>
    %cst_48 = arith.constant dense<0.000000e+00> : vector<4x256xf32>
    %130 = tpu.matmul %129, %1, %cst_48 {dimension_numbers = #tpu.dot_dimension_numbers<[1], [0], [0], [1], [0, 0, 1, 1], [], []>} : vector<4x16xf32>, vector<16x256xf32>, vector<4x256xf32> -> vector<4x256xf32>
    %131 = vector.extract_strided_slice %128 {offsets = [0, 16], sizes = [4, 16], strides = [1, 1]} : vector<4x32xf32> to vector<4x16xf32>
    %cst_49 = arith.constant dense<0.000000e+00> : vector<4x256xf32>
    %132 = tpu.matmul %131, %2, %cst_49 {dimension_numbers = #tpu.dot_dimension_numbers<[1], [0], [0], [1], [0, 0, 1, 1], [], []>} : vector<4x16xf32>, vector<16x256xf32>, vector<4x256xf32> -> vector<4x256xf32>
    %133 = arith.mulf %130, %132 : vector<4x256xf32>
    %134 = arith.mulf %120, %133 : vector<4x256xf32>
    %cst_50 = arith.constant dense<0.000000e+00> : vector<4xf32>
    %135 = vector.multi_reduction <add>, %134, %cst_50 [1] : vector<4x256xf32> to vector<4xf32>
    %136 = vector.shape_cast %135 : vector<4xf32> to vector<4x1xf32>
    %cst_51 = arith.constant 2.560000e+02 : f32
    %137 = vector.broadcast %cst_51 : f32 to vector<4x1xf32>
    %138 = arith.divf %136, %137 : vector<4x1xf32>
    %139 = vector.broadcast %138 : vector<4x1xf32> to vector<4x256xf32>
    %140 = arith.subf %134, %139 : vector<4x256xf32>
    %141 = arith.mulf %140, %140 : vector<4x256xf32>
    %cst_52 = arith.constant dense<0.000000e+00> : vector<4xf32>
    %142 = vector.multi_reduction <add>, %141, %cst_52 [1] : vector<4x256xf32> to vector<4xf32>
    %143 = vector.shape_cast %142 : vector<4xf32> to vector<4x1xf32>
    %cst_53 = arith.constant 2.560000e+02 : f32
    %144 = vector.broadcast %cst_53 : f32 to vector<4x1xf32>
    %145 = arith.divf %143, %144 : vector<4x1xf32>
    %cst_54 = arith.constant 9.99999974E-6 : f32
    %146 = vector.broadcast %cst_54 : f32 to vector<4x1xf32>
    %147 = arith.addf %145, %146 : vector<4x1xf32>
    %148 = math.rsqrt %147 : vector<4x1xf32>
    %149 = arith.mulf %148, %14 : vector<4x1xf32>
    %150 = vector.broadcast %138 : vector<4x1xf32> to vector<4x256xf32>
    %151 = arith.subf %134, %150 : vector<4x256xf32>
    %152 = vector.broadcast %149 : vector<4x1xf32> to vector<4x256xf32>
    %153 = arith.mulf %151, %152 : vector<4x256xf32>
    %154 = arith.addf %153, %23 : vector<4x256xf32>
    %c17_i32_55 = arith.constant 17 : i32
    %155 = tpu.dynamic_rotate %120 by %c17_i32_55 dim 1 : vector<4x256xf32>, i32 -> vector<4x256xf32>
    %156 = vector.broadcast %4 : vector<1x256xf32> to vector<4x256xf32>
    %157 = arith.mulf %155, %156 : vector<4x256xf32>
    %c16_i32_56 = arith.constant 16 : i32
    %158 = tpu.dynamic_rotate %120 by %c16_i32_56 dim 1 : vector<4x256xf32>, i32 -> vector<4x256xf32>
    %159 = vector.broadcast %5 : vector<1x256xf32> to vector<4x256xf32>
    %160 = arith.mulf %158, %159 : vector<4x256xf32>
    %c15_i32_57 = arith.constant 15 : i32
    %161 = tpu.dynamic_rotate %120 by %c15_i32_57 dim 1 : vector<4x256xf32>, i32 -> vector<4x256xf32>
    %162 = vector.broadcast %6 : vector<1x256xf32> to vector<4x256xf32>
    %163 = arith.mulf %161, %162 : vector<4x256xf32>
    %c1_i32_58 = arith.constant 1 : i32
    %164 = tpu.dynamic_rotate %120 by %c1_i32_58 dim 1 : vector<4x256xf32>, i32 -> vector<4x256xf32>
    %165 = vector.broadcast %7 : vector<1x256xf32> to vector<4x256xf32>
    %166 = arith.mulf %164, %165 : vector<4x256xf32>
    %c255_i32_59 = arith.constant 255 : i32
    %167 = tpu.dynamic_rotate %120 by %c255_i32_59 dim 1 : vector<4x256xf32>, i32 -> vector<4x256xf32>
    %168 = vector.broadcast %8 : vector<1x256xf32> to vector<4x256xf32>
    %169 = arith.mulf %167, %168 : vector<4x256xf32>
    %c241_i32_60 = arith.constant 241 : i32
    %170 = tpu.dynamic_rotate %120 by %c241_i32_60 dim 1 : vector<4x256xf32>, i32 -> vector<4x256xf32>
    %171 = vector.broadcast %9 : vector<1x256xf32> to vector<4x256xf32>
    %172 = arith.mulf %170, %171 : vector<4x256xf32>
    %c240_i32_61 = arith.constant 240 : i32
    %173 = tpu.dynamic_rotate %120 by %c240_i32_61 dim 1 : vector<4x256xf32>, i32 -> vector<4x256xf32>
    %174 = vector.broadcast %10 : vector<1x256xf32> to vector<4x256xf32>
    %175 = arith.mulf %173, %174 : vector<4x256xf32>
    %c239_i32_62 = arith.constant 239 : i32
    %176 = tpu.dynamic_rotate %120 by %c239_i32_62 dim 1 : vector<4x256xf32>, i32 -> vector<4x256xf32>
    %177 = vector.broadcast %11 : vector<1x256xf32> to vector<4x256xf32>
    %178 = arith.mulf %176, %177 : vector<4x256xf32>
    %179 = tpu.concatenate %157, %160, %163, %166, %120, %169, %172, %175, %178 in 0 : vector<4x256xf32>, vector<4x256xf32>, vector<4x256xf32>, vector<4x256xf32>, vector<4x256xf32>, vector<4x256xf32>, vector<4x256xf32>, vector<4x256xf32>, vector<4x256xf32> -> vector<36x256xf32>
    %cst_63 = arith.constant dense<0.000000e+00> : vector<4x256xf32>
    %180 = tpu.matmul %13, %179, %cst_63 {dimension_numbers = #tpu.dot_dimension_numbers<[1], [0], [0], [1], [0, 0, 1, 1], [], []>} : vector<4x36xf32>, vector<36x256xf32>, vector<4x256xf32> -> vector<4x256xf32>
    %181 = arith.addf %180, %20 : vector<4x256xf32>
    %cst_64 = arith.constant dense<0.000000e+00> : vector<4xf32>
    %182 = vector.multi_reduction <add>, %181, %cst_64 [1] : vector<4x256xf32> to vector<4xf32>
    %183 = vector.shape_cast %182 : vector<4xf32> to vector<4x1xf32>
    %cst_65 = arith.constant 2.560000e+02 : f32
    %184 = vector.broadcast %cst_65 : f32 to vector<4x1xf32>
    %185 = arith.divf %183, %184 : vector<4x1xf32>
    %cst_66 = arith.constant dense<0xFF800000> : vector<1xf32>
    %186 = vector.multi_reduction <maximumf>, %185, %cst_66 [0] : vector<4x1xf32> to vector<1xf32>
    %187 = vector.shape_cast %186 : vector<1xf32> to vector<1x1xf32>
    %188 = vector.broadcast %187 : vector<1x1xf32> to vector<4x1xf32>
    %189 = arith.subf %185, %188 : vector<4x1xf32>
    %190 = math.exp %189 : vector<4x1xf32>
    %cst_67 = arith.constant dense<0.000000e+00> : vector<1xf32>
    %191 = vector.multi_reduction <add>, %190, %cst_67 [0] : vector<4x1xf32> to vector<1xf32>
    %192 = vector.shape_cast %191 : vector<1xf32> to vector<1x1xf32>
    %193 = vector.broadcast %192 : vector<1x1xf32> to vector<4x1xf32>
    %194 = arith.divf %190, %193 : vector<4x1xf32>
    %195 = arith.mulf %26, %181 : vector<4x256xf32>
    %196 = vector.broadcast %194 : vector<4x1xf32> to vector<4x256xf32>
    %197 = arith.mulf %196, %154 : vector<4x256xf32>
    %198 = arith.addf %195, %197 : vector<4x256xf32>
    %cst_68 = arith.constant dense<0.000000e+00> : vector<256xf32>
    %199 = vector.multi_reduction <add>, %198, %cst_68 [0] : vector<4x256xf32> to vector<256xf32>
    %200 = vector.shape_cast %199 : vector<256xf32> to vector<1x256xf32>
    %201 = arith.negf %200 : vector<1x256xf32>
    %202 = math.exp %201 : vector<1x256xf32>
    %cst_69 = arith.constant 1.000000e+00 : f32
    %203 = vector.broadcast %cst_69 : f32 to vector<1x256xf32>
    %204 = arith.addf %203, %202 : vector<1x256xf32>
    %205 = arith.divf %203, %204 : vector<1x256xf32>
    %206 = vector.broadcast %205 : vector<1x256xf32> to vector<4x256xf32>
    %207 = arith.mulf %120, %206 : vector<4x256xf32>
    %c1_70 = arith.constant 1 : index
    %c0_71 = arith.constant 0 : index
    %c0_72 = arith.constant 0 : index
    %208 = vector.load %arg13[%c1_70, %c0_71, %c0_72] : memref<4x4x256xf32, #tpu.memory_space<vmem>>, vector<1x4x256xf32>
    %209 = vector.shape_cast %208 : vector<1x4x256xf32> to vector<4x256xf32>
    %210 = vector.shape_cast %207 : vector<4x256xf32> to vector<1x4x256xf32>
    tpu.vector_store %arg13[%c1_70, %c0_71, %c0_72], %210 {strides = array<i32>} : memref<4x4x256xf32, #tpu.memory_space<vmem>>, vector<1x4x256xf32>,
    %c2 = arith.constant 2 : index
    %c0_73 = arith.constant 0 : index
    %c0_74 = arith.constant 0 : index
    %211 = vector.load %arg1[%c2, %c0_73, %c0_74] : memref<4x4x256xf32, #tpu.memory_space<vmem>>, vector<1x4x256xf32>
    %212 = vector.shape_cast %211 : vector<1x4x256xf32> to vector<4x256xf32>
    %cst_75 = arith.constant dense<0.000000e+00> : vector<4x32xf32>
    %213 = tpu.matmul %212, %0, %cst_75 {dimension_numbers = #tpu.dot_dimension_numbers<[1], [0], [0], [1], [0, 0, 1, 1], [], []>} : vector<4x256xf32>, vector<256x32xf32>, vector<4x32xf32> -> vector<4x32xf32>
    %cst_76 = arith.constant dense<0.000000e+00> : vector<4x32xf32>
    %214 = tpu.matmul %12, %213, %cst_76 {dimension_numbers = #tpu.dot_dimension_numbers<[1], [0], [0], [1], [0, 0, 1, 1], [], []>} : vector<4x4xf32>, vector<4x32xf32>, vector<4x32xf32> -> vector<4x32xf32>
    %215 = arith.addf %214, %17 : vector<4x32xf32>
    %216 = arith.negf %215 : vector<4x32xf32>
    %217 = math.exp %216 : vector<4x32xf32>
    %cst_77 = arith.constant 1.000000e+00 : f32
    %218 = vector.broadcast %cst_77 : f32 to vector<4x32xf32>
    %219 = arith.addf %218, %217 : vector<4x32xf32>
    %220 = arith.divf %218, %219 : vector<4x32xf32>
    %221 = vector.extract_strided_slice %220 {offsets = [0, 0], sizes = [4, 16], strides = [1, 1]} : vector<4x32xf32> to vector<4x16xf32>
    %cst_78 = arith.constant dense<0.000000e+00> : vector<4x256xf32>
    %222 = tpu.matmul %221, %1, %cst_78 {dimension_numbers = #tpu.dot_dimension_numbers<[1], [0], [0], [1], [0, 0, 1, 1], [], []>} : vector<4x16xf32>, vector<16x256xf32>, vector<4x256xf32> -> vector<4x256xf32>
    %223 = vector.extract_strided_slice %220 {offsets = [0, 16], sizes = [4, 16], strides = [1, 1]} : vector<4x32xf32> to vector<4x16xf32>
    %cst_79 = arith.constant dense<0.000000e+00> : vector<4x256xf32>
    %224 = tpu.matmul %223, %2, %cst_79 {dimension_numbers = #tpu.dot_dimension_numbers<[1], [0], [0], [1], [0, 0, 1, 1], [], []>} : vector<4x16xf32>, vector<16x256xf32>, vector<4x256xf32> -> vector<4x256xf32>
    %225 = arith.mulf %222, %224 : vector<4x256xf32>
    %226 = arith.mulf %212, %225 : vector<4x256xf32>
    %cst_80 = arith.constant dense<0.000000e+00> : vector<4xf32>
    %227 = vector.multi_reduction <add>, %226, %cst_80 [1] : vector<4x256xf32> to vector<4xf32>
    %228 = vector.shape_cast %227 : vector<4xf32> to vector<4x1xf32>
    %cst_81 = arith.constant 2.560000e+02 : f32
    %229 = vector.broadcast %cst_81 : f32 to vector<4x1xf32>
    %230 = arith.divf %228, %229 : vector<4x1xf32>
    %231 = vector.broadcast %230 : vector<4x1xf32> to vector<4x256xf32>
    %232 = arith.subf %226, %231 : vector<4x256xf32>
    %233 = arith.mulf %232, %232 : vector<4x256xf32>
    %cst_82 = arith.constant dense<0.000000e+00> : vector<4xf32>
    %234 = vector.multi_reduction <add>, %233, %cst_82 [1] : vector<4x256xf32> to vector<4xf32>
    %235 = vector.shape_cast %234 : vector<4xf32> to vector<4x1xf32>
    %cst_83 = arith.constant 2.560000e+02 : f32
    %236 = vector.broadcast %cst_83 : f32 to vector<4x1xf32>
    %237 = arith.divf %235, %236 : vector<4x1xf32>
    %cst_84 = arith.constant 9.99999974E-6 : f32
    %238 = vector.broadcast %cst_84 : f32 to vector<4x1xf32>
    %239 = arith.addf %237, %238 : vector<4x1xf32>
    %240 = math.rsqrt %239 : vector<4x1xf32>
    %241 = arith.mulf %240, %14 : vector<4x1xf32>
    %242 = vector.broadcast %230 : vector<4x1xf32> to vector<4x256xf32>
    %243 = arith.subf %226, %242 : vector<4x256xf32>
    %244 = vector.broadcast %241 : vector<4x1xf32> to vector<4x256xf32>
    %245 = arith.mulf %243, %244 : vector<4x256xf32>
    %246 = arith.addf %245, %23 : vector<4x256xf32>
    %c17_i32_85 = arith.constant 17 : i32
    %247 = tpu.dynamic_rotate %212 by %c17_i32_85 dim 1 : vector<4x256xf32>, i32 -> vector<4x256xf32>
    %248 = vector.broadcast %4 : vector<1x256xf32> to vector<4x256xf32>
    %249 = arith.mulf %247, %248 : vector<4x256xf32>
    %c16_i32_86 = arith.constant 16 : i32
    %250 = tpu.dynamic_rotate %212 by %c16_i32_86 dim 1 : vector<4x256xf32>, i32 -> vector<4x256xf32>
    %251 = vector.broadcast %5 : vector<1x256xf32> to vector<4x256xf32>
    %252 = arith.mulf %250, %251 : vector<4x256xf32>
    %c15_i32_87 = arith.constant 15 : i32
    %253 = tpu.dynamic_rotate %212 by %c15_i32_87 dim 1 : vector<4x256xf32>, i32 -> vector<4x256xf32>
    %254 = vector.broadcast %6 : vector<1x256xf32> to vector<4x256xf32>
    %255 = arith.mulf %253, %254 : vector<4x256xf32>
    %c1_i32_88 = arith.constant 1 : i32
    %256 = tpu.dynamic_rotate %212 by %c1_i32_88 dim 1 : vector<4x256xf32>, i32 -> vector<4x256xf32>
    %257 = vector.broadcast %7 : vector<1x256xf32> to vector<4x256xf32>
    %258 = arith.mulf %256, %257 : vector<4x256xf32>
    %c255_i32_89 = arith.constant 255 : i32
    %259 = tpu.dynamic_rotate %212 by %c255_i32_89 dim 1 : vector<4x256xf32>, i32 -> vector<4x256xf32>
    %260 = vector.broadcast %8 : vector<1x256xf32> to vector<4x256xf32>
    %261 = arith.mulf %259, %260 : vector<4x256xf32>
    %c241_i32_90 = arith.constant 241 : i32
    %262 = tpu.dynamic_rotate %212 by %c241_i32_90 dim 1 : vector<4x256xf32>, i32 -> vector<4x256xf32>
    %263 = vector.broadcast %9 : vector<1x256xf32> to vector<4x256xf32>
    %264 = arith.mulf %262, %263 : vector<4x256xf32>
    %c240_i32_91 = arith.constant 240 : i32
    %265 = tpu.dynamic_rotate %212 by %c240_i32_91 dim 1 : vector<4x256xf32>, i32 -> vector<4x256xf32>
    %266 = vector.broadcast %10 : vector<1x256xf32> to vector<4x256xf32>
    %267 = arith.mulf %265, %266 : vector<4x256xf32>
    %c239_i32_92 = arith.constant 239 : i32
    %268 = tpu.dynamic_rotate %212 by %c239_i32_92 dim 1 : vector<4x256xf32>, i32 -> vector<4x256xf32>
    %269 = vector.broadcast %11 : vector<1x256xf32> to vector<4x256xf32>
    %270 = arith.mulf %268, %269 : vector<4x256xf32>
    %271 = tpu.concatenate %249, %252, %255, %258, %212, %261, %264, %267, %270 in 0 : vector<4x256xf32>, vector<4x256xf32>, vector<4x256xf32>, vector<4x256xf32>, vector<4x256xf32>, vector<4x256xf32>, vector<4x256xf32>, vector<4x256xf32>, vector<4x256xf32> -> vector<36x256xf32>
    %cst_93 = arith.constant dense<0.000000e+00> : vector<4x256xf32>
    %272 = tpu.matmul %13, %271, %cst_93 {dimension_numbers = #tpu.dot_dimension_numbers<[1], [0], [0], [1], [0, 0, 1, 1], [], []>} : vector<4x36xf32>, vector<36x256xf32>, vector<4x256xf32> -> vector<4x256xf32>
    %273 = arith.addf %272, %20 : vector<4x256xf32>
    %cst_94 = arith.constant dense<0.000000e+00> : vector<4xf32>
    %274 = vector.multi_reduction <add>, %273, %cst_94 [1] : vector<4x256xf32> to vector<4xf32>
    %275 = vector.shape_cast %274 : vector<4xf32> to vector<4x1xf32>
    %cst_95 = arith.constant 2.560000e+02 : f32
    %276 = vector.broadcast %cst_95 : f32 to vector<4x1xf32>
    %277 = arith.divf %275, %276 : vector<4x1xf32>
    %cst_96 = arith.constant dense<0xFF800000> : vector<1xf32>
    %278 = vector.multi_reduction <maximumf>, %277, %cst_96 [0] : vector<4x1xf32> to vector<1xf32>
    %279 = vector.shape_cast %278 : vector<1xf32> to vector<1x1xf32>
    %280 = vector.broadcast %279 : vector<1x1xf32> to vector<4x1xf32>
    %281 = arith.subf %277, %280 : vector<4x1xf32>
    %282 = math.exp %281 : vector<4x1xf32>
    %cst_97 = arith.constant dense<0.000000e+00> : vector<1xf32>
    %283 = vector.multi_reduction <add>, %282, %cst_97 [0] : vector<4x1xf32> to vector<1xf32>
    %284 = vector.shape_cast %283 : vector<1xf32> to vector<1x1xf32>
    %285 = vector.broadcast %284 : vector<1x1xf32> to vector<4x1xf32>
    %286 = arith.divf %282, %285 : vector<4x1xf32>
    %287 = arith.mulf %26, %273 : vector<4x256xf32>
    %288 = vector.broadcast %286 : vector<4x1xf32> to vector<4x256xf32>
    %289 = arith.mulf %288, %246 : vector<4x256xf32>
    %290 = arith.addf %287, %289 : vector<4x256xf32>
    %cst_98 = arith.constant dense<0.000000e+00> : vector<256xf32>
    %291 = vector.multi_reduction <add>, %290, %cst_98 [0] : vector<4x256xf32> to vector<256xf32>
    %292 = vector.shape_cast %291 : vector<256xf32> to vector<1x256xf32>
    %293 = arith.negf %292 : vector<1x256xf32>
    %294 = math.exp %293 : vector<1x256xf32>
    %cst_99 = arith.constant 1.000000e+00 : f32
    %295 = vector.broadcast %cst_99 : f32 to vector<1x256xf32>
    %296 = arith.addf %295, %294 : vector<1x256xf32>
    %297 = arith.divf %295, %296 : vector<1x256xf32>
    %298 = vector.broadcast %297 : vector<1x256xf32> to vector<4x256xf32>
    %299 = arith.mulf %212, %298 : vector<4x256xf32>
    %c2_100 = arith.constant 2 : index
    %c0_101 = arith.constant 0 : index
    %c0_102 = arith.constant 0 : index
    %300 = vector.load %arg13[%c2_100, %c0_101, %c0_102] : memref<4x4x256xf32, #tpu.memory_space<vmem>>, vector<1x4x256xf32>
    %301 = vector.shape_cast %300 : vector<1x4x256xf32> to vector<4x256xf32>
    %302 = vector.shape_cast %299 : vector<4x256xf32> to vector<1x4x256xf32>
    tpu.vector_store %arg13[%c2_100, %c0_101, %c0_102], %302 {strides = array<i32>} : memref<4x4x256xf32, #tpu.memory_space<vmem>>, vector<1x4x256xf32>,
    %c3 = arith.constant 3 : index
    %c0_103 = arith.constant 0 : index
    %c0_104 = arith.constant 0 : index
    %303 = vector.load %arg1[%c3, %c0_103, %c0_104] : memref<4x4x256xf32, #tpu.memory_space<vmem>>, vector<1x4x256xf32>
    %304 = vector.shape_cast %303 : vector<1x4x256xf32> to vector<4x256xf32>
    %cst_105 = arith.constant dense<0.000000e+00> : vector<4x32xf32>
    %305 = tpu.matmul %304, %0, %cst_105 {dimension_numbers = #tpu.dot_dimension_numbers<[1], [0], [0], [1], [0, 0, 1, 1], [], []>} : vector<4x256xf32>, vector<256x32xf32>, vector<4x32xf32> -> vector<4x32xf32>
    %cst_106 = arith.constant dense<0.000000e+00> : vector<4x32xf32>
    %306 = tpu.matmul %12, %305, %cst_106 {dimension_numbers = #tpu.dot_dimension_numbers<[1], [0], [0], [1], [0, 0, 1, 1], [], []>} : vector<4x4xf32>, vector<4x32xf32>, vector<4x32xf32> -> vector<4x32xf32>
    %307 = arith.addf %306, %17 : vector<4x32xf32>
    %308 = arith.negf %307 : vector<4x32xf32>
    %309 = math.exp %308 : vector<4x32xf32>
    %cst_107 = arith.constant 1.000000e+00 : f32
    %310 = vector.broadcast %cst_107 : f32 to vector<4x32xf32>
    %311 = arith.addf %310, %309 : vector<4x32xf32>
    %312 = arith.divf %310, %311 : vector<4x32xf32>
    %313 = vector.extract_strided_slice %312 {offsets = [0, 0], sizes = [4, 16], strides = [1, 1]} : vector<4x32xf32> to vector<4x16xf32>
    %cst_108 = arith.constant dense<0.000000e+00> : vector<4x256xf32>
    %314 = tpu.matmul %313, %1, %cst_108 {dimension_numbers = #tpu.dot_dimension_numbers<[1], [0], [0], [1], [0, 0, 1, 1], [], []>} : vector<4x16xf32>, vector<16x256xf32>, vector<4x256xf32> -> vector<4x256xf32>
    %315 = vector.extract_strided_slice %312 {offsets = [0, 16], sizes = [4, 16], strides = [1, 1]} : vector<4x32xf32> to vector<4x16xf32>
    %cst_109 = arith.constant dense<0.000000e+00> : vector<4x256xf32>
    %316 = tpu.matmul %315, %2, %cst_109 {dimension_numbers = #tpu.dot_dimension_numbers<[1], [0], [0], [1], [0, 0, 1, 1], [], []>} : vector<4x16xf32>, vector<16x256xf32>, vector<4x256xf32> -> vector<4x256xf32>
    %317 = arith.mulf %314, %316 : vector<4x256xf32>
    %318 = arith.mulf %304, %317 : vector<4x256xf32>
    %cst_110 = arith.constant dense<0.000000e+00> : vector<4xf32>
    %319 = vector.multi_reduction <add>, %318, %cst_110 [1] : vector<4x256xf32> to vector<4xf32>
    %320 = vector.shape_cast %319 : vector<4xf32> to vector<4x1xf32>
    %cst_111 = arith.constant 2.560000e+02 : f32
    %321 = vector.broadcast %cst_111 : f32 to vector<4x1xf32>
    %322 = arith.divf %320, %321 : vector<4x1xf32>
    %323 = vector.broadcast %322 : vector<4x1xf32> to vector<4x256xf32>
    %324 = arith.subf %318, %323 : vector<4x256xf32>
    %325 = arith.mulf %324, %324 : vector<4x256xf32>
    %cst_112 = arith.constant dense<0.000000e+00> : vector<4xf32>
    %326 = vector.multi_reduction <add>, %325, %cst_112 [1] : vector<4x256xf32> to vector<4xf32>
    %327 = vector.shape_cast %326 : vector<4xf32> to vector<4x1xf32>
    %cst_113 = arith.constant 2.560000e+02 : f32
    %328 = vector.broadcast %cst_113 : f32 to vector<4x1xf32>
    %329 = arith.divf %327, %328 : vector<4x1xf32>
    %cst_114 = arith.constant 9.99999974E-6 : f32
    %330 = vector.broadcast %cst_114 : f32 to vector<4x1xf32>
    %331 = arith.addf %329, %330 : vector<4x1xf32>
    %332 = math.rsqrt %331 : vector<4x1xf32>
    %333 = arith.mulf %332, %14 : vector<4x1xf32>
    %334 = vector.broadcast %322 : vector<4x1xf32> to vector<4x256xf32>
    %335 = arith.subf %318, %334 : vector<4x256xf32>
    %336 = vector.broadcast %333 : vector<4x1xf32> to vector<4x256xf32>
    %337 = arith.mulf %335, %336 : vector<4x256xf32>
    %338 = arith.addf %337, %23 : vector<4x256xf32>
    %c17_i32_115 = arith.constant 17 : i32
    %339 = tpu.dynamic_rotate %304 by %c17_i32_115 dim 1 : vector<4x256xf32>, i32 -> vector<4x256xf32>
    %340 = vector.broadcast %4 : vector<1x256xf32> to vector<4x256xf32>
    %341 = arith.mulf %339, %340 : vector<4x256xf32>
    %c16_i32_116 = arith.constant 16 : i32
    %342 = tpu.dynamic_rotate %304 by %c16_i32_116 dim 1 : vector<4x256xf32>, i32 -> vector<4x256xf32>
    %343 = vector.broadcast %5 : vector<1x256xf32> to vector<4x256xf32>
    %344 = arith.mulf %342, %343 : vector<4x256xf32>
    %c15_i32_117 = arith.constant 15 : i32
    %345 = tpu.dynamic_rotate %304 by %c15_i32_117 dim 1 : vector<4x256xf32>, i32 -> vector<4x256xf32>
    %346 = vector.broadcast %6 : vector<1x256xf32> to vector<4x256xf32>
    %347 = arith.mulf %345, %346 : vector<4x256xf32>
    %c1_i32_118 = arith.constant 1 : i32
    %348 = tpu.dynamic_rotate %304 by %c1_i32_118 dim 1 : vector<4x256xf32>, i32 -> vector<4x256xf32>
    %349 = vector.broadcast %7 : vector<1x256xf32> to vector<4x256xf32>
    %350 = arith.mulf %348, %349 : vector<4x256xf32>
    %c255_i32_119 = arith.constant 255 : i32
    %351 = tpu.dynamic_rotate %304 by %c255_i32_119 dim 1 : vector<4x256xf32>, i32 -> vector<4x256xf32>
    %352 = vector.broadcast %8 : vector<1x256xf32> to vector<4x256xf32>
    %353 = arith.mulf %351, %352 : vector<4x256xf32>
    %c241_i32_120 = arith.constant 241 : i32
    %354 = tpu.dynamic_rotate %304 by %c241_i32_120 dim 1 : vector<4x256xf32>, i32 -> vector<4x256xf32>
    %355 = vector.broadcast %9 : vector<1x256xf32> to vector<4x256xf32>
    %356 = arith.mulf %354, %355 : vector<4x256xf32>
    %c240_i32_121 = arith.constant 240 : i32
    %357 = tpu.dynamic_rotate %304 by %c240_i32_121 dim 1 : vector<4x256xf32>, i32 -> vector<4x256xf32>
    %358 = vector.broadcast %10 : vector<1x256xf32> to vector<4x256xf32>
    %359 = arith.mulf %357, %358 : vector<4x256xf32>
    %c239_i32_122 = arith.constant 239 : i32
    %360 = tpu.dynamic_rotate %304 by %c239_i32_122 dim 1 : vector<4x256xf32>, i32 -> vector<4x256xf32>
    %361 = vector.broadcast %11 : vector<1x256xf32> to vector<4x256xf32>
    %362 = arith.mulf %360, %361 : vector<4x256xf32>
    %363 = tpu.concatenate %341, %344, %347, %350, %304, %353, %356, %359, %362 in 0 : vector<4x256xf32>, vector<4x256xf32>, vector<4x256xf32>, vector<4x256xf32>, vector<4x256xf32>, vector<4x256xf32>, vector<4x256xf32>, vector<4x256xf32>, vector<4x256xf32> -> vector<36x256xf32>
    %cst_123 = arith.constant dense<0.000000e+00> : vector<4x256xf32>
    %364 = tpu.matmul %13, %363, %cst_123 {dimension_numbers = #tpu.dot_dimension_numbers<[1], [0], [0], [1], [0, 0, 1, 1], [], []>} : vector<4x36xf32>, vector<36x256xf32>, vector<4x256xf32> -> vector<4x256xf32>
    %365 = arith.addf %364, %20 : vector<4x256xf32>
    %cst_124 = arith.constant dense<0.000000e+00> : vector<4xf32>
    %366 = vector.multi_reduction <add>, %365, %cst_124 [1] : vector<4x256xf32> to vector<4xf32>
    %367 = vector.shape_cast %366 : vector<4xf32> to vector<4x1xf32>
    %cst_125 = arith.constant 2.560000e+02 : f32
    %368 = vector.broadcast %cst_125 : f32 to vector<4x1xf32>
    %369 = arith.divf %367, %368 : vector<4x1xf32>
    %cst_126 = arith.constant dense<0xFF800000> : vector<1xf32>
    %370 = vector.multi_reduction <maximumf>, %369, %cst_126 [0] : vector<4x1xf32> to vector<1xf32>
    %371 = vector.shape_cast %370 : vector<1xf32> to vector<1x1xf32>
    %372 = vector.broadcast %371 : vector<1x1xf32> to vector<4x1xf32>
    %373 = arith.subf %369, %372 : vector<4x1xf32>
    %374 = math.exp %373 : vector<4x1xf32>
    %cst_127 = arith.constant dense<0.000000e+00> : vector<1xf32>
    %375 = vector.multi_reduction <add>, %374, %cst_127 [0] : vector<4x1xf32> to vector<1xf32>
    %376 = vector.shape_cast %375 : vector<1xf32> to vector<1x1xf32>
    %377 = vector.broadcast %376 : vector<1x1xf32> to vector<4x1xf32>
    %378 = arith.divf %374, %377 : vector<4x1xf32>
    %379 = arith.mulf %26, %365 : vector<4x256xf32>
    %380 = vector.broadcast %378 : vector<4x1xf32> to vector<4x256xf32>
    %381 = arith.mulf %380, %338 : vector<4x256xf32>
    %382 = arith.addf %379, %381 : vector<4x256xf32>
    %cst_128 = arith.constant dense<0.000000e+00> : vector<256xf32>
    %383 = vector.multi_reduction <add>, %382, %cst_128 [0] : vector<4x256xf32> to vector<256xf32>
    %384 = vector.shape_cast %383 : vector<256xf32> to vector<1x256xf32>
    %385 = arith.negf %384 : vector<1x256xf32>
    %386 = math.exp %385 : vector<1x256xf32>
    %cst_129 = arith.constant 1.000000e+00 : f32
    %387 = vector.broadcast %cst_129 : f32 to vector<1x256xf32>
    %388 = arith.addf %387, %386 : vector<1x256xf32>
    %389 = arith.divf %387, %388 : vector<1x256xf32>
    %390 = vector.broadcast %389 : vector<1x256xf32> to vector<4x256xf32>
    %391 = arith.mulf %304, %390 : vector<4x256xf32>
    %c3_130 = arith.constant 3 : index
    %c0_131 = arith.constant 0 : index
    %c0_132 = arith.constant 0 : index
    %392 = vector.load %arg13[%c3_130, %c0_131, %c0_132] : memref<4x4x256xf32, #tpu.memory_space<vmem>>, vector<1x4x256xf32>
    %393 = vector.shape_cast %392 : vector<1x4x256xf32> to vector<4x256xf32>
    %394 = vector.shape_cast %391 : vector<4x256xf32> to vector<1x4x256xf32>
    tpu.vector_store %arg13[%c3_130, %c0_131, %c0_132], %394 {strides = array<i32>} : memref<4x4x256xf32, #tpu.memory_space<vmem>>, vector<1x4x256xf32>,
    return
  }
  func.func @transform_0(%arg0: i32) -> (i32, i32, i32) {
    %c0_i32 = arith.constant 0 : i32
    %c0_i32_0 = arith.constant 0 : i32
    %c0_i32_1 = arith.constant 0 : i32
    return %arg0, %c0_i32, %c0_i32_0 : i32, i32, i32
  }
  func.func @transform_1(%arg0: i32) -> (i32, i32) {
    %c0_i32 = arith.constant 0 : i32
    %c0_i32_0 = arith.constant 0 : i32
    %c0_i32_1 = arith.constant 0 : i32
    return %c0_i32, %c0_i32_0 : i32, i32
  }
  func.func @transform_2(%arg0: i32) -> (i32, i32) {
    %c0_i32 = arith.constant 0 : i32
    %c0_i32_0 = arith.constant 0 : i32
    %c0_i32_1 = arith.constant 0 : i32
    return %c0_i32, %c0_i32_0 : i32, i32
  }
  func.func @transform_3(%arg0: i32) -> (i32, i32) {
    %c0_i32 = arith.constant 0 : i32
    %c0_i32_0 = arith.constant 0 : i32
    %c0_i32_1 = arith.constant 0 : i32
    return %c0_i32, %c0_i32_0 : i32, i32
  }
  func.func @transform_4(%arg0: i32) -> (i32, i32) {
    %c0_i32 = arith.constant 0 : i32
    %c0_i32_0 = arith.constant 0 : i32
    %c0_i32_1 = arith.constant 0 : i32
    return %c0_i32, %c0_i32_0 : i32, i32
  }
  func.func @transform_5(%arg0: i32) -> (i32, i32) {
    %c0_i32 = arith.constant 0 : i32
    %c0_i32_0 = arith.constant 0 : i32
    %c0_i32_1 = arith.constant 0 : i32
    return %c0_i32, %c0_i32_0 : i32, i32
  }
  func.func @transform_6(%arg0: i32) -> (i32, i32) {
    %c0_i32 = arith.constant 0 : i32
    %c0_i32_0 = arith.constant 0 : i32
    %c0_i32_1 = arith.constant 0 : i32
    return %c0_i32, %c0_i32_0 : i32, i32
  }
  func.func @transform_7(%arg0: i32) -> (i32, i32) {
    %c0_i32 = arith.constant 0 : i32
    %c0_i32_0 = arith.constant 0 : i32
    %c0_i32_1 = arith.constant 0 : i32
    return %c0_i32, %c0_i32_0 : i32, i32
  }
  func.func @transform_8(%arg0: i32) -> (i32, i32) {
    %c0_i32 = arith.constant 0 : i32
    %c0_i32_0 = arith.constant 0 : i32
    %c0_i32_1 = arith.constant 0 : i32
    return %c0_i32, %c0_i32_0 : i32, i32
  }
  func.func @transform_9(%arg0: i32) -> (i32, i32) {
    %c0_i32 = arith.constant 0 : i32
    %c0_i32_0 = arith.constant 0 : i32
    %c0_i32_1 = arith.constant 0 : i32
    return %c0_i32, %c0_i32_0 : i32, i32
  }
  func.func @transform_10(%arg0: i32) -> (i32, i32) {
    %c0_i32 = arith.constant 0 : i32
    %c0_i32_0 = arith.constant 0 : i32
    %c0_i32_1 = arith.constant 0 : i32
    return %c0_i32, %c0_i32_0 : i32, i32
  }
  func.func @transform_11(%arg0: i32) -> (i32, i32) {
    %c0_i32 = arith.constant 0 : i32
    %c0_i32_0 = arith.constant 0 : i32
    %c0_i32_1 = arith.constant 0 : i32
    return %c0_i32, %c0_i32_0 : i32, i32
  }
  func.func @transform_12(%arg0: i32) -> (i32, i32, i32) {
    %c0_i32 = arith.constant 0 : i32
    %c0_i32_0 = arith.constant 0 : i32
    %c0_i32_1 = arith.constant 0 : i32
    return %arg0, %c0_i32, %c0_i32_0 : i32, i32, i32
  }
}

</mosaic_0001>

<llo_original>
// kernel: tpu_custom_call.1
$region0: #{tpu_custom_call.1}
  #allocation0 [shape = 'u32[]', space=smem, size = 0x4, offset = 0x4, fixed_abs, tag = 'smem constant byte address 0x4 - core index']
  #allocation1 [shape = 'u32[144,128]{1,0:T(1,128)}', space=vmem, size = 0x12000, scoped, tag = 'internal scratch']
  %s0 = inlined_call_operand.vmem [shape: f32[8,4,256], index: 0, kind: input, shape index: {}]
  %s1 = inlined_call_operand.vmem [shape: f32[256,32], index: 1, kind: input, shape index: {}]
  %s2 = inlined_call_operand.vmem [shape: f32[16,256], index: 2, kind: input, shape index: {}]
  %s3 = inlined_call_operand.vmem [shape: f32[16,256], index: 3, kind: input, shape index: {}]
  %s4 = inlined_call_operand.vmem [shape: f32[9,256], index: 4, kind: input, shape index: {}]
  %s5 = inlined_call_operand.vmem [shape: f32[4,4], index: 5, kind: input, shape index: {}]
  %s6 = inlined_call_operand.vmem [shape: f32[4,1], index: 6, kind: input, shape index: {}]
  %s7 = inlined_call_operand.vmem [shape: f32[4,36], index: 7, kind: input, shape index: {}]
  %s8 = inlined_call_operand.vmem [shape: f32[4,1], index: 8, kind: input, shape index: {}]
  %s9 = inlined_call_operand.vmem [shape: f32[4,1], index: 9, kind: input, shape index: {}]
  %s10 = inlined_call_operand.vmem [shape: f32[4,1], index: 10, kind: input, shape index: {}]
  %s11 = inlined_call_operand.vmem [shape: f32[4,1], index: 11, kind: input, shape index: {}]
  %s12 = inlined_call_operand.hbm [shape: f32[8,4,256], index: 12, kind: output, shape index: {}]
  %s13 = sld [smem:[#allocation0]]
  $region81: #{tpu_custom_call.1} parent=0
    _
  %s15 = ssub.s32 1, %s13
  %s16 = scalar_select 0, %s15, %s13
  $region1: #{tpu_custom_call.1} parent=0
    #allocation2 [shape = 'u8[32768]{0}', space=vmem, size = 0x8000, scoped, tag = 'output window, operand 0']
    #allocation3 [shape = 's32[2]{0}', space=sflag, size = 0x8, scoped, tag = 'scoped memory for tpu_custom_call.1']
    %17 = vsyncpa [#allocation3], 0
    %s18 = scalar_lea.sflag [#allocation3], 1
    %19 = vsyncpa %s18, 0
    loop: start=0, step=1, limit=4
    $region2: #{tpu_custom_call.1} parent=1 // loop_pre_header
      _
    $region3: #{tpu_custom_call.1} parent=1 // loop_header
      %s21 = sphi 0, %s25
      %p22 = scmp.ge.s32.totalorder %s21, 4
      %s31 = sphi 0, %s33
      %s34 = sphi 0, %s31
      %s35 = sphi 0, %s34
      %s51 = sphi 0, %s35
      %s55 = sphi 0, %s55
      %s57 = sphi 0, %s55
      %s58 = sphi 0, %s57
      %s72 = sphi 0, %s58
      %s76 = sphi 0, %s76
      %s78 = sphi 0, %s76
      %s79 = sphi 0, %s78
      %s93 = sphi 0, %s79
      %s97 = sphi 0, %s97
      %s99 = sphi 0, %s97
      %s100 = sphi 0, %s99
      %s114 = sphi 0, %s100
      %s118 = sphi 0, %s118
      %s120 = sphi 0, %s118
      %s121 = sphi 0, %s120
      %s135 = sphi 0, %s121
      %s139 = sphi 0, %s139
      %s141 = sphi 0, %s139
      %s142 = sphi 0, %s141
      %s156 = sphi 0, %s142
      %s160 = sphi 0, %s160
      %s162 = sphi 0, %s160
      %s163 = sphi 0, %s162
      %s177 = sphi 0, %s163
      %s181 = sphi 0, %s181
      %s183 = sphi 0, %s181
      %s184 = sphi 0, %s183
      %s198 = sphi 0, %s184
      %s202 = sphi 0, %s202
      %s204 = sphi 0, %s202
      %s205 = sphi 0, %s204
      %s219 = sphi 0, %s205
      %s223 = sphi 0, %s223
      %s225 = sphi 0, %s223
      %s226 = sphi 0, %s225
      %s240 = sphi 0, %s226
      %s244 = sphi 0, %s244
      %s246 = sphi 0, %s244
      %s247 = sphi 0, %s246
      %s261 = sphi 0, %s247
      %s265 = sphi 0, %s265
      %s267 = sphi 0, %s265
      %s268 = sphi 0, %s267
      %s282 = sphi 0, %s268
      %s288 = sphi 0, %s290
      %s291 = sphi 0, %s288
      %s292 = sphi 0, %s291
      %s308 = sphi 0, %s292
    $region4: #{tpu_custom_call.1} parent=1 // loop_header_branch
      %24 = sbr.rel (%p22) target = $region8
    $region5: #{tpu_custom_call.1} parent=1 // loop_body
      %s26 = ssub.s32 %s21, 1
      %s27 = ssub.s32 %s21, 2
      %s28 = sadd.s32 %s21, 1
      %s29 = ssub.s32 %s21, %s28
      %p30 = scmp.eq.s32.totalorder %s29, 0
      %s32 = sadd.s32 %s31, 1
      %s33 = scalar_select %p30, %s31, %s32
      %p36 = pneg %p30
      %p37 = scmp.eq.s32.totalorder %s21, 1
      %p38 = por %p36, %p37
      %p39 = scmp.ne.s32.totalorder %s31, %s34
      %p40 = scmp.eq.s32.totalorder %s21, 0
      %p41 = por %p39, %p40
      %p42 = scmp.ne.s32.totalorder %s31, %s34
      %p43 = scmp.eq.s32.totalorder %s26, 1
      %p44 = por %p42, %p43
      %p45 = scmp.ne.s32.totalorder %s34, %s35
      %p46 = scmp.eq.s32.totalorder %s26, 0
      %p47 = por %p45, %p46
      %p48 = scmp.ne.s32.totalorder %s34, %s35
      %p49 = scmp.eq.s32.totalorder %s27, 1
      %p50 = por %p48, %p49
      %p52 = scmp.ne.s32.totalorder %s35, %s51
      %p53 = scmp.eq.s32.totalorder %s27, 0
      %p54 = por %p52, %p53
      %s56 = sadd.s32 %s55, 1
      %p59 = scmp.eq.s32.totalorder %s21, 1
      %p60 = scmp.ne.s32.totalorder %s55, %s57
      %p61 = scmp.eq.s32.totalorder %s21, 0
      %p62 = por %p60, %p61
      %p63 = scmp.ne.s32.totalorder %s55, %s57
      %p64 = scmp.eq.s32.totalorder %s26, 1
      %p65 = por %p63, %p64
      %p66 = scmp.ne.s32.totalorder %s57, %s58
      %p67 = scmp.eq.s32.totalorder %s26, 0
      %p68 = por %p66, %p67
      %p69 = scmp.ne.s32.totalorder %s57, %s58
      %p70 = scmp.eq.s32.totalorder %s27, 1
      %p71 = por %p69, %p70
      %p73 = scmp.ne.s32.totalorder %s58, %s72
      %p74 = scmp.eq.s32.totalorder %s27, 0
      %p75 = por %p73, %p74
      %s77 = sadd.s32 %s76, 1
      %p80 = scmp.eq.s32.totalorder %s21, 1
      %p81 = scmp.ne.s32.totalorder %s76, %s78
      %p82 = scmp.eq.s32.totalorder %s21, 0
      %p83 = por %p81, %p82
      %p84 = scmp.ne.s32.totalorder %s76, %s78
      %p85 = scmp.eq.s32.totalorder %s26, 1
      %p86 = por %p84, %p85
      %p87 = scmp.ne.s32.totalorder %s78, %s79
      %p88 = scmp.eq.s32.totalorder %s26, 0
      %p89 = por %p87, %p88
      %p90 = scmp.ne.s32.totalorder %s78, %s79
      %p91 = scmp.eq.s32.totalorder %s27, 1
      %p92 = por %p90, %p91
      %p94 = scmp.ne.s32.totalorder %s79, %s93
      %p95 = scmp.eq.s32.totalorder %s27, 0
      %p96 = por %p94, %p95
      %s98 = sadd.s32 %s97, 1
      %p101 = scmp.eq.s32.totalorder %s21, 1
      %p102 = scmp.ne.s32.totalorder %s97, %s99
      %p103 = scmp.eq.s32.totalorder %s21, 0
      %p104 = por %p102, %p103
      %p105 = scmp.ne.s32.totalorder %s97, %s99
      %p106 = scmp.eq.s32.totalorder %s26, 1
      %p107 = por %p105, %p106
      %p108 = scmp.ne.s32.totalorder %s99, %s100
      %p109 = scmp.eq.s32.totalorder %s26, 0
      %p110 = por %p108, %p109
      %p111 = scmp.ne.s32.totalorder %s99, %s100
      %p112 = scmp.eq.s32.totalorder %s27, 1
      %p113 = por %p111, %p112
      %p115 = scmp.ne.s32.totalorder %s100, %s114
      %p116 = scmp.eq.s32.totalorder %s27, 0
      %p117 = por %p115, %p116
      %s119 = sadd.s32 %s118, 1
      %p122 = scmp.eq.s32.totalorder %s21, 1
      %p123 = scmp.ne.s32.totalorder %s118, %s120
      %p124 = scmp.eq.s32.totalorder %s21, 0
      %p125 = por %p123, %p124
      %p126 = scmp.ne.s32.totalorder %s118, %s120
      %p127 = scmp.eq.s32.totalorder %s26, 1
      %p128 = por %p126, %p127
      %p129 = scmp.ne.s32.totalorder %s120, %s121
      %p130 = scmp.eq.s32.totalorder %s26, 0
      %p131 = por %p129, %p130
      %p132 = scmp.ne.s32.totalorder %s120, %s121
      %p133 = scmp.eq.s32.totalorder %s27, 1
      %p134 = por %p132, %p133
      %p136 = scmp.ne.s32.totalorder %s121, %s135
      %p137 = scmp.eq.s32.totalorder %s27, 0
      %p138 = por %p136, %p137
      %s140 = sadd.s32 %s139, 1
      %p143 = scmp.eq.s32.totalorder %s21, 1
      %p144 = scmp.ne.s32.totalorder %s139, %s141
      %p145 = scmp.eq.s32.totalorder %s21, 0
      %p146 = por %p144, %p145
      %p147 = scmp.ne.s32.totalorder %s139, %s141
      %p148 = scmp.eq.s32.totalorder %s26, 1
      %p149 = por %p147, %p148
      %p150 = scmp.ne.s32.totalorder %s141, %s142
      %p151 = scmp.eq.s32.totalorder %s26, 0
      %p152 = por %p150, %p151
      %p153 = scmp.ne.s32.totalorder %s141, %s142
      %p154 = scmp.eq.s32.totalorder %s27, 1
      %p155 = por %p153, %p154
      %p157 = scmp.ne.s32.totalorder %s142, %s156
      %p158 = scmp.eq.s32.totalorder %s27, 0
      %p159 = por %p157, %p158
      %s161 = sadd.s32 %s160, 1
      %p164 = scmp.eq.s32.totalorder %s21, 1
      %p165 = scmp.ne.s32.totalorder %s160, %s162
      %p166 = scmp.eq.s32.totalorder %s21, 0
      %p167 = por %p165, %p166
      %p168 = scmp.ne.s32.totalorder %s160, %s162
      %p169 = scmp.eq.s32.totalorder %s26, 1
      %p170 = por %p168, %p169
      %p171 = scmp.ne.s32.totalorder %s162, %s163
      %p172 = scmp.eq.s32.totalorder %s26, 0
      %p173 = por %p171, %p172
      %p174 = scmp.ne.s32.totalorder %s162, %s163
      %p175 = scmp.eq.s32.totalorder %s27, 1
      %p176 = por %p174, %p175
      %p178 = scmp.ne.s32.totalorder %s163, %s177
      %p179 = scmp.eq.s32.totalorder %s27, 0
      %p180 = por %p178, %p179
      %s182 = sadd.s32 %s181, 1
      %p185 = scmp.eq.s32.totalorder %s21, 1
      %p186 = scmp.ne.s32.totalorder %s181, %s183
      %p187 = scmp.eq.s32.totalorder %s21, 0
      %p188 = por %p186, %p187
      %p189 = scmp.ne.s32.totalorder %s181, %s183
      %p190 = scmp.eq.s32.totalorder %s26, 1
      %p191 = por %p189, %p190
      %p192 = scmp.ne.s32.totalorder %s183, %s184
      %p193 = scmp.eq.s32.totalorder %s26, 0
      %p194 = por %p192, %p193
      %p195 = scmp.ne.s32.totalorder %s183, %s184
      %p196 = scmp.eq.s32.totalorder %s27, 1
      %p197 = por %p195, %p196
      %p199 = scmp.ne.s32.totalorder %s184, %s198
      %p200 = scmp.eq.s32.totalorder %s27, 0
      %p201 = por %p199, %p200
      %s203 = sadd.s32 %s202, 1
      %p206 = scmp.eq.s32.totalorder %s21, 1
      %p207 = scmp.ne.s32.totalorder %s202, %s204
      %p208 = scmp.eq.s32.totalorder %s21, 0
      %p209 = por %p207, %p208
      %p210 = scmp.ne.s32.totalorder %s202, %s204
      %p211 = scmp.eq.s32.totalorder %s26, 1
      %p212 = por %p210, %p211
      %p213 = scmp.ne.s32.totalorder %s204, %s205
      %p214 = scmp.eq.s32.totalorder %s26, 0
      %p215 = por %p213, %p214
      %p216 = scmp.ne.s32.totalorder %s204, %s205
      %p217 = scmp.eq.s32.totalorder %s27, 1
      %p218 = por %p216, %p217
      %p220 = scmp.ne.s32.totalorder %s205, %s219
      %p221 = scmp.eq.s32.totalorder %s27, 0
      %p222 = por %p220, %p221
      %s224 = sadd.s32 %s223, 1
      %p227 = scmp.eq.s32.totalorder %s21, 1
      %p228 = scmp.ne.s32.totalorder %s223, %s225
      %p229 = scmp.eq.s32.totalorder %s21, 0
      %p230 = por %p228, %p229
      %p231 = scmp.ne.s32.totalorder %s223, %s225
      %p232 = scmp.eq.s32.totalorder %s26, 1
      %p233 = por %p231, %p232
      %p234 = scmp.ne.s32.totalorder %s225, %s226
      %p235 = scmp.eq.s32.totalorder %s26, 0
      %p236 = por %p234, %p235
      %p237 = scmp.ne.s32.totalorder %s225, %s226
      %p238 = scmp.eq.s32.totalorder %s27, 1
      %p239 = por %p237, %p238
      %p241 = scmp.ne.s32.totalorder %s226, %s240
      %p242 = scmp.eq.s32.totalorder %s27, 0
      %p243 = por %p241, %p242
      %s245 = sadd.s32 %s244, 1
      %p248 = scmp.eq.s32.totalorder %s21, 1
      %p249 = scmp.ne.s32.totalorder %s244, %s246
      %p250 = scmp.eq.s32.totalorder %s21, 0
      %p251 = por %p249, %p250
      %p252 = scmp.ne.s32.totalorder %s244, %s246
      %p253 = scmp.eq.s32.totalorder %s26, 1
      %p254 = por %p252, %p253
      %p255 = scmp.ne.s32.totalorder %s246, %s247
      %p256 = scmp.eq.s32.totalorder %s26, 0
      %p257 = por %p255, %p256
      %p258 = scmp.ne.s32.totalorder %s246, %s247
      %p259 = scmp.eq.s32.totalorder %s27, 1
      %p260 = por %p258, %p259
      %p262 = scmp.ne.s32.totalorder %s247, %s261
      %p263 = scmp.eq.s32.totalorder %s27, 0
      %p264 = por %p262, %p263
      %s266 = sadd.s32 %s265, 1
      %p269 = scmp.eq.s32.totalorder %s21, 1
      %p270 = scmp.ne.s32.totalorder %s265, %s267
      %p271 = scmp.eq.s32.totalorder %s21, 0
      %p272 = por %p270, %p271
      %p273 = scmp.ne.s32.totalorder %s265, %s267
      %p274 = scmp.eq.s32.totalorder %s26, 1
      %p275 = por %p273, %p274
      %p276 = scmp.ne.s32.totalorder %s267, %s268
      %p277 = scmp.eq.s32.totalorder %s26, 0
      %p278 = por %p276, %p277
      %p279 = scmp.ne.s32.totalorder %s267, %s268
      %p280 = scmp.eq.s32.totalorder %s27, 1
      %p281 = por %p279, %p280
      %p283 = scmp.ne.s32.totalorder %s268, %s282
      %p284 = scmp.eq.s32.totalorder %s27, 0
      %p285 = por %p283, %p284
      %s286 = ssub.s32 %s21, %s28
      %p287 = scmp.eq.s32.totalorder %s286, 0
      %s289 = sadd.s32 %s288, 1
      %s290 = scalar_select %p287, %s288, %s289
      %p293 = pneg %p287
      %p294 = scmp.eq.s32.totalorder %s21, 1
      %p295 = por %p293, %p294
      %p296 = scmp.ne.s32.totalorder %s288, %s291
      %p297 = scmp.eq.s32.totalorder %s21, 0
      %p298 = por %p296, %p297
      %p299 = scmp.ne.s32.totalorder %s288, %s291
      %p300 = scmp.eq.s32.totalorder %s26, 1
      %p301 = por %p299, %p300
      %p302 = scmp.ne.s32.totalorder %s291, %s292
      %p303 = scmp.eq.s32.totalorder %s26, 0
      %p304 = por %p302, %p303
      %p305 = scmp.ne.s32.totalorder %s291, %s292
      %p306 = scmp.eq.s32.totalorder %s27, 1
      %p307 = por %p305, %p306
      %p309 = scmp.ne.s32.totalorder %s292, %s308
      %p310 = scmp.eq.s32.totalorder %s27, 0
      %p311 = por %p309, %p310
      %p312 = scmp.le.s32.totalorder 1, %s21
      %p313 = scmp.lt.s32.totalorder %s21, 3
      %p314 = pnand %p312, %p313
      %p315 = pneg %p314
      // Predicated region
      $region9: #{tpu_custom_call.1} parent=5 // pred_check
        _
      $region10: #{tpu_custom_call.1} parent=5 // pred_check_branch
        %317 = sbr.rel (%p314) target = $region12
      $region11: #{tpu_custom_call.1} parent=5 // pred_region
        %s318 = ssub.s32 %s21, 1
        // Predicated region
        $region13: #{tpu_custom_call.1} parent=11 // pred_check
          %p319 = pneg %p68
        $region14: #{tpu_custom_call.1} parent=11 // pred_check_branch
          %321 = sbr.rel (%p319) target = $region16
        $region15: #{tpu_custom_call.1} parent=11 // pred_region
          _
        $region16: #{tpu_custom_call.1} parent=11 // pred_fallthru
          _
        // Predicated region
        $region17: #{tpu_custom_call.1} parent=11 // pred_check
          %p322 = pneg %p89
        $region18: #{tpu_custom_call.1} parent=11 // pred_check_branch
          %324 = sbr.rel (%p322) target = $region20
        $region19: #{tpu_custom_call.1} parent=11 // pred_region
          _
        $region20: #{tpu_custom_call.1} parent=11 // pred_fallthru
          _
        // Predicated region
        $region21: #{tpu_custom_call.1} parent=11 // pred_check
          %p325 = pneg %p110
        $region22: #{tpu_custom_call.1} parent=11 // pred_check_branch
          %327 = sbr.rel (%p325) target = $region24
        $region23: #{tpu_custom_call.1} parent=11 // pred_region
          _
        $region24: #{tpu_custom_call.1} parent=11 // pred_fallthru
          _
        // Predicated region
        $region25: #{tpu_custom_call.1} parent=11 // pred_check
          %p328 = pneg %p131
        $region26: #{tpu_custom_call.1} parent=11 // pred_check_branch
          %330 = sbr.rel (%p328) target = $region28
        $region27: #{tpu_custom_call.1} parent=11 // pred_region
          _
        $region28: #{tpu_custom_call.1} parent=11 // pred_fallthru
          _
        // Predicated region
        $region29: #{tpu_custom_call.1} parent=11 // pred_check
          %p331 = pneg %p152
        $region30: #{tpu_custom_call.1} parent=11 // pred_check_branch
          %333 = sbr.rel (%p331) target = $region32
        $region31: #{tpu_custom_call.1} parent=11 // pred_region
          _
        $region32: #{tpu_custom_call.1} parent=11 // pred_fallthru
          _
        // Predicated region
        $region33: #{tpu_custom_call.1} parent=11 // pred_check
          %p334 = pneg %p173
        $region34: #{tpu_custom_call.1} parent=11 // pred_check_branch
          %336 = sbr.rel (%p334) target = $region36
        $region35: #{tpu_custom_call.1} parent=11 // pred_region
          _
        $region36: #{tpu_custom_call.1} parent=11 // pred_fallthru
          _
        // Predicated region
        $region37: #{tpu_custom_call.1} parent=11 // pred_check
          %p337 = pneg %p194
        $region38: #{tpu_custom_call.1} parent=11 // pred_check_branch
          %339 = sbr.rel (%p337) target = $region40
        $region39: #{tpu_custom_call.1} parent=11 // pred_region
          _
        $region40: #{tpu_custom_call.1} parent=11 // pred_fallthru
          _
        // Predicated region
        $region41: #{tpu_custom_call.1} parent=11 // pred_check
          %p340 = pneg %p215
        $region42: #{tpu_custom_call.1} parent=11 // pred_check_branch
          %342 = sbr.rel (%p340) target = $region44
        $region43: #{tpu_custom_call.1} parent=11 // pred_region
          _
        $region44: #{tpu_custom_call.1} parent=11 // pred_fallthru
          _
        // Predicated region
        $region45: #{tpu_custom_call.1} parent=11 // pred_check
          %p343 = pneg %p236
        $region46: #{tpu_custom_call.1} parent=11 // pred_check_branch
          %345 = sbr.rel (%p343) target = $region48
        $region47: #{tpu_custom_call.1} parent=11 // pred_region
          _
        $region48: #{tpu_custom_call.1} parent=11 // pred_fallthru
          _
        // Predicated region
        $region49: #{tpu_custom_call.1} parent=11 // pred_check
          %p346 = pneg %p257
        $region50: #{tpu_custom_call.1} parent=11 // pred_check_branch
          %348 = sbr.rel (%p346) target = $region52
        $region51: #{tpu_custom_call.1} parent=11 // pred_region
          _
        $region52: #{tpu_custom_call.1} parent=11 // pred_fallthru
          _
        // Predicated region
        $region53: #{tpu_custom_call.1} parent=11 // pred_check
          %p349 = pneg %p278
        $region54: #{tpu_custom_call.1} parent=11 // pred_check_branch
          %351 = sbr.rel (%p349) target = $region56
        $region55: #{tpu_custom_call.1} parent=11 // pred_region
          _
        $region56: #{tpu_custom_call.1} parent=11 // pred_fallthru
          _
      $region12: #{tpu_custom_call.1} parent=5 // pred_fallthru
        _
      %p352 = scmp.lt.s32.totalorder %s21, 2
      // Predicated region
      $region57: #{tpu_custom_call.1} parent=5 // pred_check
        %p353 = pneg %p352
      $region58: #{tpu_custom_call.1} parent=5 // pred_check_branch
        %355 = sbr.rel (%p353) target = $region60
      $region59: #{tpu_custom_call.1} parent=5 // pred_region
        // Predicated region
        $region61: #{tpu_custom_call.1} parent=59 // pred_check
          %p356 = pneg %p41
        $region62: #{tpu_custom_call.1} parent=59 // pred_check_branch
          %358 = sbr.rel (%p356) target = $region64
        $region63: #{tpu_custom_call.1} parent=59 // pred_region
          %s359 = smul.u32 4, %s21
          %p360 = scmp.lt.s32.totalorder %s359, 7
          %s361 = scalar_select %p360, %s359, 7
          %s362 = smul.addr %s361, 2
          %s363 = smul.addr %s362, 4
          %s364 = scalar_lea.vmem %s0, %s363
          %s365 = smul.u32 4, %s21
        $region64: #{tpu_custom_call.1} parent=59 // pred_fallthru
          _
      $region60: #{tpu_custom_call.1} parent=5 // pred_fallthru
        _
      %p366 = scmp.le.s32.totalorder 1, %s21
      %p367 = scmp.lt.s32.totalorder %s21, 3
      %p368 = pnand %p366, %p367
      %p369 = pneg %p368
      // Predicated region
      $region65: #{tpu_custom_call.1} parent=5 // pred_check
        _
      $region66: #{tpu_custom_call.1} parent=5 // pred_check_branch
        %371 = sbr.rel (%p368) target = $region68
      $region67: #{tpu_custom_call.1} parent=5 // pred_region
        %s372 = ssub.s32 %s21, 1
        %s373 = smul.u32 4, %s26
        %p374 = scmp.lt.s32.totalorder %s373, 7
        %s375 = scalar_select %p374, %s373, 7
        %s376 = smul.addr %s375, 2
        %s377 = smul.addr %s376, 4
        %s378 = scalar_lea.vmem %s0, %s377
        %p379 = pneg %p47
        %p380 = pneg %p44
        %p381 = pneg %p68
        %p382 = pneg %p65
        %p383 = pneg %p89
        %p384 = pneg %p86
        %p385 = pneg %p110
        %p386 = pneg %p107
        %p387 = pneg %p131
        %p388 = pneg %p128
        %p389 = pneg %p152
        %p390 = pneg %p149
        %p391 = pneg %p173
        %p392 = pneg %p170
        %p393 = pneg %p194
        %p394 = pneg %p191
        %p395 = pneg %p215
        %p396 = pneg %p212
        %p397 = pneg %p236
        %p398 = pneg %p233
        %p399 = pneg %p257
        %p400 = pneg %p254
        %p401 = pneg %p278
        %p402 = pneg %p275
        %p403 = pneg %p304
        %p404 = pneg %p301
        %s405 = sand.u32 %s291, 1
        %s406 = scalar_lea.sflag [#allocation3], %s405
        %s407 = sand.u32 %s291, 1
        %s408 = smul.addr %s407, 32
        %s409 = scalar_lea.vmem [#allocation2], %s408
        %s410 = smul.u32 4, %s26
        %p411 = scmp.lt.s32.totalorder %s410, 7
        %s412 = scalar_select %p411, %s410, 7
        %s413 = smul.addr %s412, 2
        %s414 = smul.addr %s413, 4
        %s415 = scalar_lea.vmem %s0, %s414
        %s416 = smul.u32 4, %s26
        %s417 = smul.u32 4, %s26
        %v418 = vld [vmem:[%s1] sm:$0xff]
        %v419 = vld [vmem:[%s1 + $0x8] sm:$0xff]
        %v420 = vld [vmem:[%s1 + $0x10] sm:$0xff]
        %v421 = vld [vmem:[%s1 + $0x18] sm:$0xff]
        %v422 = vld [vmem:[%s1 + $0x20] sm:$0xff]
        %v423 = vld [vmem:[%s1 + $0x28] sm:$0xff]
        %v424 = vld [vmem:[%s1 + $0x30] sm:$0xff]
        %v425 = vld [vmem:[%s1 + $0x38] sm:$0xff]
        %v426 = vld [vmem:[%s1 + $0x40] sm:$0xff]
        %v427 = vld [vmem:[%s1 + $0x48] sm:$0xff]
        %v428 = vld [vmem:[%s1 + $0x50] sm:$0xff]
        %v429 = vld [vmem:[%s1 + $0x58] sm:$0xff]
        %v430 = vld [vmem:[%s1 + $0x60] sm:$0xff]
        %v431 = vld [vmem:[%s1 + $0x68] sm:$0xff]
        %v432 = vld [vmem:[%s1 + $0x70] sm:$0xff]
        %v433 = vld [vmem:[%s1 + $0x78] sm:$0xff]
        %v434 = vld [vmem:[%s1 + $0x80] sm:$0xff]
        %v435 = vld [vmem:[%s1 + $0x88] sm:$0xff]
        %v436 = vld [vmem:[%s1 + $0x90] sm:$0xff]
        %v437 = vld [vmem:[%s1 + $0x98] sm:$0xff]
        %v438 = vld [vmem:[%s1 + $0xa0] sm:$0xff]
        %v439 = vld [vmem:[%s1 + $0xa8] sm:$0xff]
        %v440 = vld [vmem:[%s1 + $0xb0] sm:$0xff]
        %v441 = vld [vmem:[%s1 + $0xb8] sm:$0xff]
        %v442 = vld [vmem:[%s1 + $0xc0] sm:$0xff]
        %v443 = vld [vmem:[%s1 + $0xc8] sm:$0xff]
        %v444 = vld [vmem:[%s1 + $0xd0] sm:$0xff]
        %v445 = vld [vmem:[%s1 + $0xd8] sm:$0xff]
        %v446 = vld [vmem:[%s1 + $0xe0] sm:$0xff]
        %v447 = vld [vmem:[%s1 + $0xe8] sm:$0xff]
        %v448 = vld [vmem:[%s1 + $0xf0] sm:$0xff]
        %v449 = vld [vmem:[%s1 + $0xf8] sm:$0xff]
        %v450 = vld [vmem:[%s2] sm:$0xff]
        %v451 = vld [vmem:[%s2 + $0x8] sm:$0xff]
        %v452 = vld [vmem:[%s2 + $0x10] sm:$0xff]
        %v453 = vld [vmem:[%s2 + $0x18] sm:$0xff]
        %v454 = vld [vmem:[%s3] sm:$0xff]
        %v455 = vld [vmem:[%s3 + $0x8] sm:$0xff]
        %v456 = vld [vmem:[%s3 + $0x10] sm:$0xff]
        %v457 = vld [vmem:[%s3 + $0x18] sm:$0xff]
        %v458 = vld [vmem:[%s4] sm:$0xff]
        %v459 = vld [vmem:[%s4 + $0x8] sm:$0xff]
        %v460 = vld [vmem:[%s4 + $0x10] sm:$0x1]
        %v461 = vld [vmem:[%s4 + $0x18] sm:$0x1]
        %v462 = vld [vmem:[%s5] sm:$0xf]
        %v463 = vld [vmem:[%s7] sm:$0xf]
        %v464 = vld [vmem:[%s9] sm:$0xf]
        %v465 = vld [vmem:[%s6] sm:$0xf]
        %467 = vset.pattern.permute.xlu0 0
        %468 = vperm.xlu0 %467, %v465
        %v469 = vpop.permute.xlu0 %468
        %v471 = vld [vmem:[%s8] sm:$0xf]
        %473 = vset.pattern.permute.xlu0 0
        %474 = vperm.xlu0 %473, %v471
        %v475 = vpop.permute.xlu0 %474
        %v477 = vld [vmem:[%s10] sm:$0xf]
        %479 = vset.pattern.permute.xlu0 0
        %480 = vperm.xlu0 %479, %v477
        %v481 = vpop.permute.xlu0 %480
        %v482 = vld [vmem:[%s11] sm:$0xf]
        %484 = vset.pattern.permute.xlu0 0
        %485 = vperm.xlu0 %484, %v482
        %v486 = vpop.permute.xlu0 %485
        %v488 = vld [vmem:[%s415] sm:$0xff]
        %v490 = vcombine.high %v488, %v488
        %492 = vmatprep.subr.mxu0 0.0
        %493 = vmatpush1.msra.mxu0 %v433
        %494 = vmatprep.subr.mxu0 0.0
        %495 = vmatpush1.msra.mxu0 %v432
        %496 = vmatprep.subr.mxu0 0.0
        %497 = vmatpush1.msra.mxu0 %v431
        %498 = vmatprep.subr.mxu0 0.0
        %499 = vmatpush1.msra.mxu0 %v430
        %500 = vmatprep.subr.mxu0 0.0
        %501 = vmatpush1.msra.mxu0 %v429
        %502 = vmatprep.subr.mxu0 0.0
        %503 = vmatpush1.msra.mxu0 %v428
        %504 = vmatprep.subr.mxu0 0.0
        %505 = vmatpush1.msra.mxu0 %v427
        %506 = vmatprep.subr.mxu0 0.0
        %507 = vmatpush1.msra.mxu0 %v426
        %508 = vmatprep.subr.mxu0 0.0
        %509 = vmatpush1.msra.mxu0 %v425
        %510 = vmatprep.subr.mxu0 0.0
        %511 = vmatpush1.msra.mxu0 %v424
        %512 = vmatprep.subr.mxu0 0.0
        %513 = vmatpush1.msra.mxu0 %v423
        %514 = vmatprep.subr.mxu0 0.0
        %515 = vmatpush1.msra.mxu0 %v422
        %516 = vmatprep.subr.mxu0 0.0
        %517 = vmatpush1.msra.mxu0 %v421
        %518 = vmatprep.subr.mxu0 0.0
        %519 = vmatpush1.msra.mxu0 %v420
        %520 = vmatprep.subr.mxu0 0.0
        %521 = vmatpush1.msra.mxu0 %v419
        %522 = vmatprep.subr.mxu0 0.0
        %523 = vmatpush1.msra.mxu0 %v418
        %524 = vmatprep.subr.mxu0 0.0
        %525 = vmatpush2.msra.mxu0 %v449
        %526 = vmatprep.subr.mxu0 0.0
        %527 = vmatpush2.msra.mxu0 %v448
        %528 = vmatprep.subr.mxu0 0.0
        %529 = vmatpush2.msra.mxu0 %v447
        %530 = vmatprep.subr.mxu0 0.0
        %531 = vmatpush2.msra.mxu0 %v446
        %532 = vmatprep.subr.mxu0 0.0
        %533 = vmatpush2.msra.mxu0 %v445
        %534 = vmatprep.subr.mxu0 0.0
        %535 = vmatpush2.msra.mxu0 %v444
        %536 = vmatprep.subr.mxu0 0.0
        %537 = vmatpush2.msra.mxu0 %v443
        %538 = vmatprep.subr.mxu0 0.0
        %539 = vmatpush2.msra.mxu0 %v442
        %540 = vmatprep.subr.mxu0 0.0
        %541 = vmatpush2.msra.mxu0 %v441
        %542 = vmatprep.subr.mxu0 0.0
        %543 = vmatpush2.msra.mxu0 %v440
        %544 = vmatprep.subr.mxu0 0.0
        %545 = vmatpush2.msra.mxu0 %v439
        %546 = vmatprep.subr.mxu0 0.0
        %547 = vmatpush2.msra.mxu0 %v438
        %548 = vmatprep.subr.mxu0 0.0
        %549 = vmatpush2.msra.mxu0 %v437
        %550 = vmatprep.subr.mxu0 0.0
        %551 = vmatpush2.msra.mxu0 %v436
        %552 = vmatprep.subr.mxu0 0.0
        %553 = vmatpush2.msra.mxu0 %v435
        %554 = vmatprep.subr.mxu0 0.0
        %555 = vmatpush2.msra.mxu0 %v434
        %556 = vmatprep.mubr.f32.mxu0 %v490
        %557 = vmatmul.mubr.f32.gmra.mxu0 %v488
        %v558 = vpop.f32.mrf.mxu0
        %v559 = vadd.f32 0.0, %v558
        %v560 = vpop.f32.mrf.mxu0
        %561 = vdwg.mxu0
        %vm562 = vcmask 31744
        %v564 = vsel %vm562, %v462, 0
        %vm566 = vcmask 1043456
        %v568 = vsel %vm566, %v559, 0
        %570 = vmatprep.subr.mxu0 0.0
        %571 = vmatpush1.msra.mxu0 0.0
        %572 = vmatprep.subr.mxu0 0.0
        %573 = vmatpush1.msra.mxu0 0.0
        %574 = vmatprep.subr.mxu0 0.0
        %575 = vmatpush1.msra.mxu0 0.0
        %576 = vmatprep.subr.mxu0 0.0
        %577 = vmatpush1.msra.mxu0 0.0
        %578 = vmatprep.subr.mxu0 0.0
        %579 = vmatpush1.msra.mxu0 0.0
        %580 = vmatprep.subr.mxu0 0.0
        %581 = vmatpush1.msra.mxu0 0.0
        %582 = vmatprep.subr.mxu0 0.0
        %583 = vmatpush1.msra.mxu0 0.0
        %584 = vmatprep.subr.mxu0 0.0
        %585 = vmatpush1.msra.mxu0 0.0
        %586 = vmatprep.subr.mxu0 0.0
        %587 = vmatpush1.msra.mxu0 0.0
        %588 = vmatprep.subr.mxu0 0.0
        %589 = vmatpush1.msra.mxu0 0.0
        %590 = vmatprep.subr.mxu0 0.0
        %591 = vmatpush1.msra.mxu0 0.0
        %592 = vmatprep.subr.mxu0 0.0
        %593 = vmatpush1.msra.mxu0 0.0
        %594 = vmatprep.subr.mxu0 0.0
        %595 = vmatpush1.msra.mxu0 0.0
        %596 = vmatprep.subr.mxu0 0.0
        %597 = vmatpush1.msra.mxu0 0.0
        %598 = vmatprep.subr.mxu0 0.0
        %599 = vmatpush1.msra.mxu0 0.0
        %600 = vmatprep.subr.mxu0 0.0
        %601 = vmatpush1.msra.mxu0 %v568
        %602 = vmatprep.subr.mxu0 0.0
        %603 = vmatpush2.msra.mxu0 0.0
        %604 = vmatprep.subr.mxu0 0.0
        %605 = vmatpush2.msra.mxu0 0.0
        %606 = vmatprep.subr.mxu0 0.0
        %607 = vmatpush2.msra.mxu0 0.0
        %608 = vmatprep.subr.mxu0 0.0
        %609 = vmatpush2.msra.mxu0 0.0
        %610 = vmatprep.subr.mxu0 0.0
        %611 = vmatpush2.msra.mxu0 0.0
        %612 = vmatprep.subr.mxu0 0.0
        %613 = vmatpush2.msra.mxu0 0.0
        %614 = vmatprep.subr.mxu0 0.0
        %615 = vmatpush2.msra.mxu0 0.0
        %616 = vmatprep.subr.mxu0 0.0
        %617 = vmatpush2.msra.mxu0 0.0
        %618 = vmatprep.subr.mxu0 0.0
        %619 = vmatpush2.msra.mxu0 0.0
        %620 = vmatprep.subr.mxu0 0.0
        %621 = vmatpush2.msra.mxu0 0.0
        %622 = vmatprep.subr.mxu0 0.0
        %623 = vmatpush2.msra.mxu0 0.0
        %624 = vmatprep.subr.mxu0 0.0
        %625 = vmatpush2.msra.mxu0 0.0
        %626 = vmatprep.subr.mxu0 0.0
        %627 = vmatpush2.msra.mxu0 0.0
        %628 = vmatprep.subr.mxu0 0.0
        %629 = vmatpush2.msra.mxu0 0.0
        %630 = vmatprep.subr.mxu0 0.0
        %631 = vmatpush2.msra.mxu0 0.0
        %632 = vmatprep.subr.mxu0 0.0
        %633 = vmatpush2.msra.mxu0 0.0
        %634 = vmatprep.mubr.f32.mxu0 0.0
        %635 = vmatmul.mubr.f32.gmra.mxu0 %v564
        %v636 = vpop.f32.mrf.mxu0
        %v637 = vadd.f32 %v469, %v636
        %v638 = vpop.f32.mrf.mxu0
        %639 = vdwg.mxu0
        %v640 = vxor.u32 %v637, 2147483648
        %v641 = vmul.f32 %v640, 1.442695
        %v642 = vpow.pop %v641
        %v643 = vadd.f32 %v642, 1.0
        %v644 = vrcp.pop %v643
        %v645 = vmul.f32 1.0, %v644
        %vm646 = vcmask 130048
        %v648 = vsel %vm646, %v645, 0
        %650 = vmatprep.subr.mxu0 0.0
        %651 = vmatpush1.msra.mxu0 0.0
        %652 = vmatprep.subr.mxu0 0.0
        %653 = vmatpush1.msra.mxu0 0.0
        %654 = vmatprep.subr.mxu0 0.0
        %655 = vmatpush1.msra.mxu0 0.0
        %656 = vmatprep.subr.mxu0 0.0
        %657 = vmatpush1.msra.mxu0 0.0
        %658 = vmatprep.subr.mxu0 0.0
        %659 = vmatpush1.msra.mxu0 0.0
        %660 = vmatprep.subr.mxu0 0.0
        %661 = vmatpush1.msra.mxu0 0.0
        %662 = vmatprep.subr.mxu0 0.0
        %663 = vmatpush1.msra.mxu0 0.0
        %664 = vmatprep.subr.mxu0 0.0
        %665 = vmatpush1.msra.mxu0 0.0
        %666 = vmatprep.subr.mxu0 0.0
        %667 = vmatpush1.msra.mxu0 0.0
        %668 = vmatprep.subr.mxu0 0.0
        %669 = vmatpush1.msra.mxu0 0.0
        %670 = vmatprep.subr.mxu0 0.0
        %671 = vmatpush1.msra.mxu0 0.0
        %672 = vmatprep.subr.mxu0 0.0
        %673 = vmatpush1.msra.mxu0 0.0
        %674 = vmatprep.subr.mxu0 0.0
        %675 = vmatpush1.msra.mxu0 0.0
        %676 = vmatprep.subr.mxu0 0.0
        %677 = vmatpush1.msra.mxu0 0.0
        %678 = vmatprep.subr.mxu0 %v453
        %679 = vmatpush1.msra.mxu0 %v452
        %680 = vmatprep.subr.mxu0 %v451
        %681 = vmatpush1.msra.mxu0 %v450
        %682 = vmatprep.subr.mxu0 0.0
        %683 = vmatpush2.msra.mxu0 0.0
        %684 = vmatprep.subr.mxu0 0.0
        %685 = vmatpush2.msra.mxu0 0.0
        %686 = vmatprep.subr.mxu0 0.0
        %687 = vmatpush2.msra.mxu0 0.0
        %688 = vmatprep.subr.mxu0 0.0
        %689 = vmatpush2.msra.mxu0 0.0
        %690 = vmatprep.subr.mxu0 0.0
        %691 = vmatpush2.msra.mxu0 0.0
        %692 = vmatprep.subr.mxu0 0.0
        %693 = vmatpush2.msra.mxu0 0.0
        %694 = vmatprep.subr.mxu0 0.0
        %695 = vmatpush2.msra.mxu0 0.0
        %696 = vmatprep.subr.mxu0 0.0
        %697 = vmatpush2.msra.mxu0 0.0
        %698 = vmatprep.subr.mxu0 0.0
        %699 = vmatpush2.msra.mxu0 0.0
        %700 = vmatprep.subr.mxu0 0.0
        %701 = vmatpush2.msra.mxu0 0.0
        %702 = vmatprep.subr.mxu0 0.0
        %703 = vmatpush2.msra.mxu0 0.0
        %704 = vmatprep.subr.mxu0 0.0
        %705 = vmatpush2.msra.mxu0 0.0
        %706 = vmatprep.subr.mxu0 0.0
        %707 = vmatpush2.msra.mxu0 0.0
        %708 = vmatprep.subr.mxu0 0.0
        %709 = vmatpush2.msra.mxu0 0.0
        %710 = vmatprep.subr.mxu0 0.0
        %711 = vmatpush2.msra.mxu0 0.0
        %712 = vmatprep.subr.mxu0 0.0
        %713 = vmatpush2.msra.mxu0 0.0
        %714 = vmatprep.mubr.f32.mxu0 0.0
        %715 = vmatmul.mubr.f32.gmra.mxu0 %v648
        %v716 = vpop.f32.mrf.mxu0
        %v717 = vadd.f32 0.0, %v716
        %v718 = vpop.f32.mrf.mxu0
        %v719 = vadd.f32 0.0, %v718
        %720 = vdwg.mxu0
        %721 = vrot.lane.b32.xlu0 %v645, 112
        %v722 = vpop.permute.xlu0 %721
        %v723 = vsel %vm646, %v722, 0
        %725 = vmatprep.subr.mxu0 0.0
        %726 = vmatpush1.msra.mxu0 0.0
        %727 = vmatprep.subr.mxu0 0.0
        %728 = vmatpush1.msra.mxu0 0.0
        %729 = vmatprep.subr.mxu0 0.0
        %730 = vmatpush1.msra.mxu0 0.0
        %731 = vmatprep.subr.mxu0 0.0
        %732 = vmatpush1.msra.mxu0 0.0
        %733 = vmatprep.subr.mxu0 0.0
        %734 = vmatpush1.msra.mxu0 0.0
        %735 = vmatprep.subr.mxu0 0.0
        %736 = vmatpush1.msra.mxu0 0.0
        %737 = vmatprep.subr.mxu0 0.0
        %738 = vmatpush1.msra.mxu0 0.0
        %739 = vmatprep.subr.mxu0 0.0
        %740 = vmatpush1.msra.mxu0 0.0
        %741 = vmatprep.subr.mxu0 0.0
        %742 = vmatpush1.msra.mxu0 0.0
        %743 = vmatprep.subr.mxu0 0.0
        %744 = vmatpush1.msra.mxu0 0.0
        %745 = vmatprep.subr.mxu0 0.0
        %746 = vmatpush1.msra.mxu0 0.0
        %747 = vmatprep.subr.mxu0 0.0
        %748 = vmatpush1.msra.mxu0 0.0
        %749 = vmatprep.subr.mxu0 0.0
        %750 = vmatpush1.msra.mxu0 0.0
        %751 = vmatprep.subr.mxu0 0.0
        %752 = vmatpush1.msra.mxu0 0.0
        %753 = vmatprep.subr.mxu0 %v457
        %754 = vmatpush1.msra.mxu0 %v456
        %755 = vmatprep.subr.mxu0 %v455
        %756 = vmatpush1.msra.mxu0 %v454
        %757 = vmatprep.subr.mxu0 0.0
        %758 = vmatpush2.msra.mxu0 0.0
        %759 = vmatprep.subr.mxu0 0.0
        %760 = vmatpush2.msra.mxu0 0.0
        %761 = vmatprep.subr.mxu0 0.0
        %762 = vmatpush2.msra.mxu0 0.0
        %763 = vmatprep.subr.mxu0 0.0
        %764 = vmatpush2.msra.mxu0 0.0
        %765 = vmatprep.subr.mxu0 0.0
        %766 = vmatpush2.msra.mxu0 0.0
        %767 = vmatprep.subr.mxu0 0.0
        %768 = vmatpush2.msra.mxu0 0.0
        %769 = vmatprep.subr.mxu0 0.0
        %770 = vmatpush2.msra.mxu0 0.0
        %771 = vmatprep.subr.mxu0 0.0
        %772 = vmatpush2.msra.mxu0 0.0
        %773 = vmatprep.subr.mxu0 0.0
        %774 = vmatpush2.msra.mxu0 0.0
        %775 = vmatprep.subr.mxu0 0.0
        %776 = vmatpush2.msra.mxu0 0.0
        %777 = vmatprep.subr.mxu0 0.0
        %778 = vmatpush2.msra.mxu0 0.0
        %779 = vmatprep.subr.mxu0 0.0
        %780 = vmatpush2.msra.mxu0 0.0
        %781 = vmatprep.subr.mxu0 0.0
        %782 = vmatpush2.msra.mxu0 0.0
        %783 = vmatprep.subr.mxu0 0.0
        %784 = vmatpush2.msra.mxu0 0.0
        %785 = vmatprep.subr.mxu0 0.0
        %786 = vmatpush2.msra.mxu0 0.0
        %787 = vmatprep.subr.mxu0 0.0
        %788 = vmatpush2.msra.mxu0 0.0
        %789 = vmatprep.mubr.f32.mxu0 0.0
        %790 = vmatmul.mubr.f32.gmra.mxu0 %v723
        %v791 = vpop.f32.mrf.mxu0
        %v792 = vadd.f32 0.0, %v791
        %v793 = vpop.f32.mrf.mxu0
        %v794 = vadd.f32 0.0, %v793
        %795 = vdwg.mxu0
        %v796 = vmul.f32 %v717, %v792
        %v797 = vmul.f32 %v719, %v794
        %v800 = vcombine.low %v796, %v797
        %v802 = vmul.f32 %v488, %v800
        %v804 = vcombine.high %v802, %v802
        %v806 = vsel %vm566, %v802, 0.0
        %v807 = vsel %vm566, %v804, 0.0
        %v808 = vadd.f32 %v806, %v807
        %809 = vadd.xlane.f32.xlu0 %v808
        %v810 = vpop.xlane.xlu0 %809
        %v811 = vrcp.pop 256.0
        %v812 = vmul.f32 %v810, %v811
        %v815 = vunpack.c.l.s4 839922192
        %v816 = vunpack.c.0.s8 %v815
        %v817 = vlaneseq
        %v818 = vshrl.u32 %v817, 7
        %v819 = vsub.s32 %v816, %v818
        %v820 = vrot.slane %v812, %v819
        %v822 = vsub.f32 %v802, %v820
        %v823 = vmul.f32 %v822, %v822
        %v825 = vcombine.high %v823, %v823
        %v827 = vsel %vm566, %v823, 0.0
        %v828 = vsel %vm566, %v825, 0.0
        %v829 = vadd.f32 %v827, %v828
        %830 = vadd.xlane.f32.xlu0 %v829
        %v831 = vpop.xlane.xlu0 %830
        %v832 = vmul.f32 %v831, %v811
        %v833 = vadd.f32 %v832, 1e-05
        %v834 = vrsqrt.pop %v833
        %v835 = vmul.f32 %v834, %v464
        %837 = vset.pattern.permute.xlu0 0
        %838 = vperm.xlu0 %837, %v835
        %v839 = vpop.permute.xlu0 %838
        %v841 = vunpack.c.l.s4 839922192
        %v842 = vunpack.c.0.s8 %v841
        %v843 = vlaneseq
        %v844 = vshrl.u32 %v843, 7
        %v845 = vsub.s32 %v842, %v844
        %v846 = vrot.slane %v839, %v845
        %v848 = vmul.f32 %v822, %v846
        %v850 = vunpack.c.l.s4 839922192
        %v851 = vunpack.c.0.s8 %v850
        %v852 = vlaneseq
        %v853 = vshrl.u32 %v852, 7
        %v854 = vsub.s32 %v851, %v853
        %v855 = vrot.slane %v481, %v854
        %v857 = vadd.f32 %v848, %v855
        %858 = vrot.lane.b32.xlu0 %v488, 17
        %v859 = vpop.permute.xlu0 %858
        %860 = vrot.lane.b32.xlu0 %v490, 17
        %v861 = vpop.permute.xlu0 %860
        %v862 = vlaneseq
        %v863 = vand.u32 %v862, 127
        %vm864 = vcmp.lt.s32.totalorder %v863, 17
        %v865 = vsel %vm864, %v859, %v861
        %v866 = vsel %vm864, %v861, %v859
        %v867 = vlaneseq
        %v868 = vshrl.u32 %v867, 7
        %v869 = vsub.s32 0, %v868
        %v870 = vrot.slane %v458, %v869
        %v871 = vlaneseq
        %v872 = vshrl.u32 %v871, 7
        %v873 = vsub.s32 0, %v872
        %v874 = vrot.slane %v459, %v873
        %v875 = vmul.f32 %v866, %v870
        %v876 = vmul.f32 %v865, %v874
        %877 = vrot.lane.b32.xlu0 %v488, 16
        %v878 = vpop.permute.xlu0 %877
        %879 = vrot.lane.b32.xlu0 %v490, 16
        %v880 = vpop.permute.xlu0 %879
        %vm881 = vcmp.lt.s32.totalorder %v863, 16
        %v882 = vsel %vm881, %v878, %v880
        %v883 = vsel %vm881, %v880, %v878
        %v884 = vlaneseq
        %v885 = vshrl.u32 %v884, 7
        %v886 = vsub.s32 1, %v885
        %v887 = vrot.slane %v458, %v886
        %v888 = vlaneseq
        %v889 = vshrl.u32 %v888, 7
        %v890 = vsub.s32 1, %v889
        %v891 = vrot.slane %v459, %v890
        %v892 = vmul.f32 %v883, %v887
        %v893 = vmul.f32 %v882, %v891
        %894 = vrot.lane.b32.xlu0 %v488, 15
        %v895 = vpop.permute.xlu0 %894
        %896 = vrot.lane.b32.xlu0 %v490, 15
        %v897 = vpop.permute.xlu0 %896
        %vm898 = vcmp.lt.s32.totalorder %v863, 15
        %v899 = vsel %vm898, %v895, %v897
        %v900 = vsel %vm898, %v897, %v895
        %v901 = vlaneseq
        %v902 = vshrl.u32 %v901, 7
        %v903 = vsub.s32 2, %v902
        %v904 = vrot.slane %v458, %v903
        %v905 = vlaneseq
        %v906 = vshrl.u32 %v905, 7
        %v907 = vsub.s32 2, %v906
        %v908 = vrot.slane %v459, %v907
        %v909 = vmul.f32 %v900, %v904
        %v910 = vmul.f32 %v899, %v908
        %911 = vrot.lane.b32.xlu0 %v488, 1
        %v912 = vpop.permute.xlu0 %911
        %913 = vrot.lane.b32.xlu0 %v490, 1
        %v914 = vpop.permute.xlu0 %913
        %vm915 = vcmp.lt.s32.totalorder %v863, 1
        %v916 = vsel %vm915, %v912, %v914
        %v917 = vsel %vm915, %v914, %v912
        %v918 = vlaneseq
        %v919 = vshrl.u32 %v918, 7
        %v920 = vsub.s32 3, %v919
        %v921 = vrot.slane %v458, %v920
        %v922 = vlaneseq
        %v923 = vshrl.u32 %v922, 7
        %v924 = vsub.s32 3, %v923
        %v925 = vrot.slane %v459, %v924
        %v926 = vmul.f32 %v917, %v921
        %v927 = vmul.f32 %v916, %v925
        %928 = vrot.lane.b32.xlu0 %v488, 127
        %v929 = vpop.permute.xlu0 %928
        %930 = vrot.lane.b32.xlu0 %v490, 127
        %v931 = vpop.permute.xlu0 %930
        %vm932 = vcmp.lt.s32.totalorder %v863, 127
        %v933 = vsel %vm932, %v929, %v931
        %v934 = vsel %vm932, %v931, %v929
        %v935 = vlaneseq
        %v936 = vshrl.u32 %v935, 7
        %v937 = vsub.s32 5, %v936
        %v938 = vrot.slane %v458, %v937
        %v939 = vlaneseq
        %v940 = vshrl.u32 %v939, 7
        %v941 = vsub.s32 5, %v940
        %v942 = vrot.slane %v459, %v941
        %v943 = vmul.f32 %v933, %v938
        %v944 = vmul.f32 %v934, %v942
        %945 = vrot.lane.b32.xlu0 %v488, 113
        %v946 = vpop.permute.xlu0 %945
        %947 = vrot.lane.b32.xlu0 %v490, 113
        %v948 = vpop.permute.xlu0 %947
        %vm949 = vcmp.lt.s32.totalorder %v863, 113
        %v950 = vsel %vm949, %v946, %v948
        %v951 = vsel %vm949, %v948, %v946
        %v952 = vlaneseq
        %v953 = vshrl.u32 %v952, 7
        %v954 = vsub.s32 6, %v953
        %v955 = vrot.slane %v458, %v954
        %v956 = vlaneseq
        %v957 = vshrl.u32 %v956, 7
        %v958 = vsub.s32 6, %v957
        %v959 = vrot.slane %v459, %v958
        %v960 = vmul.f32 %v950, %v955
        %v961 = vmul.f32 %v951, %v959
        %962 = vrot.lane.b32.xlu0 %v488, 112
        %v963 = vpop.permute.xlu0 %962
        %964 = vrot.lane.b32.xlu0 %v490, 112
        %v965 = vpop.permute.xlu0 %964
        %vm966 = vcmp.lt.s32.totalorder %v863, 112
        %v967 = vsel %vm966, %v963, %v965
        %v968 = vsel %vm966, %v965, %v963
        %v969 = vlaneseq
        %v970 = vshrl.u32 %v969, 7
        %v971 = vsub.s32 7, %v970
        %v972 = vrot.slane %v458, %v971
        %v973 = vlaneseq
        %v974 = vshrl.u32 %v973, 7
        %v975 = vsub.s32 7, %v974
        %v976 = vrot.slane %v459, %v975
        %v977 = vmul.f32 %v967, %v972
        %v978 = vmul.f32 %v968, %v976
        %979 = vrot.lane.b32.xlu0 %v488, 111
        %v980 = vpop.permute.xlu0 %979
        %981 = vrot.lane.b32.xlu0 %v490, 111
        %v982 = vpop.permute.xlu0 %981
        %vm983 = vcmp.lt.s32.totalorder %v863, 111
        %v984 = vsel %vm983, %v980, %v982
        %v985 = vsel %vm983, %v982, %v980
        %v986 = vlaneseq
        %v987 = vshrl.u32 %v986, 7
        %v988 = vsub.s32 0, %v987
        %v989 = vrot.slane %v460, %v988
        %v990 = vlaneseq
        %v991 = vshrl.u32 %v990, 7
        %v992 = vsub.s32 0, %v991
        %v993 = vrot.slane %v461, %v992
        %v994 = vmul.f32 %v984, %v989
        %v995 = vmul.f32 %v985, %v993
        %v998 = vrot.slane %v892, 4
        %v999 = vrot.slane %v893, 4
        %v1004 = vrot.slane %v926, 4
        %v1005 = vrot.slane %v927, 4
        %v1010 = vrot.slane %v943, 4
        %v1011 = vrot.slane %v944, 4
        %v1016 = vrot.slane %v977, 4
        %v1017 = vrot.slane %v978, 4
        %v1020 = vsel %vm566, %v875, %v998
        %v1021 = vsel %vm566, %v876, %v999
        %v1022 = vsel %vm566, %v909, %v1004
        %v1023 = vsel %vm566, %v910, %v1005
        %v1024 = vsel %vm566, %v488, %v1010
        %v1025 = vsel %vm566, %v490, %v1011
        %v1026 = vsel %vm566, %v960, %v1016
        %v1027 = vsel %vm566, %v961, %v1017
        %vm1028 = vcmask 293888
        %v1030 = vsel %vm1028, %v463, 0
        %v1033 = vsel %vm566, %v994, 0
        %v1036 = vsel %vm566, %v995, 0
        %1038 = vmatprep.subr.mxu0 0.0
        %1039 = vmatpush1.msra.mxu0 0.0
        %1040 = vmatprep.subr.mxu0 0.0
        %1041 = vmatpush1.msra.mxu0 0.0
        %1042 = vmatprep.subr.mxu0 0.0
        %1043 = vmatpush1.msra.mxu0 0.0
        %1044 = vmatprep.subr.mxu0 0.0
        %1045 = vmatpush1.msra.mxu0 0.0
        %1046 = vmatprep.subr.mxu0 0.0
        %1047 = vmatpush1.msra.mxu0 0.0
        %1048 = vmatprep.subr.mxu0 0.0
        %1049 = vmatpush1.msra.mxu0 0.0
        %1050 = vmatprep.subr.mxu0 0.0
        %1051 = vmatpush1.msra.mxu0 0.0
        %1052 = vmatprep.subr.mxu0 0.0
        %1053 = vmatpush1.msra.mxu0 0.0
        %1054 = vmatprep.subr.mxu0 0.0
        %1055 = vmatpush1.msra.mxu0 0.0
        %1056 = vmatprep.subr.mxu0 0.0
        %1057 = vmatpush1.msra.mxu0 0.0
        %1058 = vmatprep.subr.mxu0 0.0
        %1059 = vmatpush1.msra.mxu0 0.0
        %1060 = vmatprep.subr.mxu0 %v1036
        %1061 = vmatpush1.msra.mxu0 %v1033
        %1062 = vmatprep.subr.mxu0 %v1027
        %1063 = vmatpush1.msra.mxu0 %v1026
        %1064 = vmatprep.subr.mxu0 %v1025
        %1065 = vmatpush1.msra.mxu0 %v1024
        %1066 = vmatprep.subr.mxu0 %v1023
        %1067 = vmatpush1.msra.mxu0 %v1022
        %1068 = vmatprep.subr.mxu0 %v1021
        %1069 = vmatpush1.msra.mxu0 %v1020
        %1070 = vmatprep.subr.mxu0 0.0
        %1071 = vmatpush2.msra.mxu0 0.0
        %1072 = vmatprep.subr.mxu0 0.0
        %1073 = vmatpush2.msra.mxu0 0.0
        %1074 = vmatprep.subr.mxu0 0.0
        %1075 = vmatpush2.msra.mxu0 0.0
        %1076 = vmatprep.subr.mxu0 0.0
        %1077 = vmatpush2.msra.mxu0 0.0
        %1078 = vmatprep.subr.mxu0 0.0
        %1079 = vmatpush2.msra.mxu0 0.0
        %1080 = vmatprep.subr.mxu0 0.0
        %1081 = vmatpush2.msra.mxu0 0.0
        %1082 = vmatprep.subr.mxu0 0.0
        %1083 = vmatpush2.msra.mxu0 0.0
        %1084 = vmatprep.subr.mxu0 0.0
        %1085 = vmatpush2.msra.mxu0 0.0
        %1086 = vmatprep.subr.mxu0 0.0
        %1087 = vmatpush2.msra.mxu0 0.0
        %1088 = vmatprep.subr.mxu0 0.0
        %1089 = vmatpush2.msra.mxu0 0.0
        %1090 = vmatprep.subr.mxu0 0.0
        %1091 = vmatpush2.msra.mxu0 0.0
        %1092 = vmatprep.subr.mxu0 0.0
        %1093 = vmatpush2.msra.mxu0 0.0
        %1094 = vmatprep.subr.mxu0 0.0
        %1095 = vmatpush2.msra.mxu0 0.0
        %1096 = vmatprep.subr.mxu0 0.0
        %1097 = vmatpush2.msra.mxu0 0.0
        %1098 = vmatprep.subr.mxu0 0.0
        %1099 = vmatpush2.msra.mxu0 0.0
        %1100 = vmatprep.subr.mxu0 0.0
        %1101 = vmatpush2.msra.mxu0 0.0
        %1102 = vmatprep.mubr.f32.mxu0 0.0
        %1103 = vmatmul.mubr.f32.gmra.mxu0 %v1030
        %v1104 = vpop.f32.mrf.mxu0
        %v1105 = vadd.f32 %v475, %v1104
        %v1106 = vpop.f32.mrf.mxu0
        %v1107 = vadd.f32 %v475, %v1106
        %1108 = vdwg.mxu0
        %v1109 = vsel %vm566, %v1105, 0.0
        %v1110 = vsel %vm566, %v1107, 0.0
        %v1111 = vadd.f32 %v1109, %v1110
        %1112 = vadd.xlane.f32.xlu0 %v1111
        %v1113 = vpop.xlane.xlu0 %1112
        %v1114 = vmul.f32 %v1113, %v811
        %v1115 = vsel %vm566, %v1114, -inf
        %v1116 = vrot.slane %v1115, 4
        %v1117 = vmax.f32 %v1115, %v1116
        %v1118 = vrot.slane %v1117, 2
        %v1119 = vmax.f32 %v1117, %v1118
        %v1120 = vrot.slane %v1119, 1
        %v1121 = vmax.f32 %v1119, %v1120
        %v1122 = vsub.f32 %v1114, %v1121
        %v1123 = vmul.f32 %v1122, 1.442695
        %v1124 = vpow.pop %v1123
        %v1125 = vsel %vm566, %v1124, 0.0
        %v1126 = vrot.slane %v1125, 4
        %v1127 = vadd.f32 %v1125, %v1126
        %v1128 = vrot.slane %v1127, 2
        %v1129 = vadd.f32 %v1127, %v1128
        %v1130 = vrot.slane %v1129, 1
        %v1131 = vadd.f32 %v1129, %v1130
        %v1132 = vrcp.pop %v1131
        %v1133 = vmul.f32 %v1124, %v1132
        %v1134 = vmul.f32 %v486, %v1105
        %v1135 = vmul.f32 %v486, %v1107
        %v1137 = vcombine.high %v857, %v857
        %v1139 = vmul.f32 %v1133, %v857
        %v1140 = vmul.f32 %v1133, %v1137
        %v1141 = vadd.f32 %v1134, %v1139
        %v1142 = vadd.f32 %v1135, %v1140
        %v1143 = vsel %vm566, %v1141, 0.0
        %v1144 = vrot.slane %v1143, 4
        %v1145 = vadd.f32 %v1143, %v1144
        %v1146 = vrot.slane %v1145, 2
        %v1147 = vadd.f32 %v1145, %v1146
        %v1148 = vrot.slane %v1147, 1
        %v1149 = vadd.f32 %v1147, %v1148
        %v1150 = vsel %vm566, %v1142, 0.0
        %v1151 = vrot.slane %v1150, 4
        %v1152 = vadd.f32 %v1150, %v1151
        %v1153 = vrot.slane %v1152, 2
        %v1154 = vadd.f32 %v1152, %v1153
        %v1155 = vrot.slane %v1154, 1
        %v1156 = vadd.f32 %v1154, %v1155
        %v1157 = vxor.u32 %v1149, 2147483648
        %v1158 = vxor.u32 %v1156, 2147483648
        %v1159 = vmul.f32 %v1157, 1.442695
        %v1160 = vpow.pop %v1159
        %v1161 = vmul.f32 %v1158, 1.442695
        %v1162 = vpow.pop %v1161
        %v1163 = vadd.f32 %v1160, 1.0
        %v1164 = vadd.f32 %v1162, 1.0
        %v1165 = vrcp.pop %v1163
        %v1166 = vmul.f32 1.0, %v1165
        %v1167 = vrcp.pop %v1164
        %v1168 = vmul.f32 1.0, %v1167
        %v1171 = vcombine.low %v1166, %v1168
        %v1173 = vmul.f32 %v488, %v1171
        %1174 = vst [vmem:[%s409] sm:$0xff] %v1173
        %s1175 = scalar_lea.vmem %s415, 8
        %v1176 = vld [vmem:[%s1175] sm:$0xff]
        %v1178 = vcombine.high %v1176, %v1176
        %1180 = vmatprep.subr.mxu0 0.0
        %1181 = vmatpush1.msra.mxu0 %v433
        %1182 = vmatprep.subr.mxu0 0.0
        %1183 = vmatpush1.msra.mxu0 %v432
        %1184 = vmatprep.subr.mxu0 0.0
        %1185 = vmatpush1.msra.mxu0 %v431
        %1186 = vmatprep.subr.mxu0 0.0
        %1187 = vmatpush1.msra.mxu0 %v430
        %1188 = vmatprep.subr.mxu0 0.0
        %1189 = vmatpush1.msra.mxu0 %v429
        %1190 = vmatprep.subr.mxu0 0.0
        %1191 = vmatpush1.msra.mxu0 %v428
        %1192 = vmatprep.subr.mxu0 0.0
        %1193 = vmatpush1.msra.mxu0 %v427
        %1194 = vmatprep.subr.mxu0 0.0
        %1195 = vmatpush1.msra.mxu0 %v426
        %1196 = vmatprep.subr.mxu0 0.0
        %1197 = vmatpush1.msra.mxu0 %v425
        %1198 = vmatprep.subr.mxu0 0.0
        %1199 = vmatpush1.msra.mxu0 %v424
        %1200 = vmatprep.subr.mxu0 0.0
        %1201 = vmatpush1.msra.mxu0 %v423
        %1202 = vmatprep.subr.mxu0 0.0
        %1203 = vmatpush1.msra.mxu0 %v422
        %1204 = vmatprep.subr.mxu0 0.0
        %1205 = vmatpush1.msra.mxu0 %v421
        %1206 = vmatprep.subr.mxu0 0.0
        %1207 = vmatpush1.msra.mxu0 %v420
        %1208 = vmatprep.subr.mxu0 0.0
        %1209 = vmatpush1.msra.mxu0 %v419
        %1210 = vmatprep.subr.mxu0 0.0
        %1211 = vmatpush1.msra.mxu0 %v418
        %1212 = vmatprep.subr.mxu0 0.0
        %1213 = vmatpush2.msra.mxu0 %v449
        %1214 = vmatprep.subr.mxu0 0.0
        %1215 = vmatpush2.msra.mxu0 %v448
        %1216 = vmatprep.subr.mxu0 0.0
        %1217 = vmatpush2.msra.mxu0 %v447
        %1218 = vmatprep.subr.mxu0 0.0
        %1219 = vmatpush2.msra.mxu0 %v446
        %1220 = vmatprep.subr.mxu0 0.0
        %1221 = vmatpush2.msra.mxu0 %v445
        %1222 = vmatprep.subr.mxu0 0.0
        %1223 = vmatpush2.msra.mxu0 %v444
        %1224 = vmatprep.subr.mxu0 0.0
        %1225 = vmatpush2.msra.mxu0 %v443
        %1226 = vmatprep.subr.mxu0 0.0
        %1227 = vmatpush2.msra.mxu0 %v442
        %1228 = vmatprep.subr.mxu0 0.0
        %1229 = vmatpush2.msra.mxu0 %v441
        %1230 = vmatprep.subr.mxu0 0.0
        %1231 = vmatpush2.msra.mxu0 %v440
        %1232 = vmatprep.subr.mxu0 0.0
        %1233 = vmatpush2.msra.mxu0 %v439
        %1234 = vmatprep.subr.mxu0 0.0
        %1235 = vmatpush2.msra.mxu0 %v438
        %1236 = vmatprep.subr.mxu0 0.0
        %1237 = vmatpush2.msra.mxu0 %v437
        %1238 = vmatprep.subr.mxu0 0.0
        %1239 = vmatpush2.msra.mxu0 %v436
        %1240 = vmatprep.subr.mxu0 0.0
        %1241 = vmatpush2.msra.mxu0 %v435
        %1242 = vmatprep.subr.mxu0 0.0
        %1243 = vmatpush2.msra.mxu0 %v434
        %1244 = vmatprep.mubr.f32.mxu0 %v1178
        %1245 = vmatmul.mubr.f32.gmra.mxu0 %v1176
        %v1246 = vpop.f32.mrf.mxu0
        %v1247 = vadd.f32 0.0, %v1246
        %v1248 = vpop.f32.mrf.mxu0
        %1249 = vdwg.mxu0
        %v1251 = vsel %vm566, %v1247, 0
        %1253 = vmatprep.subr.mxu0 0.0
        %1254 = vmatpush1.msra.mxu0 0.0
        %1255 = vmatprep.subr.mxu0 0.0
        %1256 = vmatpush1.msra.mxu0 0.0
        %1257 = vmatprep.subr.mxu0 0.0
        %1258 = vmatpush1.msra.mxu0 0.0
        %1259 = vmatprep.subr.mxu0 0.0
        %1260 = vmatpush1.msra.mxu0 0.0
        %1261 = vmatprep.subr.mxu0 0.0
        %1262 = vmatpush1.msra.mxu0 0.0
        %1263 = vmatprep.subr.mxu0 0.0
        %1264 = vmatpush1.msra.mxu0 0.0
        %1265 = vmatprep.subr.mxu0 0.0
        %1266 = vmatpush1.msra.mxu0 0.0
        %1267 = vmatprep.subr.mxu0 0.0
        %1268 = vmatpush1.msra.mxu0 0.0
        %1269 = vmatprep.subr.mxu0 0.0
        %1270 = vmatpush1.msra.mxu0 0.0
        %1271 = vmatprep.subr.mxu0 0.0
        %1272 = vmatpush1.msra.mxu0 0.0
        %1273 = vmatprep.subr.mxu0 0.0
        %1274 = vmatpush1.msra.mxu0 0.0
        %1275 = vmatprep.subr.mxu0 0.0
        %1276 = vmatpush1.msra.mxu0 0.0
        %1277 = vmatprep.subr.mxu0 0.0
        %1278 = vmatpush1.msra.mxu0 0.0
        %1279 = vmatprep.subr.mxu0 0.0
        %1280 = vmatpush1.msra.mxu0 0.0
        %1281 = vmatprep.subr.mxu0 0.0
        %1282 = vmatpush1.msra.mxu0 0.0
        %1283 = vmatprep.subr.mxu0 0.0
        %1284 = vmatpush1.msra.mxu0 %v1251
        %1285 = vmatprep.subr.mxu0 0.0
        %1286 = vmatpush2.msra.mxu0 0.0
        %1287 = vmatprep.subr.mxu0 0.0
        %1288 = vmatpush2.msra.mxu0 0.0
        %1289 = vmatprep.subr.mxu0 0.0
        %1290 = vmatpush2.msra.mxu0 0.0
        %1291 = vmatprep.subr.mxu0 0.0
        %1292 = vmatpush2.msra.mxu0 0.0
        %1293 = vmatprep.subr.mxu0 0.0
        %1294 = vmatpush2.msra.mxu0 0.0
        %1295 = vmatprep.subr.mxu0 0.0
        %1296 = vmatpush2.msra.mxu0 0.0
        %1297 = vmatprep.subr.mxu0 0.0
        %1298 = vmatpush2.msra.mxu0 0.0
        %1299 = vmatprep.subr.mxu0 0.0
        %1300 = vmatpush2.msra.mxu0 0.0
        %1301 = vmatprep.subr.mxu0 0.0
        %1302 = vmatpush2.msra.mxu0 0.0
        %1303 = vmatprep.subr.mxu0 0.0
        %1304 = vmatpush2.msra.mxu0 0.0
        %1305 = vmatprep.subr.mxu0 0.0
        %1306 = vmatpush2.msra.mxu0 0.0
        %1307 = vmatprep.subr.mxu0 0.0
        %1308 = vmatpush2.msra.mxu0 0.0
        %1309 = vmatprep.subr.mxu0 0.0
        %1310 = vmatpush2.msra.mxu0 0.0
        %1311 = vmatprep.subr.mxu0 0.0
        %1312 = vmatpush2.msra.mxu0 0.0
        %1313 = vmatprep.subr.mxu0 0.0
        %1314 = vmatpush2.msra.mxu0 0.0
        %1315 = vmatprep.subr.mxu0 0.0
        %1316 = vmatpush2.msra.mxu0 0.0
        %1317 = vmatprep.mubr.f32.mxu0 0.0
        %1318 = vmatmul.mubr.f32.gmra.mxu0 %v564
        %v1319 = vpop.f32.mrf.mxu0
        %v1320 = vadd.f32 %v469, %v1319
        %v1321 = vpop.f32.mrf.mxu0
        %1322 = vdwg.mxu0
        %v1323 = vxor.u32 %v1320, 2147483648
        %v1324 = vmul.f32 %v1323, 1.442695
        %v1325 = vpow.pop %v1324
        %v1326 = vadd.f32 %v1325, 1.0
        %v1327 = vrcp.pop %v1326
        %v1328 = vmul.f32 1.0, %v1327
        %v1330 = vsel %vm646, %v1328, 0
        %1332 = vmatprep.subr.mxu0 0.0
        %1333 = vmatpush1.msra.mxu0 0.0
        %1334 = vmatprep.subr.mxu0 0.0
        %1335 = vmatpush1.msra.mxu0 0.0
        %1336 = vmatprep.subr.mxu0 0.0
        %1337 = vmatpush1.msra.mxu0 0.0
        %1338 = vmatprep.subr.mxu0 0.0
        %1339 = vmatpush1.msra.mxu0 0.0
        %1340 = vmatprep.subr.mxu0 0.0
        %1341 = vmatpush1.msra.mxu0 0.0
        %1342 = vmatprep.subr.mxu0 0.0
        %1343 = vmatpush1.msra.mxu0 0.0
        %1344 = vmatprep.subr.mxu0 0.0
        %1345 = vmatpush1.msra.mxu0 0.0
        %1346 = vmatprep.subr.mxu0 0.0
        %1347 = vmatpush1.msra.mxu0 0.0
        %1348 = vmatprep.subr.mxu0 0.0
        %1349 = vmatpush1.msra.mxu0 0.0
        %1350 = vmatprep.subr.mxu0 0.0
        %1351 = vmatpush1.msra.mxu0 0.0
        %1352 = vmatprep.subr.mxu0 0.0
        %1353 = vmatpush1.msra.mxu0 0.0
        %1354 = vmatprep.subr.mxu0 0.0
        %1355 = vmatpush1.msra.mxu0 0.0
        %1356 = vmatprep.subr.mxu0 0.0
        %1357 = vmatpush1.msra.mxu0 0.0
        %1358 = vmatprep.subr.mxu0 0.0
        %1359 = vmatpush1.msra.mxu0 0.0
        %1360 = vmatprep.subr.mxu0 %v453
        %1361 = vmatpush1.msra.mxu0 %v452
        %1362 = vmatprep.subr.mxu0 %v451
        %1363 = vmatpush1.msra.mxu0 %v450
        %1364 = vmatprep.subr.mxu0 0.0
        %1365 = vmatpush2.msra.mxu0 0.0
        %1366 = vmatprep.subr.mxu0 0.0
        %1367 = vmatpush2.msra.mxu0 0.0
        %1368 = vmatprep.subr.mxu0 0.0
        %1369 = vmatpush2.msra.mxu0 0.0
        %1370 = vmatprep.subr.mxu0 0.0
        %1371 = vmatpush2.msra.mxu0 0.0
        %1372 = vmatprep.subr.mxu0 0.0
        %1373 = vmatpush2.msra.mxu0 0.0
        %1374 = vmatprep.subr.mxu0 0.0
        %1375 = vmatpush2.msra.mxu0 0.0
        %1376 = vmatprep.subr.mxu0 0.0
        %1377 = vmatpush2.msra.mxu0 0.0
        %1378 = vmatprep.subr.mxu0 0.0
        %1379 = vmatpush2.msra.mxu0 0.0
        %1380 = vmatprep.subr.mxu0 0.0
        %1381 = vmatpush2.msra.mxu0 0.0
        %1382 = vmatprep.subr.mxu0 0.0
        %1383 = vmatpush2.msra.mxu0 0.0
        %1384 = vmatprep.subr.mxu0 0.0
        %1385 = vmatpush2.msra.mxu0 0.0
        %1386 = vmatprep.subr.mxu0 0.0
        %1387 = vmatpush2.msra.mxu0 0.0
        %1388 = vmatprep.subr.mxu0 0.0
        %1389 = vmatpush2.msra.mxu0 0.0
        %1390 = vmatprep.subr.mxu0 0.0
        %1391 = vmatpush2.msra.mxu0 0.0
        %1392 = vmatprep.subr.mxu0 0.0
        %1393 = vmatpush2.msra.mxu0 0.0
        %1394 = vmatprep.subr.mxu0 0.0
        %1395 = vmatpush2.msra.mxu0 0.0
        %1396 = vmatprep.mubr.f32.mxu0 0.0
        %1397 = vmatmul.mubr.f32.gmra.mxu0 %v1330
        %v1398 = vpop.f32.mrf.mxu0
        %v1399 = vadd.f32 0.0, %v1398
        %v1400 = vpop.f32.mrf.mxu0
        %v1401 = vadd.f32 0.0, %v1400
        %1402 = vdwg.mxu0
        %1403 = vrot.lane.b32.xlu0 %v1328, 112
        %v1404 = vpop.permute.xlu0 %1403
        %v1405 = vsel %vm646, %v1404, 0
        %1407 = vmatprep.subr.mxu0 0.0
        %1408 = vmatpush1.msra.mxu0 0.0
        %1409 = vmatprep.subr.mxu0 0.0
        %1410 = vmatpush1.msra.mxu0 0.0
        %1411 = vmatprep.subr.mxu0 0.0
        %1412 = vmatpush1.msra.mxu0 0.0
        %1413 = vmatprep.subr.mxu0 0.0
        %1414 = vmatpush1.msra.mxu0 0.0
        %1415 = vmatprep.subr.mxu0 0.0
        %1416 = vmatpush1.msra.mxu0 0.0
        %1417 = vmatprep.subr.mxu0 0.0
        %1418 = vmatpush1.msra.mxu0 0.0
        %1419 = vmatprep.subr.mxu0 0.0
        %1420 = vmatpush1.msra.mxu0 0.0
        %1421 = vmatprep.subr.mxu0 0.0
        %1422 = vmatpush1.msra.mxu0 0.0
        %1423 = vmatprep.subr.mxu0 0.0
        %1424 = vmatpush1.msra.mxu0 0.0
        %1425 = vmatprep.subr.mxu0 0.0
        %1426 = vmatpush1.msra.mxu0 0.0
        %1427 = vmatprep.subr.mxu0 0.0
        %1428 = vmatpush1.msra.mxu0 0.0
        %1429 = vmatprep.subr.mxu0 0.0
        %1430 = vmatpush1.msra.mxu0 0.0
        %1431 = vmatprep.subr.mxu0 0.0
        %1432 = vmatpush1.msra.mxu0 0.0
        %1433 = vmatprep.subr.mxu0 0.0
        %1434 = vmatpush1.msra.mxu0 0.0
        %1435 = vmatprep.subr.mxu0 %v457
        %1436 = vmatpush1.msra.mxu0 %v456
        %1437 = vmatprep.subr.mxu0 %v455
        %1438 = vmatpush1.msra.mxu0 %v454
        %1439 = vmatprep.subr.mxu0 0.0
        %1440 = vmatpush2.msra.mxu0 0.0
        %1441 = vmatprep.subr.mxu0 0.0
        %1442 = vmatpush2.msra.mxu0 0.0
        %1443 = vmatprep.subr.mxu0 0.0
        %1444 = vmatpush2.msra.mxu0 0.0
        %1445 = vmatprep.subr.mxu0 0.0
        %1446 = vmatpush2.msra.mxu0 0.0
        %1447 = vmatprep.subr.mxu0 0.0
        %1448 = vmatpush2.msra.mxu0 0.0
        %1449 = vmatprep.subr.mxu0 0.0
        %1450 = vmatpush2.msra.mxu0 0.0
        %1451 = vmatprep.subr.mxu0 0.0
        %1452 = vmatpush2.msra.mxu0 0.0
        %1453 = vmatprep.subr.mxu0 0.0
        %1454 = vmatpush2.msra.mxu0 0.0
        %1455 = vmatprep.subr.mxu0 0.0
        %1456 = vmatpush2.msra.mxu0 0.0
        %1457 = vmatprep.subr.mxu0 0.0
        %1458 = vmatpush2.msra.mxu0 0.0
        %1459 = vmatprep.subr.mxu0 0.0
        %1460 = vmatpush2.msra.mxu0 0.0
        %1461 = vmatprep.subr.mxu0 0.0
        %1462 = vmatpush2.msra.mxu0 0.0
        %1463 = vmatprep.subr.mxu0 0.0
        %1464 = vmatpush2.msra.mxu0 0.0
        %1465 = vmatprep.subr.mxu0 0.0
        %1466 = vmatpush2.msra.mxu0 0.0
        %1467 = vmatprep.subr.mxu0 0.0
        %1468 = vmatpush2.msra.mxu0 0.0
        %1469 = vmatprep.subr.mxu0 0.0
        %1470 = vmatpush2.msra.mxu0 0.0
        %1471 = vmatprep.mubr.f32.mxu0 0.0
        %1472 = vmatmul.mubr.f32.gmra.mxu0 %v1405
        %v1473 = vpop.f32.mrf.mxu0
        %v1474 = vadd.f32 0.0, %v1473
        %v1475 = vpop.f32.mrf.mxu0
        %v1476 = vadd.f32 0.0, %v1475
        %1477 = vdwg.mxu0
        %v1478 = vmul.f32 %v1399, %v1474
        %v1479 = vmul.f32 %v1401, %v1476
        %v1482 = vcombine.low %v1478, %v1479
        %v1484 = vmul.f32 %v1176, %v1482
        %v1486 = vcombine.high %v1484, %v1484
        %v1488 = vsel %vm566, %v1484, 0.0
        %v1489 = vsel %vm566, %v1486, 0.0
        %v1490 = vadd.f32 %v1488, %v1489
        %1491 = vadd.xlane.f32.xlu0 %v1490
        %v1492 = vpop.xlane.xlu0 %1491
        %v1493 = vmul.f32 %v1492, %v811
        %v1496 = vunpack.c.l.s4 839922192
        %v1497 = vunpack.c.0.s8 %v1496
        %v1498 = vlaneseq
        %v1499 = vshrl.u32 %v1498, 7
        %v1500 = vsub.s32 %v1497, %v1499
        %v1501 = vrot.slane %v1493, %v1500
        %v1503 = vsub.f32 %v1484, %v1501
        %v1504 = vmul.f32 %v1503, %v1503
        %v1506 = vcombine.high %v1504, %v1504
        %v1508 = vsel %vm566, %v1504, 0.0
        %v1509 = vsel %vm566, %v1506, 0.0
        %v1510 = vadd.f32 %v1508, %v1509
        %1511 = vadd.xlane.f32.xlu0 %v1510
        %v1512 = vpop.xlane.xlu0 %1511
        %v1513 = vmul.f32 %v1512, %v811
        %v1514 = vadd.f32 %v1513, 1e-05
        %v1515 = vrsqrt.pop %v1514
        %v1516 = vmul.f32 %v1515, %v464
        %1518 = vset.pattern.permute.xlu0 0
        %1519 = vperm.xlu0 %1518, %v1516
        %v1520 = vpop.permute.xlu0 %1519
        %v1522 = vunpack.c.l.s4 839922192
        %v1523 = vunpack.c.0.s8 %v1522
        %v1524 = vlaneseq
        %v1525 = vshrl.u32 %v1524, 7
        %v1526 = vsub.s32 %v1523, %v1525
        %v1527 = vrot.slane %v1520, %v1526
        %v1529 = vmul.f32 %v1503, %v1527
        %v1530 = vadd.f32 %v1529, %v855
        %1531 = vrot.lane.b32.xlu0 %v1176, 17
        %v1532 = vpop.permute.xlu0 %1531
        %1533 = vrot.lane.b32.xlu0 %v1178, 17
        %v1534 = vpop.permute.xlu0 %1533
        %v1535 = vsel %vm864, %v1532, %v1534
        %v1536 = vsel %vm864, %v1534, %v1532
        %v1537 = vmul.f32 %v1536, %v870
        %v1538 = vmul.f32 %v1535, %v874
        %1539 = vrot.lane.b32.xlu0 %v1176, 16
        %v1540 = vpop.permute.xlu0 %1539
        %1541 = vrot.lane.b32.xlu0 %v1178, 16
        %v1542 = vpop.permute.xlu0 %1541
        %v1543 = vsel %vm881, %v1540, %v1542
        %v1544 = vsel %vm881, %v1542, %v1540
        %v1545 = vmul.f32 %v1544, %v887
        %v1546 = vmul.f32 %v1543, %v891
        %1547 = vrot.lane.b32.xlu0 %v1176, 15
        %v1548 = vpop.permute.xlu0 %1547
        %1549 = vrot.lane.b32.xlu0 %v1178, 15
        %v1550 = vpop.permute.xlu0 %1549
        %v1551 = vsel %vm898, %v1548, %v1550
        %v1552 = vsel %vm898, %v1550, %v1548
        %v1553 = vmul.f32 %v1552, %v904
        %v1554 = vmul.f32 %v1551, %v908
        %1555 = vrot.lane.b32.xlu0 %v1176, 1
        %v1556 = vpop.permute.xlu0 %1555
        %1557 = vrot.lane.b32.xlu0 %v1178, 1
        %v1558 = vpop.permute.xlu0 %1557
        %v1559 = vsel %vm915, %v1556, %v1558
        %v1560 = vsel %vm915, %v1558, %v1556
        %v1561 = vmul.f32 %v1560, %v921
        %v1562 = vmul.f32 %v1559, %v925
        %1563 = vrot.lane.b32.xlu0 %v1176, 127
        %v1564 = vpop.permute.xlu0 %1563
        %1565 = vrot.lane.b32.xlu0 %v1178, 127
        %v1566 = vpop.permute.xlu0 %1565
        %v1567 = vsel %vm932, %v1564, %v1566
        %v1568 = vsel %vm932, %v1566, %v1564
        %v1569 = vmul.f32 %v1567, %v938
        %v1570 = vmul.f32 %v1568, %v942
        %1571 = vrot.lane.b32.xlu0 %v1176, 113
        %v1572 = vpop.permute.xlu0 %1571
        %1573 = vrot.lane.b32.xlu0 %v1178, 113
        %v1574 = vpop.permute.xlu0 %1573
        %v1575 = vsel %vm949, %v1572, %v1574
        %v1576 = vsel %vm949, %v1574, %v1572
        %v1577 = vmul.f32 %v1575, %v955
        %v1578 = vmul.f32 %v1576, %v959
        %1579 = vrot.lane.b32.xlu0 %v1176, 112
        %v1580 = vpop.permute.xlu0 %1579
        %1581 = vrot.lane.b32.xlu0 %v1178, 112
        %v1582 = vpop.permute.xlu0 %1581
        %v1583 = vsel %vm966, %v1580, %v1582
        %v1584 = vsel %vm966, %v1582, %v1580
        %v1585 = vmul.f32 %v1583, %v972
        %v1586 = vmul.f32 %v1584, %v976
        %1587 = vrot.lane.b32.xlu0 %v1176, 111
        %v1588 = vpop.permute.xlu0 %1587
        %1589 = vrot.lane.b32.xlu0 %v1178, 111
        %v1590 = vpop.permute.xlu0 %1589
        %v1591 = vsel %vm983, %v1588, %v1590
        %v1592 = vsel %vm983, %v1590, %v1588
        %v1593 = vmul.f32 %v1591, %v989
        %v1594 = vmul.f32 %v1592, %v993
        %v1597 = vrot.slane %v1545, 4
        %v1598 = vrot.slane %v1546, 4
        %v1603 = vrot.slane %v1561, 4
        %v1604 = vrot.slane %v1562, 4
        %v1609 = vrot.slane %v1569, 4
        %v1610 = vrot.slane %v1570, 4
        %v1615 = vrot.slane %v1585, 4
        %v1616 = vrot.slane %v1586, 4
        %v1619 = vsel %vm566, %v1537, %v1597
        %v1620 = vsel %vm566, %v1538, %v1598
        %v1621 = vsel %vm566, %v1553, %v1603
        %v1622 = vsel %vm566, %v1554, %v1604
        %v1623 = vsel %vm566, %v1176, %v1609
        %v1624 = vsel %vm566, %v1178, %v1610
        %v1625 = vsel %vm566, %v1577, %v1615
        %v1626 = vsel %vm566, %v1578, %v1616
        %v1628 = vsel %vm566, %v1593, 0
        %v1631 = vsel %vm566, %v1594, 0
        %1633 = vmatprep.subr.mxu0 0.0
        %1634 = vmatpush1.msra.mxu0 0.0
        %1635 = vmatprep.subr.mxu0 0.0
        %1636 = vmatpush1.msra.mxu0 0.0
        %1637 = vmatprep.subr.mxu0 0.0
        %1638 = vmatpush1.msra.mxu0 0.0
        %1639 = vmatprep.subr.mxu0 0.0
        %1640 = vmatpush1.msra.mxu0 0.0
        %1641 = vmatprep.subr.mxu0 0.0
        %1642 = vmatpush1.msra.mxu0 0.0
        %1643 = vmatprep.subr.mxu0 0.0
        %1644 = vmatpush1.msra.mxu0 0.0
        %1645 = vmatprep.subr.mxu0 0.0
        %1646 = vmatpush1.msra.mxu0 0.0
        %1647 = vmatprep.subr.mxu0 0.0
        %1648 = vmatpush1.msra.mxu0 0.0
        %1649 = vmatprep.subr.mxu0 0.0
        %1650 = vmatpush1.msra.mxu0 0.0
        %1651 = vmatprep.subr.mxu0 0.0
        %1652 = vmatpush1.msra.mxu0 0.0
        %1653 = vmatprep.subr.mxu0 0.0
        %1654 = vmatpush1.msra.mxu0 0.0
        %1655 = vmatprep.subr.mxu0 %v1631
        %1656 = vmatpush1.msra.mxu0 %v1628
        %1657 = vmatprep.subr.mxu0 %v1626
        %1658 = vmatpush1.msra.mxu0 %v1625
        %1659 = vmatprep.subr.mxu0 %v1624
        %1660 = vmatpush1.msra.mxu0 %v1623
        %1661 = vmatprep.subr.mxu0 %v1622
        %1662 = vmatpush1.msra.mxu0 %v1621
        %1663 = vmatprep.subr.mxu0 %v1620
        %1664 = vmatpush1.msra.mxu0 %v1619
        %1665 = vmatprep.subr.mxu0 0.0
        %1666 = vmatpush2.msra.mxu0 0.0
        %1667 = vmatprep.subr.mxu0 0.0
        %1668 = vmatpush2.msra.mxu0 0.0
        %1669 = vmatprep.subr.mxu0 0.0
        %1670 = vmatpush2.msra.mxu0 0.0
        %1671 = vmatprep.subr.mxu0 0.0
        %1672 = vmatpush2.msra.mxu0 0.0
        %1673 = vmatprep.subr.mxu0 0.0
        %1674 = vmatpush2.msra.mxu0 0.0
        %1675 = vmatprep.subr.mxu0 0.0
        %1676 = vmatpush2.msra.mxu0 0.0
        %1677 = vmatprep.subr.mxu0 0.0
        %1678 = vmatpush2.msra.mxu0 0.0
        %1679 = vmatprep.subr.mxu0 0.0
        %1680 = vmatpush2.msra.mxu0 0.0
        %1681 = vmatprep.subr.mxu0 0.0
        %1682 = vmatpush2.msra.mxu0 0.0
        %1683 = vmatprep.subr.mxu0 0.0
        %1684 = vmatpush2.msra.mxu0 0.0
        %1685 = vmatprep.subr.mxu0 0.0
        %1686 = vmatpush2.msra.mxu0 0.0
        %1687 = vmatprep.subr.mxu0 0.0
        %1688 = vmatpush2.msra.mxu0 0.0
        %1689 = vmatprep.subr.mxu0 0.0
        %1690 = vmatpush2.msra.mxu0 0.0
        %1691 = vmatprep.subr.mxu0 0.0
        %1692 = vmatpush2.msra.mxu0 0.0
        %1693 = vmatprep.subr.mxu0 0.0
        %1694 = vmatpush2.msra.mxu0 0.0
        %1695 = vmatprep.subr.mxu0 0.0
        %1696 = vmatpush2.msra.mxu0 0.0
        %1697 = vmatprep.mubr.f32.mxu0 0.0
        %1698 = vmatmul.mubr.f32.gmra.mxu0 %v1030
        %v1699 = vpop.f32.mrf.mxu0
        %v1700 = vadd.f32 %v475, %v1699
        %v1701 = vpop.f32.mrf.mxu0
        %v1702 = vadd.f32 %v475, %v1701
        %1703 = vdwg.mxu0
        %v1704 = vsel %vm566, %v1700, 0.0
        %v1705 = vsel %vm566, %v1702, 0.0
        %v1706 = vadd.f32 %v1704, %v1705
        %1707 = vadd.xlane.f32.xlu0 %v1706
        %v1708 = vpop.xlane.xlu0 %1707
        %v1709 = vmul.f32 %v1708, %v811
        %v1710 = vsel %vm566, %v1709, -inf
        %v1711 = vrot.slane %v1710, 4
        %v1712 = vmax.f32 %v1710, %v1711
        %v1713 = vrot.slane %v1712, 2
        %v1714 = vmax.f32 %v1712, %v1713
        %v1715 = vrot.slane %v1714, 1
        %v1716 = vmax.f32 %v1714, %v1715
        %v1717 = vsub.f32 %v1709, %v1716
        %v1718 = vmul.f32 %v1717, 1.442695
        %v1719 = vpow.pop %v1718
        %v1720 = vsel %vm566, %v1719, 0.0
        %v1721 = vrot.slane %v1720, 4
        %v1722 = vadd.f32 %v1720, %v1721
        %v1723 = vrot.slane %v1722, 2
        %v1724 = vadd.f32 %v1722, %v1723
        %v1725 = vrot.slane %v1724, 1
        %v1726 = vadd.f32 %v1724, %v1725
        %v1727 = vrcp.pop %v1726
        %v1728 = vmul.f32 %v1719, %v1727
        %v1729 = vmul.f32 %v486, %v1700
        %v1730 = vmul.f32 %v486, %v1702
        %v1732 = vcombine.high %v1530, %v1530
        %v1734 = vmul.f32 %v1728, %v1530
        %v1735 = vmul.f32 %v1728, %v1732
        %v1736 = vadd.f32 %v1729, %v1734
        %v1737 = vadd.f32 %v1730, %v1735
        %v1738 = vsel %vm566, %v1736, 0.0
        %v1739 = vrot.slane %v1738, 4
        %v1740 = vadd.f32 %v1738, %v1739
        %v1741 = vrot.slane %v1740, 2
        %v1742 = vadd.f32 %v1740, %v1741
        %v1743 = vrot.slane %v1742, 1
        %v1744 = vadd.f32 %v1742, %v1743
        %v1745 = vsel %vm566, %v1737, 0.0
        %v1746 = vrot.slane %v1745, 4
        %v1747 = vadd.f32 %v1745, %v1746
        %v1748 = vrot.slane %v1747, 2
        %v1749 = vadd.f32 %v1747, %v1748
        %v1750 = vrot.slane %v1749, 1
        %v1751 = vadd.f32 %v1749, %v1750
        %v1752 = vxor.u32 %v1744, 2147483648
        %v1753 = vxor.u32 %v1751, 2147483648
        %v1754 = vmul.f32 %v1752, 1.442695
        %v1755 = vpow.pop %v1754
        %v1756 = vmul.f32 %v1753, 1.442695
        %v1757 = vpow.pop %v1756
        %v1758 = vadd.f32 %v1755, 1.0
        %v1759 = vadd.f32 %v1757, 1.0
        %v1760 = vrcp.pop %v1758
        %v1761 = vmul.f32 1.0, %v1760
        %v1762 = vrcp.pop %v1759
        %v1763 = vmul.f32 1.0, %v1762
        %v1766 = vcombine.low %v1761, %v1763
        %v1768 = vmul.f32 %v1176, %v1766
        %s1769 = scalar_lea.vmem %s409, 8 [#allocation2]
        %1770 = vst [vmem:[%s1769] sm:$0xff] %v1768
        %s1771 = scalar_lea.vmem %s415, 16
        %v1772 = vld [vmem:[%s1771] sm:$0xff]
        %v1774 = vcombine.high %v1772, %v1772
        %1776 = vmatprep.subr.mxu0 0.0
        %1777 = vmatpush1.msra.mxu0 %v433
        %1778 = vmatprep.subr.mxu0 0.0
        %1779 = vmatpush1.msra.mxu0 %v432
        %1780 = vmatprep.subr.mxu0 0.0
        %1781 = vmatpush1.msra.mxu0 %v431
        %1782 = vmatprep.subr.mxu0 0.0
        %1783 = vmatpush1.msra.mxu0 %v430
        %1784 = vmatprep.subr.mxu0 0.0
        %1785 = vmatpush1.msra.mxu0 %v429
        %1786 = vmatprep.subr.mxu0 0.0
        %1787 = vmatpush1.msra.mxu0 %v428
        %1788 = vmatprep.subr.mxu0 0.0
        %1789 = vmatpush1.msra.mxu0 %v427
        %1790 = vmatprep.subr.mxu0 0.0
        %1791 = vmatpush1.msra.mxu0 %v426
        %1792 = vmatprep.subr.mxu0 0.0
        %1793 = vmatpush1.msra.mxu0 %v425
        %1794 = vmatprep.subr.mxu0 0.0
        %1795 = vmatpush1.msra.mxu0 %v424
        %1796 = vmatprep.subr.mxu0 0.0
        %1797 = vmatpush1.msra.mxu0 %v423
        %1798 = vmatprep.subr.mxu0 0.0
        %1799 = vmatpush1.msra.mxu0 %v422
        %1800 = vmatprep.subr.mxu0 0.0
        %1801 = vmatpush1.msra.mxu0 %v421
        %1802 = vmatprep.subr.mxu0 0.0
        %1803 = vmatpush1.msra.mxu0 %v420
        %1804 = vmatprep.subr.mxu0 0.0
        %1805 = vmatpush1.msra.mxu0 %v419
        %1806 = vmatprep.subr.mxu0 0.0
        %1807 = vmatpush1.msra.mxu0 %v418
        %1808 = vmatprep.subr.mxu0 0.0
        %1809 = vmatpush2.msra.mxu0 %v449
        %1810 = vmatprep.subr.mxu0 0.0
        %1811 = vmatpush2.msra.mxu0 %v448
        %1812 = vmatprep.subr.mxu0 0.0
        %1813 = vmatpush2.msra.mxu0 %v447
        %1814 = vmatprep.subr.mxu0 0.0
        %1815 = vmatpush2.msra.mxu0 %v446
        %1816 = vmatprep.subr.mxu0 0.0
        %1817 = vmatpush2.msra.mxu0 %v445
        %1818 = vmatprep.subr.mxu0 0.0
        %1819 = vmatpush2.msra.mxu0 %v444
        %1820 = vmatprep.subr.mxu0 0.0
        %1821 = vmatpush2.msra.mxu0 %v443
        %1822 = vmatprep.subr.mxu0 0.0
        %1823 = vmatpush2.msra.mxu0 %v442
        %1824 = vmatprep.subr.mxu0 0.0
        %1825 = vmatpush2.msra.mxu0 %v441
        %1826 = vmatprep.subr.mxu0 0.0
        %1827 = vmatpush2.msra.mxu0 %v440
        %1828 = vmatprep.subr.mxu0 0.0
        %1829 = vmatpush2.msra.mxu0 %v439
        %1830 = vmatprep.subr.mxu0 0.0
        %1831 = vmatpush2.msra.mxu0 %v438
        %1832 = vmatprep.subr.mxu0 0.0
        %1833 = vmatpush2.msra.mxu0 %v437
        %1834 = vmatprep.subr.mxu0 0.0
        %1835 = vmatpush2.msra.mxu0 %v436
        %1836 = vmatprep.subr.mxu0 0.0
        %1837 = vmatpush2.msra.mxu0 %v435
        %1838 = vmatprep.subr.mxu0 0.0
        %1839 = vmatpush2.msra.mxu0 %v434
        %1840 = vmatprep.mubr.f32.mxu0 %v1774
        %1841 = vmatmul.mubr.f32.gmra.mxu0 %v1772
        %v1842 = vpop.f32.mrf.mxu0
        %v1843 = vadd.f32 0.0, %v1842
        %v1844 = vpop.f32.mrf.mxu0
        %1845 = vdwg.mxu0
        %v1847 = vsel %vm566, %v1843, 0
        %1849 = vmatprep.subr.mxu0 0.0
        %1850 = vmatpush1.msra.mxu0 0.0
        %1851 = vmatprep.subr.mxu0 0.0
        %1852 = vmatpush1.msra.mxu0 0.0
        %1853 = vmatprep.subr.mxu0 0.0
        %1854 = vmatpush1.msra.mxu0 0.0
        %1855 = vmatprep.subr.mxu0 0.0
        %1856 = vmatpush1.msra.mxu0 0.0
        %1857 = vmatprep.subr.mxu0 0.0
        %1858 = vmatpush1.msra.mxu0 0.0
        %1859 = vmatprep.subr.mxu0 0.0
        %1860 = vmatpush1.msra.mxu0 0.0
        %1861 = vmatprep.subr.mxu0 0.0
        %1862 = vmatpush1.msra.mxu0 0.0
        %1863 = vmatprep.subr.mxu0 0.0
        %1864 = vmatpush1.msra.mxu0 0.0
        %1865 = vmatprep.subr.mxu0 0.0
        %1866 = vmatpush1.msra.mxu0 0.0
        %1867 = vmatprep.subr.mxu0 0.0
        %1868 = vmatpush1.msra.mxu0 0.0
        %1869 = vmatprep.subr.mxu0 0.0
        %1870 = vmatpush1.msra.mxu0 0.0
        %1871 = vmatprep.subr.mxu0 0.0
        %1872 = vmatpush1.msra.mxu0 0.0
        %1873 = vmatprep.subr.mxu0 0.0
        %1874 = vmatpush1.msra.mxu0 0.0
        %1875 = vmatprep.subr.mxu0 0.0
        %1876 = vmatpush1.msra.mxu0 0.0
        %1877 = vmatprep.subr.mxu0 0.0
        %1878 = vmatpush1.msra.mxu0 0.0
        %1879 = vmatprep.subr.mxu0 0.0
        %1880 = vmatpush1.msra.mxu0 %v1847
        %1881 = vmatprep.subr.mxu0 0.0
        %1882 = vmatpush2.msra.mxu0 0.0
        %1883 = vmatprep.subr.mxu0 0.0
        %1884 = vmatpush2.msra.mxu0 0.0
        %1885 = vmatprep.subr.mxu0 0.0
        %1886 = vmatpush2.msra.mxu0 0.0
        %1887 = vmatprep.subr.mxu0 0.0
        %1888 = vmatpush2.msra.mxu0 0.0
        %1889 = vmatprep.subr.mxu0 0.0
        %1890 = vmatpush2.msra.mxu0 0.0
        %1891 = vmatprep.subr.mxu0 0.0
        %1892 = vmatpush2.msra.mxu0 0.0
        %1893 = vmatprep.subr.mxu0 0.0
        %1894 = vmatpush2.msra.mxu0 0.0
        %1895 = vmatprep.subr.mxu0 0.0
        %1896 = vmatpush2.msra.mxu0 0.0
        %1897 = vmatprep.subr.mxu0 0.0
        %1898 = vmatpush2.msra.mxu0 0.0
        %1899 = vmatprep.subr.mxu0 0.0
        %1900 = vmatpush2.msra.mxu0 0.0
        %1901 = vmatprep.subr.mxu0 0.0
        %1902 = vmatpush2.msra.mxu0 0.0
        %1903 = vmatprep.subr.mxu0 0.0
        %1904 = vmatpush2.msra.mxu0 0.0
        %1905 = vmatprep.subr.mxu0 0.0
        %1906 = vmatpush2.msra.mxu0 0.0
        %1907 = vmatprep.subr.mxu0 0.0
        %1908 = vmatpush2.msra.mxu0 0.0
        %1909 = vmatprep.subr.mxu0 0.0
        %1910 = vmatpush2.msra.mxu0 0.0
        %1911 = vmatprep.subr.mxu0 0.0
        %1912 = vmatpush2.msra.mxu0 0.0
        %1913 = vmatprep.mubr.f32.mxu0 0.0
        %1914 = vmatmul.mubr.f32.gmra.mxu0 %v564
        %v1915 = vpop.f32.mrf.mxu0
        %v1916 = vadd.f32 %v469, %v1915
        %v1917 = vpop.f32.mrf.mxu0
        %1918 = vdwg.mxu0
        %v1919 = vxor.u32 %v1916, 2147483648
        %v1920 = vmul.f32 %v1919, 1.442695
        %v1921 = vpow.pop %v1920
        %v1922 = vadd.f32 %v1921, 1.0
        %v1923 = vrcp.pop %v1922
        %v1924 = vmul.f32 1.0, %v1923
        %v1926 = vsel %vm646, %v1924, 0
        %1928 = vmatprep.subr.mxu0 0.0
        %1929 = vmatpush1.msra.mxu0 0.0
        %1930 = vmatprep.subr.mxu0 0.0
        %1931 = vmatpush1.msra.mxu0 0.0
        %1932 = vmatprep.subr.mxu0 0.0
        %1933 = vmatpush1.msra.mxu0 0.0
        %1934 = vmatprep.subr.mxu0 0.0
        %1935 = vmatpush1.msra.mxu0 0.0
        %1936 = vmatprep.subr.mxu0 0.0
        %1937 = vmatpush1.msra.mxu0 0.0
        %1938 = vmatprep.subr.mxu0 0.0
        %1939 = vmatpush1.msra.mxu0 0.0
        %1940 = vmatprep.subr.mxu0 0.0
        %1941 = vmatpush1.msra.mxu0 0.0
        %1942 = vmatprep.subr.mxu0 0.0
        %1943 = vmatpush1.msra.mxu0 0.0
        %1944 = vmatprep.subr.mxu0 0.0
        %1945 = vmatpush1.msra.mxu0 0.0
        %1946 = vmatprep.subr.mxu0 0.0
        %1947 = vmatpush1.msra.mxu0 0.0
        %1948 = vmatprep.subr.mxu0 0.0
        %1949 = vmatpush1.msra.mxu0 0.0
        %1950 = vmatprep.subr.mxu0 0.0
        %1951 = vmatpush1.msra.mxu0 0.0
        %1952 = vmatprep.subr.mxu0 0.0
        %1953 = vmatpush1.msra.mxu0 0.0
        %1954 = vmatprep.subr.mxu0 0.0
        %1955 = vmatpush1.msra.mxu0 0.0
        %1956 = vmatprep.subr.mxu0 %v453
        %1957 = vmatpush1.msra.mxu0 %v452
        %1958 = vmatprep.subr.mxu0 %v451
        %1959 = vmatpush1.msra.mxu0 %v450
        %1960 = vmatprep.subr.mxu0 0.0
        %1961 = vmatpush2.msra.mxu0 0.0
        %1962 = vmatprep.subr.mxu0 0.0
        %1963 = vmatpush2.msra.mxu0 0.0
        %1964 = vmatprep.subr.mxu0 0.0
        %1965 = vmatpush2.msra.mxu0 0.0
        %1966 = vmatprep.subr.mxu0 0.0
        %1967 = vmatpush2.msra.mxu0 0.0
        %1968 = vmatprep.subr.mxu0 0.0
        %1969 = vmatpush2.msra.mxu0 0.0
        %1970 = vmatprep.subr.mxu0 0.0
        %1971 = vmatpush2.msra.mxu0 0.0
        %1972 = vmatprep.subr.mxu0 0.0
        %1973 = vmatpush2.msra.mxu0 0.0
        %1974 = vmatprep.subr.mxu0 0.0
        %1975 = vmatpush2.msra.mxu0 0.0
        %1976 = vmatprep.subr.mxu0 0.0
        %1977 = vmatpush2.msra.mxu0 0.0
        %1978 = vmatprep.subr.mxu0 0.0
        %1979 = vmatpush2.msra.mxu0 0.0
        %1980 = vmatprep.subr.mxu0 0.0
        %1981 = vmatpush2.msra.mxu0 0.0
        %1982 = vmatprep.subr.mxu0 0.0
        %1983 = vmatpush2.msra.mxu0 0.0
        %1984 = vmatprep.subr.mxu0 0.0
        %1985 = vmatpush2.msra.mxu0 0.0
        %1986 = vmatprep.subr.mxu0 0.0
        %1987 = vmatpush2.msra.mxu0 0.0
        %1988 = vmatprep.subr.mxu0 0.0
        %1989 = vmatpush2.msra.mxu0 0.0
        %1990 = vmatprep.subr.mxu0 0.0
        %1991 = vmatpush2.msra.mxu0 0.0
        %1992 = vmatprep.mubr.f32.mxu0 0.0
        %1993 = vmatmul.mubr.f32.gmra.mxu0 %v1926
        %v1994 = vpop.f32.mrf.mxu0
        %v1995 = vadd.f32 0.0, %v1994
        %v1996 = vpop.f32.mrf.mxu0
        %v1997 = vadd.f32 0.0, %v1996
        %1998 = vdwg.mxu0
        %1999 = vrot.lane.b32.xlu0 %v1924, 112
        %v2000 = vpop.permute.xlu0 %1999
        %v2001 = vsel %vm646, %v2000, 0
        %2003 = vmatprep.subr.mxu0 0.0
        %2004 = vmatpush1.msra.mxu0 0.0
        %2005 = vmatprep.subr.mxu0 0.0
        %2006 = vmatpush1.msra.mxu0 0.0
        %2007 = vmatprep.subr.mxu0 0.0
        %2008 = vmatpush1.msra.mxu0 0.0
        %2009 = vmatprep.subr.mxu0 0.0
        %2010 = vmatpush1.msra.mxu0 0.0
        %2011 = vmatprep.subr.mxu0 0.0
        %2012 = vmatpush1.msra.mxu0 0.0
        %2013 = vmatprep.subr.mxu0 0.0
        %2014 = vmatpush1.msra.mxu0 0.0
        %2015 = vmatprep.subr.mxu0 0.0
        %2016 = vmatpush1.msra.mxu0 0.0
        %2017 = vmatprep.subr.mxu0 0.0
        %2018 = vmatpush1.msra.mxu0 0.0
        %2019 = vmatprep.subr.mxu0 0.0
        %2020 = vmatpush1.msra.mxu0 0.0
        %2021 = vmatprep.subr.mxu0 0.0
        %2022 = vmatpush1.msra.mxu0 0.0
        %2023 = vmatprep.subr.mxu0 0.0
        %2024 = vmatpush1.msra.mxu0 0.0
        %2025 = vmatprep.subr.mxu0 0.0
        %2026 = vmatpush1.msra.mxu0 0.0
        %2027 = vmatprep.subr.mxu0 0.0
        %2028 = vmatpush1.msra.mxu0 0.0
        %2029 = vmatprep.subr.mxu0 0.0
        %2030 = vmatpush1.msra.mxu0 0.0
        %2031 = vmatprep.subr.mxu0 %v457
        %2032 = vmatpush1.msra.mxu0 %v456
        %2033 = vmatprep.subr.mxu0 %v455
        %2034 = vmatpush1.msra.mxu0 %v454
        %2035 = vmatprep.subr.mxu0 0.0
        %2036 = vmatpush2.msra.mxu0 0.0
        %2037 = vmatprep.subr.mxu0 0.0
        %2038 = vmatpush2.msra.mxu0 0.0
        %2039 = vmatprep.subr.mxu0 0.0
        %2040 = vmatpush2.msra.mxu0 0.0
        %2041 = vmatprep.subr.mxu0 0.0
        %2042 = vmatpush2.msra.mxu0 0.0
        %2043 = vmatprep.subr.mxu0 0.0
        %2044 = vmatpush2.msra.mxu0 0.0
        %2045 = vmatprep.subr.mxu0 0.0
        %2046 = vmatpush2.msra.mxu0 0.0
        %2047 = vmatprep.subr.mxu0 0.0
        %2048 = vmatpush2.msra.mxu0 0.0
        %2049 = vmatprep.subr.mxu0 0.0
        %2050 = vmatpush2.msra.mxu0 0.0
        %2051 = vmatprep.subr.mxu0 0.0
        %2052 = vmatpush2.msra.mxu0 0.0
        %2053 = vmatprep.subr.mxu0 0.0
        %2054 = vmatpush2.msra.mxu0 0.0
        %2055 = vmatprep.subr.mxu0 0.0
        %2056 = vmatpush2.msra.mxu0 0.0
        %2057 = vmatprep.subr.mxu0 0.0
        %2058 = vmatpush2.msra.mxu0 0.0
        %2059 = vmatprep.subr.mxu0 0.0
        %2060 = vmatpush2.msra.mxu0 0.0
        %2061 = vmatprep.subr.mxu0 0.0
        %2062 = vmatpush2.msra.mxu0 0.0
        %2063 = vmatprep.subr.mxu0 0.0
        %2064 = vmatpush2.msra.mxu0 0.0
        %2065 = vmatprep.subr.mxu0 0.0
        %2066 = vmatpush2.msra.mxu0 0.0
        %2067 = vmatprep.mubr.f32.mxu0 0.0
        %2068 = vmatmul.mubr.f32.gmra.mxu0 %v2001
        %v2069 = vpop.f32.mrf.mxu0
        %v2070 = vadd.f32 0.0, %v2069
        %v2071 = vpop.f32.mrf.mxu0
        %v2072 = vadd.f32 0.0, %v2071
        %2073 = vdwg.mxu0
        %v2074 = vmul.f32 %v1995, %v2070
        %v2075 = vmul.f32 %v1997, %v2072
        %v2078 = vcombine.low %v2074, %v2075
        %v2080 = vmul.f32 %v1772, %v2078
        %v2082 = vcombine.high %v2080, %v2080
        %v2084 = vsel %vm566, %v2080, 0.0
        %v2085 = vsel %vm566, %v2082, 0.0
        %v2086 = vadd.f32 %v2084, %v2085
        %2087 = vadd.xlane.f32.xlu0 %v2086
        %v2088 = vpop.xlane.xlu0 %2087
        %v2089 = vmul.f32 %v2088, %v811
        %v2092 = vunpack.c.l.s4 839922192
        %v2093 = vunpack.c.0.s8 %v2092
        %v2094 = vlaneseq
        %v2095 = vshrl.u32 %v2094, 7
        %v2096 = vsub.s32 %v2093, %v2095
        %v2097 = vrot.slane %v2089, %v2096
        %v2099 = vsub.f32 %v2080, %v2097
        %v2100 = vmul.f32 %v2099, %v2099
        %v2102 = vcombine.high %v2100, %v2100
        %v2104 = vsel %vm566, %v2100, 0.0
        %v2105 = vsel %vm566, %v2102, 0.0
        %v2106 = vadd.f32 %v2104, %v2105
        %2107 = vadd.xlane.f32.xlu0 %v2106
        %v2108 = vpop.xlane.xlu0 %2107
        %v2109 = vmul.f32 %v2108, %v811
        %v2110 = vadd.f32 %v2109, 1e-05
        %v2111 = vrsqrt.pop %v2110
        %v2112 = vmul.f32 %v2111, %v464
        %2114 = vset.pattern.permute.xlu0 0
        %2115 = vperm.xlu0 %2114, %v2112
        %v2116 = vpop.permute.xlu0 %2115
        %v2118 = vunpack.c.l.s4 839922192
        %v2119 = vunpack.c.0.s8 %v2118
        %v2120 = vlaneseq
        %v2121 = vshrl.u32 %v2120, 7
        %v2122 = vsub.s32 %v2119, %v2121
        %v2123 = vrot.slane %v2116, %v2122
        %v2125 = vmul.f32 %v2099, %v2123
        %v2126 = vadd.f32 %v2125, %v855
        %2127 = vrot.lane.b32.xlu0 %v1772, 17
        %v2128 = vpop.permute.xlu0 %2127
        %2129 = vrot.lane.b32.xlu0 %v1774, 17
        %v2130 = vpop.permute.xlu0 %2129
        %v2131 = vsel %vm864, %v2128, %v2130
        %v2132 = vsel %vm864, %v2130, %v2128
        %v2133 = vmul.f32 %v2132, %v870
        %v2134 = vmul.f32 %v2131, %v874
        %2135 = vrot.lane.b32.xlu0 %v1772, 16
        %v2136 = vpop.permute.xlu0 %2135
        %2137 = vrot.lane.b32.xlu0 %v1774, 16
        %v2138 = vpop.permute.xlu0 %2137
        %v2139 = vsel %vm881, %v2136, %v2138
        %v2140 = vsel %vm881, %v2138, %v2136
        %v2141 = vmul.f32 %v2140, %v887
        %v2142 = vmul.f32 %v2139, %v891
        %2143 = vrot.lane.b32.xlu0 %v1772, 15
        %v2144 = vpop.permute.xlu0 %2143
        %2145 = vrot.lane.b32.xlu0 %v1774, 15
        %v2146 = vpop.permute.xlu0 %2145
        %v2147 = vsel %vm898, %v2144, %v2146
        %v2148 = vsel %vm898, %v2146, %v2144
        %v2149 = vmul.f32 %v2148, %v904
        %v2150 = vmul.f32 %v2147, %v908
        %2151 = vrot.lane.b32.xlu0 %v1772, 1
        %v2152 = vpop.permute.xlu0 %2151
        %2153 = vrot.lane.b32.xlu0 %v1774, 1
        %v2154 = vpop.permute.xlu0 %2153
        %v2155 = vsel %vm915, %v2152, %v2154
        %v2156 = vsel %vm915, %v2154, %v2152
        %v2157 = vmul.f32 %v2156, %v921
        %v2158 = vmul.f32 %v2155, %v925
        %2159 = vrot.lane.b32.xlu0 %v1772, 127
        %v2160 = vpop.permute.xlu0 %2159
        %2161 = vrot.lane.b32.xlu0 %v1774, 127
        %v2162 = vpop.permute.xlu0 %2161
        %v2163 = vsel %vm932, %v2160, %v2162
        %v2164 = vsel %vm932, %v2162, %v2160
        %v2165 = vmul.f32 %v2163, %v938
        %v2166 = vmul.f32 %v2164, %v942
        %2167 = vrot.lane.b32.xlu0 %v1772, 113
        %v2168 = vpop.permute.xlu0 %2167
        %2169 = vrot.lane.b32.xlu0 %v1774, 113
        %v2170 = vpop.permute.xlu0 %2169
        %v2171 = vsel %vm949, %v2168, %v2170
        %v2172 = vsel %vm949, %v2170, %v2168
        %v2173 = vmul.f32 %v2171, %v955
        %v2174 = vmul.f32 %v2172, %v959
        %2175 = vrot.lane.b32.xlu0 %v1772, 112
        %v2176 = vpop.permute.xlu0 %2175
        %2177 = vrot.lane.b32.xlu0 %v1774, 112
        %v2178 = vpop.permute.xlu0 %2177
        %v2179 = vsel %vm966, %v2176, %v2178
        %v2180 = vsel %vm966, %v2178, %v2176
        %v2181 = vmul.f32 %v2179, %v972
        %v2182 = vmul.f32 %v2180, %v976
        %2183 = vrot.lane.b32.xlu0 %v1772, 111
        %v2184 = vpop.permute.xlu0 %2183
        %2185 = vrot.lane.b32.xlu0 %v1774, 111
        %v2186 = vpop.permute.xlu0 %2185
        %v2187 = vsel %vm983, %v2184, %v2186
        %v2188 = vsel %vm983, %v2186, %v2184
        %v2189 = vmul.f32 %v2187, %v989
        %v2190 = vmul.f32 %v2188, %v993
        %v2193 = vrot.slane %v2141, 4
        %v2194 = vrot.slane %v2142, 4
        %v2199 = vrot.slane %v2157, 4
        %v2200 = vrot.slane %v2158, 4
        %v2205 = vrot.slane %v2165, 4
        %v2206 = vrot.slane %v2166, 4
        %v2211 = vrot.slane %v2181, 4
        %v2212 = vrot.slane %v2182, 4
        %v2215 = vsel %vm566, %v2133, %v2193
        %v2216 = vsel %vm566, %v2134, %v2194
        %v2217 = vsel %vm566, %v2149, %v2199
        %v2218 = vsel %vm566, %v2150, %v2200
        %v2219 = vsel %vm566, %v1772, %v2205
        %v2220 = vsel %vm566, %v1774, %v2206
        %v2221 = vsel %vm566, %v2173, %v2211
        %v2222 = vsel %vm566, %v2174, %v2212
        %v2224 = vsel %vm566, %v2189, 0
        %v2227 = vsel %vm566, %v2190, 0
        %2229 = vmatprep.subr.mxu0 0.0
        %2230 = vmatpush1.msra.mxu0 0.0
        %2231 = vmatprep.subr.mxu0 0.0
        %2232 = vmatpush1.msra.mxu0 0.0
        %2233 = vmatprep.subr.mxu0 0.0
        %2234 = vmatpush1.msra.mxu0 0.0
        %2235 = vmatprep.subr.mxu0 0.0
        %2236 = vmatpush1.msra.mxu0 0.0
        %2237 = vmatprep.subr.mxu0 0.0
        %2238 = vmatpush1.msra.mxu0 0.0
        %2239 = vmatprep.subr.mxu0 0.0
        %2240 = vmatpush1.msra.mxu0 0.0
        %2241 = vmatprep.subr.mxu0 0.0
        %2242 = vmatpush1.msra.mxu0 0.0
        %2243 = vmatprep.subr.mxu0 0.0
        %2244 = vmatpush1.msra.mxu0 0.0
        %2245 = vmatprep.subr.mxu0 0.0
        %2246 = vmatpush1.msra.mxu0 0.0
        %2247 = vmatprep.subr.mxu0 0.0
        %2248 = vmatpush1.msra.mxu0 0.0
        %2249 = vmatprep.subr.mxu0 0.0
        %2250 = vmatpush1.msra.mxu0 0.0
        %2251 = vmatprep.subr.mxu0 %v2227
        %2252 = vmatpush1.msra.mxu0 %v2224
        %2253 = vmatprep.subr.mxu0 %v2222
        %2254 = vmatpush1.msra.mxu0 %v2221
        %2255 = vmatprep.subr.mxu0 %v2220
        %2256 = vmatpush1.msra.mxu0 %v2219
        %2257 = vmatprep.subr.mxu0 %v2218
        %2258 = vmatpush1.msra.mxu0 %v2217
        %2259 = vmatprep.subr.mxu0 %v2216
        %2260 = vmatpush1.msra.mxu0 %v2215
        %2261 = vmatprep.subr.mxu0 0.0
        %2262 = vmatpush2.msra.mxu0 0.0
        %2263 = vmatprep.subr.mxu0 0.0
        %2264 = vmatpush2.msra.mxu0 0.0
        %2265 = vmatprep.subr.mxu0 0.0
        %2266 = vmatpush2.msra.mxu0 0.0
        %2267 = vmatprep.subr.mxu0 0.0
        %2268 = vmatpush2.msra.mxu0 0.0
        %2269 = vmatprep.subr.mxu0 0.0
        %2270 = vmatpush2.msra.mxu0 0.0
        %2271 = vmatprep.subr.mxu0 0.0
        %2272 = vmatpush2.msra.mxu0 0.0
        %2273 = vmatprep.subr.mxu0 0.0
        %2274 = vmatpush2.msra.mxu0 0.0
        %2275 = vmatprep.subr.mxu0 0.0
        %2276 = vmatpush2.msra.mxu0 0.0
        %2277 = vmatprep.subr.mxu0 0.0
        %2278 = vmatpush2.msra.mxu0 0.0
        %2279 = vmatprep.subr.mxu0 0.0
        %2280 = vmatpush2.msra.mxu0 0.0
        %2281 = vmatprep.subr.mxu0 0.0
        %2282 = vmatpush2.msra.mxu0 0.0
        %2283 = vmatprep.subr.mxu0 0.0
        %2284 = vmatpush2.msra.mxu0 0.0
        %2285 = vmatprep.subr.mxu0 0.0
        %2286 = vmatpush2.msra.mxu0 0.0
        %2287 = vmatprep.subr.mxu0 0.0
        %2288 = vmatpush2.msra.mxu0 0.0
        %2289 = vmatprep.subr.mxu0 0.0
        %2290 = vmatpush2.msra.mxu0 0.0
        %2291 = vmatprep.subr.mxu0 0.0
        %2292 = vmatpush2.msra.mxu0 0.0
        %2293 = vmatprep.mubr.f32.mxu0 0.0
        %2294 = vmatmul.mubr.f32.gmra.mxu0 %v1030
        %v2295 = vpop.f32.mrf.mxu0
        %v2296 = vadd.f32 %v475, %v2295
        %v2297 = vpop.f32.mrf.mxu0
        %v2298 = vadd.f32 %v475, %v2297
        %2299 = vdwg.mxu0
        %v2300 = vsel %vm566, %v2296, 0.0
        %v2301 = vsel %vm566, %v2298, 0.0
        %v2302 = vadd.f32 %v2300, %v2301
        %2303 = vadd.xlane.f32.xlu0 %v2302
        %v2304 = vpop.xlane.xlu0 %2303
        %v2305 = vmul.f32 %v2304, %v811
        %v2306 = vsel %vm566, %v2305, -inf
        %v2307 = vrot.slane %v2306, 4
        %v2308 = vmax.f32 %v2306, %v2307
        %v2309 = vrot.slane %v2308, 2
        %v2310 = vmax.f32 %v2308, %v2309
        %v2311 = vrot.slane %v2310, 1
        %v2312 = vmax.f32 %v2310, %v2311
        %v2313 = vsub.f32 %v2305, %v2312
        %v2314 = vmul.f32 %v2313, 1.442695
        %v2315 = vpow.pop %v2314
        %v2316 = vsel %vm566, %v2315, 0.0
        %v2317 = vrot.slane %v2316, 4
        %v2318 = vadd.f32 %v2316, %v2317
        %v2319 = vrot.slane %v2318, 2
        %v2320 = vadd.f32 %v2318, %v2319
        %v2321 = vrot.slane %v2320, 1
        %v2322 = vadd.f32 %v2320, %v2321
        %v2323 = vrcp.pop %v2322
        %v2324 = vmul.f32 %v2315, %v2323
        %v2325 = vmul.f32 %v486, %v2296
        %v2326 = vmul.f32 %v486, %v2298
        %v2328 = vcombine.high %v2126, %v2126
        %v2330 = vmul.f32 %v2324, %v2126
        %v2331 = vmul.f32 %v2324, %v2328
        %v2332 = vadd.f32 %v2325, %v2330
        %v2333 = vadd.f32 %v2326, %v2331
        %v2334 = vsel %vm566, %v2332, 0.0
        %v2335 = vrot.slane %v2334, 4
        %v2336 = vadd.f32 %v2334, %v2335
        %v2337 = vrot.slane %v2336, 2
        %v2338 = vadd.f32 %v2336, %v2337
        %v2339 = vrot.slane %v2338, 1
        %v2340 = vadd.f32 %v2338, %v2339
        %v2341 = vsel %vm566, %v2333, 0.0
        %v2342 = vrot.slane %v2341, 4
        %v2343 = vadd.f32 %v2341, %v2342
        %v2344 = vrot.slane %v2343, 2
        %v2345 = vadd.f32 %v2343, %v2344
        %v2346 = vrot.slane %v2345, 1
        %v2347 = vadd.f32 %v2345, %v2346
        %v2348 = vxor.u32 %v2340, 2147483648
        %v2349 = vxor.u32 %v2347, 2147483648
        %v2350 = vmul.f32 %v2348, 1.442695
        %v2351 = vpow.pop %v2350
        %v2352 = vmul.f32 %v2349, 1.442695
        %v2353 = vpow.pop %v2352
        %v2354 = vadd.f32 %v2351, 1.0
        %v2355 = vadd.f32 %v2353, 1.0
        %v2356 = vrcp.pop %v2354
        %v2357 = vmul.f32 1.0, %v2356
        %v2358 = vrcp.pop %v2355
        %v2359 = vmul.f32 1.0, %v2358
        %v2362 = vcombine.low %v2357, %v2359
        %v2364 = vmul.f32 %v1772, %v2362
        %s2365 = scalar_lea.vmem %s409, 16 [#allocation2]
        %2366 = vst [vmem:[%s2365] sm:$0xff] %v2364
        %s2367 = scalar_lea.vmem %s415, 24
        %v2368 = vld [vmem:[%s2367] sm:$0xff]
        %v2370 = vcombine.high %v2368, %v2368
        %2372 = vmatprep.subr.mxu0 0.0
        %2373 = vmatpush1.msra.mxu0 %v433
        %2374 = vmatprep.subr.mxu0 0.0
        %2375 = vmatpush1.msra.mxu0 %v432
        %2376 = vmatprep.subr.mxu0 0.0
        %2377 = vmatpush1.msra.mxu0 %v431
        %2378 = vmatprep.subr.mxu0 0.0
        %2379 = vmatpush1.msra.mxu0 %v430
        %2380 = vmatprep.subr.mxu0 0.0
        %2381 = vmatpush1.msra.mxu0 %v429
        %2382 = vmatprep.subr.mxu0 0.0
        %2383 = vmatpush1.msra.mxu0 %v428
        %2384 = vmatprep.subr.mxu0 0.0
        %2385 = vmatpush1.msra.mxu0 %v427
        %2386 = vmatprep.subr.mxu0 0.0
        %2387 = vmatpush1.msra.mxu0 %v426
        %2388 = vmatprep.subr.mxu0 0.0
        %2389 = vmatpush1.msra.mxu0 %v425
        %2390 = vmatprep.subr.mxu0 0.0
        %2391 = vmatpush1.msra.mxu0 %v424
        %2392 = vmatprep.subr.mxu0 0.0
        %2393 = vmatpush1.msra.mxu0 %v423
        %2394 = vmatprep.subr.mxu0 0.0
        %2395 = vmatpush1.msra.mxu0 %v422
        %2396 = vmatprep.subr.mxu0 0.0
        %2397 = vmatpush1.msra.mxu0 %v421
        %2398 = vmatprep.subr.mxu0 0.0
        %2399 = vmatpush1.msra.mxu0 %v420
        %2400 = vmatprep.subr.mxu0 0.0
        %2401 = vmatpush1.msra.mxu0 %v419
        %2402 = vmatprep.subr.mxu0 0.0
        %2403 = vmatpush1.msra.mxu0 %v418
        %2404 = vmatprep.subr.mxu0 0.0
        %2405 = vmatpush2.msra.mxu0 %v449
        %2406 = vmatprep.subr.mxu0 0.0
        %2407 = vmatpush2.msra.mxu0 %v448
        %2408 = vmatprep.subr.mxu0 0.0
        %2409 = vmatpush2.msra.mxu0 %v447
        %2410 = vmatprep.subr.mxu0 0.0
        %2411 = vmatpush2.msra.mxu0 %v446
        %2412 = vmatprep.subr.mxu0 0.0
        %2413 = vmatpush2.msra.mxu0 %v445
        %2414 = vmatprep.subr.mxu0 0.0
        %2415 = vmatpush2.msra.mxu0 %v444
        %2416 = vmatprep.subr.mxu0 0.0
        %2417 = vmatpush2.msra.mxu0 %v443
        %2418 = vmatprep.subr.mxu0 0.0
        %2419 = vmatpush2.msra.mxu0 %v442
        %2420 = vmatprep.subr.mxu0 0.0
        %2421 = vmatpush2.msra.mxu0 %v441
        %2422 = vmatprep.subr.mxu0 0.0
        %2423 = vmatpush2.msra.mxu0 %v440
        %2424 = vmatprep.subr.mxu0 0.0
        %2425 = vmatpush2.msra.mxu0 %v439
        %2426 = vmatprep.subr.mxu0 0.0
        %2427 = vmatpush2.msra.mxu0 %v438
        %2428 = vmatprep.subr.mxu0 0.0
        %2429 = vmatpush2.msra.mxu0 %v437
        %2430 = vmatprep.subr.mxu0 0.0
        %2431 = vmatpush2.msra.mxu0 %v436
        %2432 = vmatprep.subr.mxu0 0.0
        %2433 = vmatpush2.msra.mxu0 %v435
        %2434 = vmatprep.subr.mxu0 0.0
        %2435 = vmatpush2.msra.mxu0 %v434
        %2436 = vmatprep.mubr.f32.mxu0 %v2370
        %2437 = vmatmul.mubr.f32.gmra.mxu0 %v2368
        %v2438 = vpop.f32.mrf.mxu0
        %v2439 = vadd.f32 0.0, %v2438
        %v2440 = vpop.f32.mrf.mxu0
        %2441 = vdwg.mxu0
        %v2443 = vsel %vm566, %v2439, 0
        %2445 = vmatprep.subr.mxu0 0.0
        %2446 = vmatpush1.msra.mxu0 0.0
        %2447 = vmatprep.subr.mxu0 0.0
        %2448 = vmatpush1.msra.mxu0 0.0
        %2449 = vmatprep.subr.mxu0 0.0
        %2450 = vmatpush1.msra.mxu0 0.0
        %2451 = vmatprep.subr.mxu0 0.0
        %2452 = vmatpush1.msra.mxu0 0.0
        %2453 = vmatprep.subr.mxu0 0.0
        %2454 = vmatpush1.msra.mxu0 0.0
        %2455 = vmatprep.subr.mxu0 0.0
        %2456 = vmatpush1.msra.mxu0 0.0
        %2457 = vmatprep.subr.mxu0 0.0
        %2458 = vmatpush1.msra.mxu0 0.0
        %2459 = vmatprep.subr.mxu0 0.0
        %2460 = vmatpush1.msra.mxu0 0.0
        %2461 = vmatprep.subr.mxu0 0.0
        %2462 = vmatpush1.msra.mxu0 0.0
        %2463 = vmatprep.subr.mxu0 0.0
        %2464 = vmatpush1.msra.mxu0 0.0
        %2465 = vmatprep.subr.mxu0 0.0
        %2466 = vmatpush1.msra.mxu0 0.0
        %2467 = vmatprep.subr.mxu0 0.0
        %2468 = vmatpush1.msra.mxu0 0.0
        %2469 = vmatprep.subr.mxu0 0.0
        %2470 = vmatpush1.msra.mxu0 0.0
        %2471 = vmatprep.subr.mxu0 0.0
        %2472 = vmatpush1.msra.mxu0 0.0
        %2473 = vmatprep.subr.mxu0 0.0
        %2474 = vmatpush1.msra.mxu0 0.0
        %2475 = vmatprep.subr.mxu0 0.0
        %2476 = vmatpush1.msra.mxu0 %v2443
        %2477 = vmatprep.subr.mxu0 0.0
        %2478 = vmatpush2.msra.mxu0 0.0
        %2479 = vmatprep.subr.mxu0 0.0
        %2480 = vmatpush2.msra.mxu0 0.0
        %2481 = vmatprep.subr.mxu0 0.0
        %2482 = vmatpush2.msra.mxu0 0.0
        %2483 = vmatprep.subr.mxu0 0.0
        %2484 = vmatpush2.msra.mxu0 0.0
        %2485 = vmatprep.subr.mxu0 0.0
        %2486 = vmatpush2.msra.mxu0 0.0
        %2487 = vmatprep.subr.mxu0 0.0
        %2488 = vmatpush2.msra.mxu0 0.0
        %2489 = vmatprep.subr.mxu0 0.0
        %2490 = vmatpush2.msra.mxu0 0.0
        %2491 = vmatprep.subr.mxu0 0.0
        %2492 = vmatpush2.msra.mxu0 0.0
        %2493 = vmatprep.subr.mxu0 0.0
        %2494 = vmatpush2.msra.mxu0 0.0
        %2495 = vmatprep.subr.mxu0 0.0
        %2496 = vmatpush2.msra.mxu0 0.0
        %2497 = vmatprep.subr.mxu0 0.0
        %2498 = vmatpush2.msra.mxu0 0.0
        %2499 = vmatprep.subr.mxu0 0.0
        %2500 = vmatpush2.msra.mxu0 0.0
        %2501 = vmatprep.subr.mxu0 0.0
        %2502 = vmatpush2.msra.mxu0 0.0
        %2503 = vmatprep.subr.mxu0 0.0
        %2504 = vmatpush2.msra.mxu0 0.0
        %2505 = vmatprep.subr.mxu0 0.0
        %2506 = vmatpush2.msra.mxu0 0.0
        %2507 = vmatprep.subr.mxu0 0.0
        %2508 = vmatpush2.msra.mxu0 0.0
        %2509 = vmatprep.mubr.f32.mxu0 0.0
        %2510 = vmatmul.mubr.f32.gmra.mxu0 %v564
        %v2511 = vpop.f32.mrf.mxu0
        %v2512 = vadd.f32 %v469, %v2511
        %v2513 = vpop.f32.mrf.mxu0
        %2514 = vdwg.mxu0
        %v2515 = vxor.u32 %v2512, 2147483648
        %v2516 = vmul.f32 %v2515, 1.442695
        %v2517 = vpow.pop %v2516
        %v2518 = vadd.f32 %v2517, 1.0
        %v2519 = vrcp.pop %v2518
        %v2520 = vmul.f32 1.0, %v2519
        %v2522 = vsel %vm646, %v2520, 0
        %2524 = vmatprep.subr.mxu0 0.0
        %2525 = vmatpush1.msra.mxu0 0.0
        %2526 = vmatprep.subr.mxu0 0.0
        %2527 = vmatpush1.msra.mxu0 0.0
        %2528 = vmatprep.subr.mxu0 0.0
        %2529 = vmatpush1.msra.mxu0 0.0
        %2530 = vmatprep.subr.mxu0 0.0
        %2531 = vmatpush1.msra.mxu0 0.0
        %2532 = vmatprep.subr.mxu0 0.0
        %2533 = vmatpush1.msra.mxu0 0.0
        %2534 = vmatprep.subr.mxu0 0.0
        %2535 = vmatpush1.msra.mxu0 0.0
        %2536 = vmatprep.subr.mxu0 0.0
        %2537 = vmatpush1.msra.mxu0 0.0
        %2538 = vmatprep.subr.mxu0 0.0
        %2539 = vmatpush1.msra.mxu0 0.0
        %2540 = vmatprep.subr.mxu0 0.0
        %2541 = vmatpush1.msra.mxu0 0.0
        %2542 = vmatprep.subr.mxu0 0.0
        %2543 = vmatpush1.msra.mxu0 0.0
        %2544 = vmatprep.subr.mxu0 0.0
        %2545 = vmatpush1.msra.mxu0 0.0
        %2546 = vmatprep.subr.mxu0 0.0
        %2547 = vmatpush1.msra.mxu0 0.0
        %2548 = vmatprep.subr.mxu0 0.0
        %2549 = vmatpush1.msra.mxu0 0.0
        %2550 = vmatprep.subr.mxu0 0.0
        %2551 = vmatpush1.msra.mxu0 0.0
        %2552 = vmatprep.subr.mxu0 %v453
        %2553 = vmatpush1.msra.mxu0 %v452
        %2554 = vmatprep.subr.mxu0 %v451
        %2555 = vmatpush1.msra.mxu0 %v450
        %2556 = vmatprep.subr.mxu0 0.0
        %2557 = vmatpush2.msra.mxu0 0.0
        %2558 = vmatprep.subr.mxu0 0.0
        %2559 = vmatpush2.msra.mxu0 0.0
        %2560 = vmatprep.subr.mxu0 0.0
        %2561 = vmatpush2.msra.mxu0 0.0
        %2562 = vmatprep.subr.mxu0 0.0
        %2563 = vmatpush2.msra.mxu0 0.0
        %2564 = vmatprep.subr.mxu0 0.0
        %2565 = vmatpush2.msra.mxu0 0.0
        %2566 = vmatprep.subr.mxu0 0.0
        %2567 = vmatpush2.msra.mxu0 0.0
        %2568 = vmatprep.subr.mxu0 0.0
        %2569 = vmatpush2.msra.mxu0 0.0
        %2570 = vmatprep.subr.mxu0 0.0
        %2571 = vmatpush2.msra.mxu0 0.0
        %2572 = vmatprep.subr.mxu0 0.0
        %2573 = vmatpush2.msra.mxu0 0.0
        %2574 = vmatprep.subr.mxu0 0.0
        %2575 = vmatpush2.msra.mxu0 0.0
        %2576 = vmatprep.subr.mxu0 0.0
        %2577 = vmatpush2.msra.mxu0 0.0
        %2578 = vmatprep.subr.mxu0 0.0
        %2579 = vmatpush2.msra.mxu0 0.0
        %2580 = vmatprep.subr.mxu0 0.0
        %2581 = vmatpush2.msra.mxu0 0.0
        %2582 = vmatprep.subr.mxu0 0.0
        %2583 = vmatpush2.msra.mxu0 0.0
        %2584 = vmatprep.subr.mxu0 0.0
        %2585 = vmatpush2.msra.mxu0 0.0
        %2586 = vmatprep.subr.mxu0 0.0
        %2587 = vmatpush2.msra.mxu0 0.0
        %2588 = vmatprep.mubr.f32.mxu0 0.0
        %2589 = vmatmul.mubr.f32.gmra.mxu0 %v2522
        %v2590 = vpop.f32.mrf.mxu0
        %v2591 = vadd.f32 0.0, %v2590
        %v2592 = vpop.f32.mrf.mxu0
        %v2593 = vadd.f32 0.0, %v2592
        %2594 = vdwg.mxu0
        %2595 = vrot.lane.b32.xlu0 %v2520, 112
        %v2596 = vpop.permute.xlu0 %2595
        %v2597 = vsel %vm646, %v2596, 0
        %2599 = vmatprep.subr.mxu0 0.0
        %2600 = vmatpush1.msra.mxu0 0.0
        %2601 = vmatprep.subr.mxu0 0.0
        %2602 = vmatpush1.msra.mxu0 0.0
        %2603 = vmatprep.subr.mxu0 0.0
        %2604 = vmatpush1.msra.mxu0 0.0
        %2605 = vmatprep.subr.mxu0 0.0
        %2606 = vmatpush1.msra.mxu0 0.0
        %2607 = vmatprep.subr.mxu0 0.0
        %2608 = vmatpush1.msra.mxu0 0.0
        %2609 = vmatprep.subr.mxu0 0.0
        %2610 = vmatpush1.msra.mxu0 0.0
        %2611 = vmatprep.subr.mxu0 0.0
        %2612 = vmatpush1.msra.mxu0 0.0
        %2613 = vmatprep.subr.mxu0 0.0
        %2614 = vmatpush1.msra.mxu0 0.0
        %2615 = vmatprep.subr.mxu0 0.0
        %2616 = vmatpush1.msra.mxu0 0.0
        %2617 = vmatprep.subr.mxu0 0.0
        %2618 = vmatpush1.msra.mxu0 0.0
        %2619 = vmatprep.subr.mxu0 0.0
        %2620 = vmatpush1.msra.mxu0 0.0
        %2621 = vmatprep.subr.mxu0 0.0
        %2622 = vmatpush1.msra.mxu0 0.0
        %2623 = vmatprep.subr.mxu0 0.0
        %2624 = vmatpush1.msra.mxu0 0.0
        %2625 = vmatprep.subr.mxu0 0.0
        %2626 = vmatpush1.msra.mxu0 0.0
        %2627 = vmatprep.subr.mxu0 %v457
        %2628 = vmatpush1.msra.mxu0 %v456
        %2629 = vmatprep.subr.mxu0 %v455
        %2630 = vmatpush1.msra.mxu0 %v454
        %2631 = vmatprep.subr.mxu0 0.0
        %2632 = vmatpush2.msra.mxu0 0.0
        %2633 = vmatprep.subr.mxu0 0.0
        %2634 = vmatpush2.msra.mxu0 0.0
        %2635 = vmatprep.subr.mxu0 0.0
        %2636 = vmatpush2.msra.mxu0 0.0
        %2637 = vmatprep.subr.mxu0 0.0
        %2638 = vmatpush2.msra.mxu0 0.0
        %2639 = vmatprep.subr.mxu0 0.0
        %2640 = vmatpush2.msra.mxu0 0.0
        %2641 = vmatprep.subr.mxu0 0.0
        %2642 = vmatpush2.msra.mxu0 0.0
        %2643 = vmatprep.subr.mxu0 0.0
        %2644 = vmatpush2.msra.mxu0 0.0
        %2645 = vmatprep.subr.mxu0 0.0
        %2646 = vmatpush2.msra.mxu0 0.0
        %2647 = vmatprep.subr.mxu0 0.0
        %2648 = vmatpush2.msra.mxu0 0.0
        %2649 = vmatprep.subr.mxu0 0.0
        %2650 = vmatpush2.msra.mxu0 0.0
        %2651 = vmatprep.subr.mxu0 0.0
        %2652 = vmatpush2.msra.mxu0 0.0
        %2653 = vmatprep.subr.mxu0 0.0
        %2654 = vmatpush2.msra.mxu0 0.0
        %2655 = vmatprep.subr.mxu0 0.0
        %2656 = vmatpush2.msra.mxu0 0.0
        %2657 = vmatprep.subr.mxu0 0.0
        %2658 = vmatpush2.msra.mxu0 0.0
        %2659 = vmatprep.subr.mxu0 0.0
        %2660 = vmatpush2.msra.mxu0 0.0
        %2661 = vmatprep.subr.mxu0 0.0
        %2662 = vmatpush2.msra.mxu0 0.0
        %2663 = vmatprep.mubr.f32.mxu0 0.0
        %2664 = vmatmul.mubr.f32.gmra.mxu0 %v2597
        %v2665 = vpop.f32.mrf.mxu0
        %v2666 = vadd.f32 0.0, %v2665
        %v2667 = vpop.f32.mrf.mxu0
        %v2668 = vadd.f32 0.0, %v2667
        %2669 = vdwg.mxu0
        %v2670 = vmul.f32 %v2591, %v2666
        %v2671 = vmul.f32 %v2593, %v2668
        %v2674 = vcombine.low %v2670, %v2671
        %v2676 = vmul.f32 %v2368, %v2674
        %v2678 = vcombine.high %v2676, %v2676
        %v2680 = vsel %vm566, %v2676, 0.0
        %v2681 = vsel %vm566, %v2678, 0.0
        %v2682 = vadd.f32 %v2680, %v2681
        %2683 = vadd.xlane.f32.xlu0 %v2682
        %v2684 = vpop.xlane.xlu0 %2683
        %v2685 = vmul.f32 %v2684, %v811
        %v2688 = vunpack.c.l.s4 839922192
        %v2689 = vunpack.c.0.s8 %v2688
        %v2690 = vlaneseq
        %v2691 = vshrl.u32 %v2690, 7
        %v2692 = vsub.s32 %v2689, %v2691
        %v2693 = vrot.slane %v2685, %v2692
        %v2695 = vsub.f32 %v2676, %v2693
        %v2696 = vmul.f32 %v2695, %v2695
        %v2698 = vcombine.high %v2696, %v2696
        %v2700 = vsel %vm566, %v2696, 0.0
        %v2701 = vsel %vm566, %v2698, 0.0
        %v2702 = vadd.f32 %v2700, %v2701
        %2703 = vadd.xlane.f32.xlu0 %v2702
        %v2704 = vpop.xlane.xlu0 %2703
        %v2705 = vmul.f32 %v2704, %v811
        %v2706 = vadd.f32 %v2705, 1e-05
        %v2707 = vrsqrt.pop %v2706
        %v2708 = vmul.f32 %v2707, %v464
        %2710 = vset.pattern.permute.xlu0 0
        %2711 = vperm.xlu0 %2710, %v2708
        %v2712 = vpop.permute.xlu0 %2711
        %v2714 = vunpack.c.l.s4 839922192
        %v2715 = vunpack.c.0.s8 %v2714
        %v2716 = vlaneseq
        %v2717 = vshrl.u32 %v2716, 7
        %v2718 = vsub.s32 %v2715, %v2717
        %v2719 = vrot.slane %v2712, %v2718
        %v2721 = vmul.f32 %v2695, %v2719
        %v2722 = vadd.f32 %v2721, %v855
        %2723 = vrot.lane.b32.xlu0 %v2368, 17
        %v2724 = vpop.permute.xlu0 %2723
        %2725 = vrot.lane.b32.xlu0 %v2370, 17
        %v2726 = vpop.permute.xlu0 %2725
        %v2727 = vsel %vm864, %v2724, %v2726
        %v2728 = vsel %vm864, %v2726, %v2724
        %v2729 = vmul.f32 %v2728, %v870
        %v2730 = vmul.f32 %v2727, %v874
        %2731 = vrot.lane.b32.xlu0 %v2368, 16
        %v2732 = vpop.permute.xlu0 %2731
        %2733 = vrot.lane.b32.xlu0 %v2370, 16
        %v2734 = vpop.permute.xlu0 %2733
        %v2735 = vsel %vm881, %v2732, %v2734
        %v2736 = vsel %vm881, %v2734, %v2732
        %v2737 = vmul.f32 %v2736, %v887
        %v2738 = vmul.f32 %v2735, %v891
        %2739 = vrot.lane.b32.xlu0 %v2368, 15
        %v2740 = vpop.permute.xlu0 %2739
        %2741 = vrot.lane.b32.xlu0 %v2370, 15
        %v2742 = vpop.permute.xlu0 %2741
        %v2743 = vsel %vm898, %v2740, %v2742
        %v2744 = vsel %vm898, %v2742, %v2740
        %v2745 = vmul.f32 %v2744, %v904
        %v2746 = vmul.f32 %v2743, %v908
        %2747 = vrot.lane.b32.xlu0 %v2368, 1
        %v2748 = vpop.permute.xlu0 %2747
        %2749 = vrot.lane.b32.xlu0 %v2370, 1
        %v2750 = vpop.permute.xlu0 %2749
        %v2751 = vsel %vm915, %v2748, %v2750
        %v2752 = vsel %vm915, %v2750, %v2748
        %v2753 = vmul.f32 %v2752, %v921
        %v2754 = vmul.f32 %v2751, %v925
        %2755 = vrot.lane.b32.xlu0 %v2368, 127
        %v2756 = vpop.permute.xlu0 %2755
        %2757 = vrot.lane.b32.xlu0 %v2370, 127
        %v2758 = vpop.permute.xlu0 %2757
        %v2759 = vsel %vm932, %v2756, %v2758
        %v2760 = vsel %vm932, %v2758, %v2756
        %v2761 = vmul.f32 %v2759, %v938
        %v2762 = vmul.f32 %v2760, %v942
        %2763 = vrot.lane.b32.xlu0 %v2368, 113
        %v2764 = vpop.permute.xlu0 %2763
        %2765 = vrot.lane.b32.xlu0 %v2370, 113
        %v2766 = vpop.permute.xlu0 %2765
        %v2767 = vsel %vm949, %v2764, %v2766
        %v2768 = vsel %vm949, %v2766, %v2764
        %v2769 = vmul.f32 %v2767, %v955
        %v2770 = vmul.f32 %v2768, %v959
        %2771 = vrot.lane.b32.xlu0 %v2368, 112
        %v2772 = vpop.permute.xlu0 %2771
        %2773 = vrot.lane.b32.xlu0 %v2370, 112
        %v2774 = vpop.permute.xlu0 %2773
        %v2775 = vsel %vm966, %v2772, %v2774
        %v2776 = vsel %vm966, %v2774, %v2772
        %v2777 = vmul.f32 %v2775, %v972
        %v2778 = vmul.f32 %v2776, %v976
        %2779 = vrot.lane.b32.xlu0 %v2368, 111
        %v2780 = vpop.permute.xlu0 %2779
        %2781 = vrot.lane.b32.xlu0 %v2370, 111
        %v2782 = vpop.permute.xlu0 %2781
        %v2783 = vsel %vm983, %v2780, %v2782
        %v2784 = vsel %vm983, %v2782, %v2780
        %v2785 = vmul.f32 %v2783, %v989
        %v2786 = vmul.f32 %v2784, %v993
        %v2789 = vrot.slane %v2737, 4
        %v2790 = vrot.slane %v2738, 4
        %v2795 = vrot.slane %v2753, 4
        %v2796 = vrot.slane %v2754, 4
        %v2801 = vrot.slane %v2761, 4
        %v2802 = vrot.slane %v2762, 4
        %v2807 = vrot.slane %v2777, 4
        %v2808 = vrot.slane %v2778, 4
        %v2811 = vsel %vm566, %v2729, %v2789
        %v2812 = vsel %vm566, %v2730, %v2790
        %v2813 = vsel %vm566, %v2745, %v2795
        %v2814 = vsel %vm566, %v2746, %v2796
        %v2815 = vsel %vm566, %v2368, %v2801
        %v2816 = vsel %vm566, %v2370, %v2802
        %v2817 = vsel %vm566, %v2769, %v2807
        %v2818 = vsel %vm566, %v2770, %v2808
        %v2820 = vsel %vm566, %v2785, 0
        %v2823 = vsel %vm566, %v2786, 0
        %2825 = vmatprep.subr.mxu0 0.0
        %2826 = vmatpush1.msra.mxu0 0.0
        %2827 = vmatprep.subr.mxu0 0.0
        %2828 = vmatpush1.msra.mxu0 0.0
        %2829 = vmatprep.subr.mxu0 0.0
        %2830 = vmatpush1.msra.mxu0 0.0
        %2831 = vmatprep.subr.mxu0 0.0
        %2832 = vmatpush1.msra.mxu0 0.0
        %2833 = vmatprep.subr.mxu0 0.0
        %2834 = vmatpush1.msra.mxu0 0.0
        %2835 = vmatprep.subr.mxu0 0.0
        %2836 = vmatpush1.msra.mxu0 0.0
        %2837 = vmatprep.subr.mxu0 0.0
        %2838 = vmatpush1.msra.mxu0 0.0
        %2839 = vmatprep.subr.mxu0 0.0
        %2840 = vmatpush1.msra.mxu0 0.0
        %2841 = vmatprep.subr.mxu0 0.0
        %2842 = vmatpush1.msra.mxu0 0.0
        %2843 = vmatprep.subr.mxu0 0.0
        %2844 = vmatpush1.msra.mxu0 0.0
        %2845 = vmatprep.subr.mxu0 0.0
        %2846 = vmatpush1.msra.mxu0 0.0
        %2847 = vmatprep.subr.mxu0 %v2823
        %2848 = vmatpush1.msra.mxu0 %v2820
        %2849 = vmatprep.subr.mxu0 %v2818
        %2850 = vmatpush1.msra.mxu0 %v2817
        %2851 = vmatprep.subr.mxu0 %v2816
        %2852 = vmatpush1.msra.mxu0 %v2815
        %2853 = vmatprep.subr.mxu0 %v2814
        %2854 = vmatpush1.msra.mxu0 %v2813
        %2855 = vmatprep.subr.mxu0 %v2812
        %2856 = vmatpush1.msra.mxu0 %v2811
        %2857 = vmatprep.subr.mxu0 0.0
        %2858 = vmatpush2.msra.mxu0 0.0
        %2859 = vmatprep.subr.mxu0 0.0
        %2860 = vmatpush2.msra.mxu0 0.0
        %2861 = vmatprep.subr.mxu0 0.0
        %2862 = vmatpush2.msra.mxu0 0.0
        %2863 = vmatprep.subr.mxu0 0.0
        %2864 = vmatpush2.msra.mxu0 0.0
        %2865 = vmatprep.subr.mxu0 0.0
        %2866 = vmatpush2.msra.mxu0 0.0
        %2867 = vmatprep.subr.mxu0 0.0
        %2868 = vmatpush2.msra.mxu0 0.0
        %2869 = vmatprep.subr.mxu0 0.0
        %2870 = vmatpush2.msra.mxu0 0.0
        %2871 = vmatprep.subr.mxu0 0.0
        %2872 = vmatpush2.msra.mxu0 0.0
        %2873 = vmatprep.subr.mxu0 0.0
        %2874 = vmatpush2.msra.mxu0 0.0
        %2875 = vmatprep.subr.mxu0 0.0
        %2876 = vmatpush2.msra.mxu0 0.0
        %2877 = vmatprep.subr.mxu0 0.0
        %2878 = vmatpush2.msra.mxu0 0.0
        %2879 = vmatprep.subr.mxu0 0.0
        %2880 = vmatpush2.msra.mxu0 0.0
        %2881 = vmatprep.subr.mxu0 0.0
        %2882 = vmatpush2.msra.mxu0 0.0
        %2883 = vmatprep.subr.mxu0 0.0
        %2884 = vmatpush2.msra.mxu0 0.0
        %2885 = vmatprep.subr.mxu0 0.0
        %2886 = vmatpush2.msra.mxu0 0.0
        %2887 = vmatprep.subr.mxu0 0.0
        %2888 = vmatpush2.msra.mxu0 0.0
        %2889 = vmatprep.mubr.f32.mxu0 0.0
        %2890 = vmatmul.mubr.f32.gmra.mxu0 %v1030
        %v2891 = vpop.f32.mrf.mxu0
        %v2892 = vadd.f32 %v475, %v2891
        %v2893 = vpop.f32.mrf.mxu0
        %v2894 = vadd.f32 %v475, %v2893
        %2895 = vdwg.mxu0
        %v2896 = vsel %vm566, %v2892, 0.0
        %v2897 = vsel %vm566, %v2894, 0.0
        %v2898 = vadd.f32 %v2896, %v2897
        %2899 = vadd.xlane.f32.xlu0 %v2898
        %v2900 = vpop.xlane.xlu0 %2899
        %v2901 = vmul.f32 %v2900, %v811
        %v2902 = vsel %vm566, %v2901, -inf
        %v2903 = vrot.slane %v2902, 4
        %v2904 = vmax.f32 %v2902, %v2903
        %v2905 = vrot.slane %v2904, 2
        %v2906 = vmax.f32 %v2904, %v2905
        %v2907 = vrot.slane %v2906, 1
        %v2908 = vmax.f32 %v2906, %v2907
        %v2909 = vsub.f32 %v2901, %v2908
        %v2910 = vmul.f32 %v2909, 1.442695
        %v2911 = vpow.pop %v2910
        %v2912 = vsel %vm566, %v2911, 0.0
        %v2913 = vrot.slane %v2912, 4
        %v2914 = vadd.f32 %v2912, %v2913
        %v2915 = vrot.slane %v2914, 2
        %v2916 = vadd.f32 %v2914, %v2915
        %v2917 = vrot.slane %v2916, 1
        %v2918 = vadd.f32 %v2916, %v2917
        %v2919 = vrcp.pop %v2918
        %v2920 = vmul.f32 %v2911, %v2919
        %v2921 = vmul.f32 %v486, %v2892
        %v2922 = vmul.f32 %v486, %v2894
        %v2924 = vcombine.high %v2722, %v2722
        %v2926 = vmul.f32 %v2920, %v2722
        %v2927 = vmul.f32 %v2920, %v2924
        %v2928 = vadd.f32 %v2921, %v2926
        %v2929 = vadd.f32 %v2922, %v2927
        %v2930 = vsel %vm566, %v2928, 0.0
        %v2931 = vrot.slane %v2930, 4
        %v2932 = vadd.f32 %v2930, %v2931
        %v2933 = vrot.slane %v2932, 2
        %v2934 = vadd.f32 %v2932, %v2933
        %v2935 = vrot.slane %v2934, 1
        %v2936 = vadd.f32 %v2934, %v2935
        %v2937 = vsel %vm566, %v2929, 0.0
        %v2938 = vrot.slane %v2937, 4
        %v2939 = vadd.f32 %v2937, %v2938
        %v2940 = vrot.slane %v2939, 2
        %v2941 = vadd.f32 %v2939, %v2940
        %v2942 = vrot.slane %v2941, 1
        %v2943 = vadd.f32 %v2941, %v2942
        %v2944 = vxor.u32 %v2936, 2147483648
        %v2945 = vxor.u32 %v2943, 2147483648
        %v2946 = vmul.f32 %v2944, 1.442695
        %v2947 = vpow.pop %v2946
        %v2948 = vmul.f32 %v2945, 1.442695
        %v2949 = vpow.pop %v2948
        %v2950 = vadd.f32 %v2947, 1.0
        %v2951 = vadd.f32 %v2949, 1.0
        %v2952 = vrcp.pop %v2950
        %v2953 = vmul.f32 1.0, %v2952
        %v2954 = vrcp.pop %v2951
        %v2955 = vmul.f32 1.0, %v2954
        %v2958 = vcombine.low %v2953, %v2955
        %v2960 = vmul.f32 %v2368, %v2958
        %s2961 = scalar_lea.vmem %s409, 24 [#allocation2]
        %2962 = vst [vmem:[%s2961] sm:$0xff] %v2960
        %s2963 = sand.u32 %s291, 1
        %s2964 = scalar_lea.sflag [#allocation3], %s2963
        %s2965 = sand.u32 %s291, 1
        %s2966 = smul.addr %s2965, 32
        %s2967 = scalar_lea.vmem [#allocation2], %s2966
        // Predicated region
        $region69: #{tpu_custom_call.1} parent=67 // pred_check
          %p2968 = pneg %p301
        $region70: #{tpu_custom_call.1} parent=67 // pred_check_branch
          %2970 = sbr.rel (%p2968) target = $region72
        $region71: #{tpu_custom_call.1} parent=67 // pred_region
          %s2971 = smul.u32 4, %s26
          %s2973 = ssub.s32 512, 512
          %2974 = vsyncadd %s2964, %s2973
          %s2975 = smul.addr %s2971, 2
          %s2976 = smul.addr %s2975, 64
          %s2977 = scalar_lea.hbm %s12, %s2976
          %s2978 = sshll.u32 %s2967, 4
          %s2979 = int_to_ptr.vmem [resolvable:$true] %s2978
          %2984 = dma.vmem_to_hbm [thread:$0]  %s2979, 512, %s2977, %s2964, 128, 128, 8
        $region72: #{tpu_custom_call.1} parent=67 // pred_fallthru
          _
      $region68: #{tpu_custom_call.1} parent=5 // pred_fallthru
        _
      %p2985 = scmp.le.s32.totalorder 2, %s21
      // Predicated region
      $region73: #{tpu_custom_call.1} parent=5 // pred_check
        %p2986 = pneg %p2985
      $region74: #{tpu_custom_call.1} parent=5 // pred_check_branch
        %2988 = sbr.rel (%p2986) target = $region76
      $region75: #{tpu_custom_call.1} parent=5 // pred_region
        %s2989 = ssub.s32 %s21, 2
        // Predicated region
        $region77: #{tpu_custom_call.1} parent=75 // pred_check
          %p2990 = pneg %p307
        $region78: #{tpu_custom_call.1} parent=75 // pred_check_branch
          %2992 = sbr.rel (%p2990) target = $region80
        $region79: #{tpu_custom_call.1} parent=75 // pred_region
          %s2993 = sand.u32 %s292, 1
          %s2994 = scalar_lea.sflag [#allocation3], %s2993
          %s2995 = sand.u32 %s292, 1
          %s2996 = smul.addr %s2995, 32
          %s2997 = scalar_lea.vmem [#allocation2], %s2996
          %2998 = dma.done %s2994, 512
        $region80: #{tpu_custom_call.1} parent=75 // pred_fallthru
          _
      $region76: #{tpu_custom_call.1} parent=5 // pred_fallthru
        _
    $region6: #{tpu_custom_call.1} parent=1 // loop_footer
      %s25 = sadd.s32 1, %s21
    $region7: #{tpu_custom_call.1} parent=1 // loop_footer_branch
      %20 = sbr.rel target = $region3
    $region8: #{tpu_custom_call.1} parent=1 // loop_exit
      _
    %2999 = vsyncpa [#allocation3], 1
    %s3000 = scalar_lea.sflag [#allocation3], 1
    %3001 = vsyncpa %s3000, 1

</llo_original>
